<compile_context>
chip_gen: v5e
topology: v5e:2x2
jax: 0.10.0
libtpu: 0.0.40
codegen_flags: <defaults>
</compile_context>

<pallas_src>
import functools
import math

import jax
import jax.numpy as jnp
from jax import lax
from jax.experimental import pallas as pl
from jax.experimental.pallas import tpu as pltpu

HIGHEST = lax.Precision.HIGHEST
_NEG_BIG = -1e9  # finite "-inf": exp(_NEG_BIG - rowmax) underflows to exactly 0.0


def _mha_kernel(q_ref, h_ref, wq_ref, wk_ref, wvo_ref, bias_ref, o_ref, *,
                norm_factor):
    """Single-invocation multi-head attention.

    q_ref    (B*Nq, D)    flattened queries (batch-major rows)
    h_ref    (B*G,  D)    flattened key/value source rows
    wq_ref   (H, D, Kd)   per-head query projection
    wk_ref   (H, D, Kd)   per-head key projection
    wvo_ref  (H, D, E)    folded W_val @ W_out (V projected straight to output basis)
    bias_ref (B*Nq, B*G)  additive block-diagonal batch bias (0 / -1e9)
    o_ref    (B*Nq, E)
    """
    H = wq_ref.shape[0]
    mm = dict(preferred_element_type=jnp.float32, precision=HIGHEST)

    q = q_ref[...]                                        # (B*Nq, D)
    hm = h_ref[...]                                       # (B*G,  D)

    # Broadcast the handful of rows across heads once; everything below is a
    # head-batched dot_general -> no per-head lane slicing or output concat.
    qb = jnp.broadcast_to(q[None], (H,) + q.shape)        # (H, B*Nq, D)
    kb = jnp.broadcast_to(hm[None], (H,) + hm.shape)      # (H, B*G,  D)

    Q = jnp.einsum('hnd,hdk->hnk', qb, wq_ref[...], **mm) * norm_factor  # (H, B*Nq, Kd)
    K = jnp.einsum('hmd,hdk->hmk', kb, wk_ref[...], **mm)                # (H, B*G,  Kd)
    Vo = jnp.einsum('hmd,hde->hme', kb, wvo_ref[...], **mm)              # (H, B*G,  E)

    # Q @ K^T contracting the last dims of both operands (no materialized
    # transpose), plus the block-diagonal bias keeping batches separate.
    compat = jnp.einsum('hnk,hmk->hnm', Q, K, **mm)                      # (H, B*Nq, B*G)
    compat = compat + bias_ref[...][None]

    m = jnp.max(compat, axis=-1, keepdims=True)
    p = jnp.exp(compat - m)
    attn = p / jnp.sum(p, axis=-1, keepdims=True)         # exact f32 softmax

    heads = jnp.einsum('hnm,hme->hne', attn, Vo, **mm)                   # (H, B*Nq, E)
    o_ref[...] = jnp.sum(heads, axis=0).astype(o_ref.dtype)              # (B*Nq, E)


def prepare_mha_weights(w_query, w_key, w_val, w_out):
    """One-time weight repack, hoisted out of the per-call path.

    Folds W_val @ W_out per head so V is projected directly to the output
    basis inside the kernel (removes the head-output concatenate and the
    final heads @ W_out matmul).
    """
    wvo = jnp.einsum('hdv,hve->hde', w_val, w_out, precision=HIGHEST)    # (H, D, E)
    return w_query, w_key, wvo


@jax.jit
def _mha_forward(q, h, w_query, w_key, w_valout):
    B, Nq, D = q.shape
    _, G, _ = h.shape
    H, _, Kd = w_query.shape
    E = w_valout.shape[-1]
    norm_factor = 1.0 / math.sqrt(Kd)

    # Fold batch into the row axis -> a single grid step does everything.
    q2 = q.reshape(B * Nq, D)
    h2 = h.reshape(B * G, D)

    # Block-diagonal additive bias that keeps batches separate inside one
    # softmax (constant-folds under jit; natural hook for a future user mask).
    qb_idx = jnp.arange(B * Nq, dtype=jnp.int32) // Nq
    kb_idx = jnp.arange(B * G, dtype=jnp.int32) // G
    batch_bias = jnp.where(qb_idx[:, None] == kb_idx[None, :],
                           0.0, _NEG_BIG).astype(jnp.float32)

    kernel = functools.partial(_mha_kernel, norm_factor=norm_factor)

    out2 = pl.pallas_call(
        kernel,
        out_shape=jax.ShapeDtypeStruct((B * Nq, E), q.dtype),
        grid=(1,),  # single invocation: the problem is overhead-bound
        in_specs=[
            pl.BlockSpec((B * Nq, D), lambda i: (0, 0)),        # queries
            pl.BlockSpec((B * G, D), lambda i: (0, 0)),         # keys/values source
            pl.BlockSpec((H, D, Kd), lambda i: (0, 0, 0)),      # W_query
            pl.BlockSpec((H, D, Kd), lambda i: (0, 0, 0)),      # W_key
            pl.BlockSpec((H, D, E), lambda i: (0, 0, 0)),       # W_val @ W_out (folded)
            pl.BlockSpec((B * Nq, B * G), lambda i: (0, 0)),    # batch bias
        ],
        out_specs=pl.BlockSpec((B * Nq, E), lambda i: (0, 0)),
        compiler_params=pltpu.CompilerParams(
            dimension_semantics=("arbitrary",)),  # no megacore split (review)
    )(q2, h2, w_query, w_key, w_valout, batch_bias)

    return out2.reshape(B, Nq, E)


def multi_head_attention(q, h, w_query, w_key, w_valout):
    # TODO(synk): the optional `mask` / `return_attn` paths of the PyTorch
    # forward are not implemented (this covers the mask=None path).
    if h is None:
        h = q
    return _mha_forward(q, h, w_query, w_key, w_valout)


def _reference(q, h, w_query, w_key, w_val, w_out):
    """Pure-JAX replica of the PyTorch forward (mask=None), full f32 precision."""
    H, D, Kd = w_query.shape
    norm = 1.0 / math.sqrt(Kd)
    Q = jnp.einsum('bqd,hdk->hbqk', q, w_query, precision=HIGHEST)
    K = jnp.einsum('bgd,hdk->hbgk', h, w_key, precision=HIGHEST)
    V = jnp.einsum('bgd,hdv->hbgv', h, w_val, precision=HIGHEST)
    compat = norm * jnp.einsum('hbqk,hbgk->hbqg', Q, K, precision=HIGHEST)
    attn = jax.nn.softmax(compat, axis=-1)
    heads = jnp.einsum('hbqg,hbgv->hbqv', attn, V, precision=HIGHEST)     # (H, B, Nq, Vd)
    out = jnp.einsum('hbqv,hve->bqe', heads, w_out, precision=HIGHEST)
    return out


if __name__ == "__main__":
    # Module config: n_heads=4, input_dim=32, embed_dim=32 -> key_dim=val_dim=8
    n_heads, input_dim, embed_dim = 4, 32, 32
    key_dim = embed_dim // n_heads
    val_dim = key_dim

    B, Nq, G = 2, 8, 8

    key = jax.random.PRNGKey(0)
    k_q, k_h, k_wq, k_wk, k_wv, k_wo = jax.random.split(key, 6)

    # Deterministic uniform(-stdv, stdv) init, stdv = 1/sqrt(last dim) per param.
    def uinit(k, shape):
        stdv = 1.0 / math.sqrt(shape[-1])
        return jax.random.uniform(k, shape, jnp.float32, -stdv, stdv)

    W_query = uinit(k_wq, (n_heads, input_dim, key_dim))
    W_key = uinit(k_wk, (n_heads, input_dim, key_dim))
    W_val = uinit(k_wv, (n_heads, input_dim, val_dim))
    W_out = uinit(k_wo, (n_heads, val_dim, embed_dim))

    q = jax.random.normal(k_q, (B, Nq, input_dim), jnp.float32)
    h = jax.random.normal(k_h, (B, G, input_dim), jnp.float32)

    # One-time weight repack (hoisted out of the per-call path).
    wq_p, wk_p, wvo_p = prepare_mha_weights(W_query, W_key, W_val, W_out)

    out = multi_head_attention(q, h, wq_p, wk_p, wvo_p)
    out = jax.block_until_ready(out)

    ref = _reference(q, h, W_query, W_key, W_val, W_out)
    assert out.shape == (B, Nq, embed_dim)
    # Everything (kernel + reference) is f32 at HIGHEST matmul precision; the
    # only remaining deviation is reassociation from the W_val@W_out fold.
    assert jnp.allclose(out, ref, atol=1e-3, rtol=1e-3), "mismatch vs reference"

    print("KERNEL_OK")
</pallas_src>

<mosaic_0001>
module attributes {stable_mosaic.version = 11 : i64} {
  func.func @_mha_kernel(%arg0: i32, %arg1: memref<16x32xf32, #tpu.memory_space<vmem>>, %arg2: memref<16x32xf32, #tpu.memory_space<vmem>>, %arg3: memref<4x32x8xf32, #tpu.memory_space<vmem>>, %arg4: memref<4x32x8xf32, #tpu.memory_space<vmem>>, %arg5: memref<4x32x32xf32, #tpu.memory_space<vmem>>, %arg6: memref<16x16xf32, #tpu.memory_space<vmem>>, %arg7: memref<16x32xf32, #tpu.memory_space<vmem>>) attributes {dimension_semantics = [#tpu.dimension_semantics<arbitrary>], iteration_bounds = array<i64: 1>, scalar_prefetch = 0 : i64, scratch_operands = 0 : i64, tpu.core_type = #tpu.core_type<tc>, window_params = [{pipeline_mode = #tpu.pipeline_mode<synchronous>, transform_indices = @transform_0, window_bounds = array<i64: 16, 32>}, {pipeline_mode = #tpu.pipeline_mode<synchronous>, transform_indices = @transform_1, window_bounds = array<i64: 16, 32>}, {pipeline_mode = #tpu.pipeline_mode<synchronous>, transform_indices = @transform_2, window_bounds = array<i64: 4, 32, 8>}, {pipeline_mode = #tpu.pipeline_mode<synchronous>, transform_indices = @transform_3, window_bounds = array<i64: 4, 32, 8>}, {pipeline_mode = #tpu.pipeline_mode<synchronous>, transform_indices = @transform_4, window_bounds = array<i64: 4, 32, 32>}, {pipeline_mode = #tpu.pipeline_mode<synchronous>, transform_indices = @transform_5, window_bounds = array<i64: 16, 16>}, {pipeline_mode = #tpu.pipeline_mode<synchronous>, transform_indices = @transform_6, window_bounds = array<i64: 16, 32>}]} {
    %c0 = arith.constant 0 : index
    %c0_0 = arith.constant 0 : index
    %0 = vector.load %arg1[%c0, %c0_0] : memref<16x32xf32, #tpu.memory_space<vmem>>, vector<16x32xf32>
    %c0_1 = arith.constant 0 : index
    %c0_2 = arith.constant 0 : index
    %1 = vector.load %arg2[%c0_1, %c0_2] : memref<16x32xf32, #tpu.memory_space<vmem>>, vector<16x32xf32>
    %2 = vector.shape_cast %0 : vector<16x32xf32> to vector<1x16x32xf32>
    %3 = vector.shape_cast %2 : vector<1x16x32xf32> to vector<1x16x32xf32>
    %4 = vector.broadcast %3 : vector<1x16x32xf32> to vector<4x16x32xf32>
    %5 = vector.shape_cast %1 : vector<16x32xf32> to vector<1x16x32xf32>
    %6 = vector.shape_cast %5 : vector<1x16x32xf32> to vector<1x16x32xf32>
    %7 = vector.broadcast %6 : vector<1x16x32xf32> to vector<4x16x32xf32>
    %c0_3 = arith.constant 0 : index
    %c0_4 = arith.constant 0 : index
    %c0_5 = arith.constant 0 : index
    %8 = vector.load %arg3[%c0_3, %c0_4, %c0_5] : memref<4x32x8xf32, #tpu.memory_space<vmem>>, vector<4x32x8xf32>
    "tpu.trace_start"() <{level = 10 : i32, message = "hnd,hdk->hnk"}> : () -> ()
    %cst = arith.constant dense<0.000000e+00> : vector<4x16x8xf32>
    %9 = tpu.matmul %4, %8, %cst {dimension_numbers = #tpu.dot_dimension_numbers<[2], [1], [1], [2], [0, 0, 0, 1, 1, 2], [0], [0]>, precision = #tpu.contract_precision<fp32>} : vector<4x16x32xf32>, vector<4x32x8xf32>, vector<4x16x8xf32> -> vector<4x16x8xf32>
    "tpu.trace_stop"() : () -> ()
    %cst_6 = arith.constant 0.353553385 : f32
    %10 = vector.broadcast %cst_6 : f32 to vector<4x16x8xf32>
    %11 = arith.mulf %9, %10 : vector<4x16x8xf32>
    %c0_7 = arith.constant 0 : index
    %c0_8 = arith.constant 0 : index
    %c0_9 = arith.constant 0 : index
    %12 = vector.load %arg4[%c0_7, %c0_8, %c0_9] : memref<4x32x8xf32, #tpu.memory_space<vmem>>, vector<4x32x8xf32>
    "tpu.trace_start"() <{level = 10 : i32, message = "hmd,hdk->hmk"}> : () -> ()
    %cst_10 = arith.constant dense<0.000000e+00> : vector<4x16x8xf32>
    %13 = tpu.matmul %7, %12, %cst_10 {dimension_numbers = #tpu.dot_dimension_numbers<[2], [1], [1], [2], [0, 0, 0, 1, 1, 2], [0], [0]>, precision = #tpu.contract_precision<fp32>} : vector<4x16x32xf32>, vector<4x32x8xf32>, vector<4x16x8xf32> -> vector<4x16x8xf32>
    "tpu.trace_stop"() : () -> ()
    %c0_11 = arith.constant 0 : index
    %c0_12 = arith.constant 0 : index
    %c0_13 = arith.constant 0 : index
    %14 = vector.load %arg5[%c0_11, %c0_12, %c0_13] : memref<4x32x32xf32, #tpu.memory_space<vmem>>, vector<4x32x32xf32>
    "tpu.trace_start"() <{level = 10 : i32, message = "hmd,hde->hme"}> : () -> ()
    %cst_14 = arith.constant dense<0.000000e+00> : vector<4x16x32xf32>
    %15 = tpu.matmul %7, %14, %cst_14 {dimension_numbers = #tpu.dot_dimension_numbers<[2], [1], [1], [2], [0, 0, 0, 1, 1, 2], [0], [0]>, precision = #tpu.contract_precision<fp32>} : vector<4x16x32xf32>, vector<4x32x32xf32>, vector<4x16x32xf32> -> vector<4x16x32xf32>
    "tpu.trace_stop"() : () -> ()
    "tpu.trace_start"() <{level = 10 : i32, message = "hnk,hmk->hnm"}> : () -> ()
    %cst_15 = arith.constant dense<0.000000e+00> : vector<4x16x16xf32>
    %16 = tpu.matmul %11, %13, %cst_15 {dimension_numbers = #tpu.dot_dimension_numbers<[2], [2], [1], [1], [0, 0, 0, 1, 1, 1], [0], [0]>, precision = #tpu.contract_precision<fp32>} : vector<4x16x8xf32>, vector<4x16x8xf32>, vector<4x16x16xf32> -> vector<4x16x16xf32>
    "tpu.trace_stop"() : () -> ()
    %c0_16 = arith.constant 0 : index
    %c0_17 = arith.constant 0 : index
    %17 = vector.load %arg6[%c0_16, %c0_17] : memref<16x16xf32, #tpu.memory_space<vmem>>, vector<16x16xf32>
    %18 = vector.shape_cast %17 : vector<16x16xf32> to vector<1x16x16xf32>
    %19 = vector.broadcast %18 : vector<1x16x16xf32> to vector<4x16x16xf32>
    %20 = arith.addf %16, %19 : vector<4x16x16xf32>
    %cst_18 = arith.constant dense<0xFF800000> : vector<4x16xf32>
    %21 = vector.multi_reduction <maximumf>, %20, %cst_18 [2] : vector<4x16x16xf32> to vector<4x16xf32>
    %22 = vector.shape_cast %21 : vector<4x16xf32> to vector<4x16x1xf32>
    %23 = vector.broadcast %22 : vector<4x16x1xf32> to vector<4x16x16xf32>
    %24 = arith.subf %20, %23 : vector<4x16x16xf32>
    %25 = math.exp %24 : vector<4x16x16xf32>
    %cst_19 = arith.constant dense<0.000000e+00> : vector<4x16xf32>
    %26 = vector.multi_reduction <add>, %25, %cst_19 [2] : vector<4x16x16xf32> to vector<4x16xf32>
    %27 = vector.shape_cast %26 : vector<4x16xf32> to vector<4x16x1xf32>
    %28 = vector.broadcast %27 : vector<4x16x1xf32> to vector<4x16x16xf32>
    %29 = arith.divf %25, %28 : vector<4x16x16xf32>
    "tpu.trace_start"() <{level = 10 : i32, message = "hnm,hme->hne"}> : () -> ()
    %cst_20 = arith.constant dense<0.000000e+00> : vector<4x16x32xf32>
    %30 = tpu.matmul %29, %15, %cst_20 {dimension_numbers = #tpu.dot_dimension_numbers<[2], [1], [1], [2], [0, 0, 0, 1, 1, 2], [0], [0]>, precision = #tpu.contract_precision<fp32>} : vector<4x16x16xf32>, vector<4x16x32xf32>, vector<4x16x32xf32> -> vector<4x16x32xf32>
    "tpu.trace_stop"() : () -> ()
    %cst_21 = arith.constant dense<0.000000e+00> : vector<16x32xf32>
    %31 = vector.multi_reduction <add>, %30, %cst_21 [0] : vector<4x16x32xf32> to vector<16x32xf32>
    %c0_22 = arith.constant 0 : index
    %c0_23 = arith.constant 0 : index
    %32 = vector.load %arg7[%c0_22, %c0_23] : memref<16x32xf32, #tpu.memory_space<vmem>>, vector<16x32xf32>
    tpu.vector_store %arg7[%c0_22, %c0_23], %31 {strides = array<i32>} : memref<16x32xf32, #tpu.memory_space<vmem>>, vector<16x32xf32>,
    return
  }
  func.func @transform_0(%arg0: i32) -> (i32, i32) {
    %c0_i32 = arith.constant 0 : i32
    %c0_i32_0 = arith.constant 0 : i32
    %c0_i32_1 = arith.constant 0 : i32
    return %c0_i32, %c0_i32_0 : i32, i32
  }
  func.func @transform_1(%arg0: i32) -> (i32, i32) {
    %c0_i32 = arith.constant 0 : i32
    %c0_i32_0 = arith.constant 0 : i32
    %c0_i32_1 = arith.constant 0 : i32
    return %c0_i32, %c0_i32_0 : i32, i32
  }
  func.func @transform_2(%arg0: i32) -> (i32, i32, i32) {
    %c0_i32 = arith.constant 0 : i32
    %c0_i32_0 = arith.constant 0 : i32
    %c0_i32_1 = arith.constant 0 : i32
    %c0_i32_2 = arith.constant 0 : i32
    return %c0_i32, %c0_i32_0, %c0_i32_1 : i32, i32, i32
  }
  func.func @transform_3(%arg0: i32) -> (i32, i32, i32) {
    %c0_i32 = arith.constant 0 : i32
    %c0_i32_0 = arith.constant 0 : i32
    %c0_i32_1 = arith.constant 0 : i32
    %c0_i32_2 = arith.constant 0 : i32
    return %c0_i32, %c0_i32_0, %c0_i32_1 : i32, i32, i32
  }
  func.func @transform_4(%arg0: i32) -> (i32, i32, i32) {
    %c0_i32 = arith.constant 0 : i32
    %c0_i32_0 = arith.constant 0 : i32
    %c0_i32_1 = arith.constant 0 : i32
    %c0_i32_2 = arith.constant 0 : i32
    return %c0_i32, %c0_i32_0, %c0_i32_1 : i32, i32, i32
  }
  func.func @transform_5(%arg0: i32) -> (i32, i32) {
    %c0_i32 = arith.constant 0 : i32
    %c0_i32_0 = arith.constant 0 : i32
    %c0_i32_1 = arith.constant 0 : i32
    return %c0_i32, %c0_i32_0 : i32, i32
  }
  func.func @transform_6(%arg0: i32) -> (i32, i32) {
    %c0_i32 = arith.constant 0 : i32
    %c0_i32_0 = arith.constant 0 : i32
    %c0_i32_1 = arith.constant 0 : i32
    return %c0_i32, %c0_i32_0 : i32, i32
  }
}

</mosaic_0001>

<llo_original>
// kernel: _mha_forward.1
$region0: #{_mha_forward.1}
  #allocation0 [shape = 'u32[]', space=smem, size = 0x4, offset = 0x4, fixed_abs, tag = 'smem constant byte address 0x4 - core index']
  #allocation1 [shape = 'u32[72,128]{1,0:T(1,128)}', space=vmem, size = 0x9000, scoped, tag = 'internal scratch']
  %s0 = inlined_call_operand.vmem [shape: f32[16,32], index: 0, kind: input, shape index: {}]
  %s1 = inlined_call_operand.vmem [shape: f32[16,32], index: 1, kind: input, shape index: {}]
  %s2 = inlined_call_operand.vmem [shape: f32[4,32,8], index: 2, kind: input, shape index: {}]
  %s3 = inlined_call_operand.vmem [shape: f32[4,32,8], index: 3, kind: input, shape index: {}]
  %s4 = inlined_call_operand.vmem [shape: f32[4,32,32], index: 4, kind: input, shape index: {}]
  %s5 = inlined_call_operand.vmem [shape: f32[16,16], index: 5, kind: input, shape index: {}]
  %s6 = inlined_call_operand.hbm [shape: f32[16,32], index: 6, kind: output, shape index: {}]
  %s7 = sld [smem:[#allocation0]]
  $region34: #{_mha_forward.1} parent=0
    _
  %s9 = ssub.s32 1, %s7
  %s10 = scalar_select 0, %s9, %s7
  $region1: #{_mha_forward.1} parent=0
    #allocation2 [shape = 'u8[8192]{0}', space=vmem, size = 0x2000, scoped, tag = 'output window, operand 0, single buffered']
    #allocation3 [shape = 's32[1]{0}', space=sflag, size = 0x4, scoped, tag = 'scoped memory for _mha_forward.1']
    %11 = vsyncpa [#allocation3], 0
    // Predicated region
    $region2: #{_mha_forward.1} parent=1 // pred_check
      _
    $region3: #{_mha_forward.1} parent=1 // pred_check_branch
      %13 = sbr.rel (0) target = $region5
    $region4: #{_mha_forward.1} parent=1 // pred_region
      _
    $region5: #{_mha_forward.1} parent=1 // pred_fallthru
      _
    // Predicated region
    $region6: #{_mha_forward.1} parent=1 // pred_check
      _
    $region7: #{_mha_forward.1} parent=1 // pred_check_branch
      %15 = sbr.rel (0) target = $region9
    $region8: #{_mha_forward.1} parent=1 // pred_region
      _
    $region9: #{_mha_forward.1} parent=1 // pred_fallthru
      _
    // Predicated region
    $region10: #{_mha_forward.1} parent=1 // pred_check
      _
    $region11: #{_mha_forward.1} parent=1 // pred_check_branch
      %17 = sbr.rel (0) target = $region13
    $region12: #{_mha_forward.1} parent=1 // pred_region
      _
    $region13: #{_mha_forward.1} parent=1 // pred_fallthru
      _
    // Predicated region
    $region14: #{_mha_forward.1} parent=1 // pred_check
      _
    $region15: #{_mha_forward.1} parent=1 // pred_check_branch
      %19 = sbr.rel (0) target = $region17
    $region16: #{_mha_forward.1} parent=1 // pred_region
      _
    $region17: #{_mha_forward.1} parent=1 // pred_fallthru
      _
    // Predicated region
    $region18: #{_mha_forward.1} parent=1 // pred_check
      _
    $region19: #{_mha_forward.1} parent=1 // pred_check_branch
      %21 = sbr.rel (0) target = $region21
    $region20: #{_mha_forward.1} parent=1 // pred_region
      _
    $region21: #{_mha_forward.1} parent=1 // pred_fallthru
      _
    // Predicated region
    $region22: #{_mha_forward.1} parent=1 // pred_check
      _
    $region23: #{_mha_forward.1} parent=1 // pred_check_branch
      %23 = sbr.rel (0) target = $region25
    $region24: #{_mha_forward.1} parent=1 // pred_region
      _
    $region25: #{_mha_forward.1} parent=1 // pred_fallthru
      _
    %v24 = vld [vmem:[%s0] sm:$0xff]
    %v25 = vld [vmem:[%s0 + $0x8] sm:$0xff]
    %v26 = vld [vmem:[%s1] sm:$0xff]
    %v27 = vld [vmem:[%s1 + $0x8] sm:$0xff]
    %v28 = vld [vmem:[%s2] sm:$0xff]
    %v29 = vld [vmem:[%s2 + $0x8] sm:$0xff]
    %v30 = vld [vmem:[%s2 + $0x10] sm:$0xff]
    %v31 = vld [vmem:[%s2 + $0x18] sm:$0xff]
    %v32 = vld [vmem:[%s2 + $0x20] sm:$0xff]
    %v33 = vld [vmem:[%s2 + $0x28] sm:$0xff]
    %v34 = vld [vmem:[%s2 + $0x30] sm:$0xff]
    %v35 = vld [vmem:[%s2 + $0x38] sm:$0xff]
    %v36 = vld [vmem:[%s2 + $0x40] sm:$0xff]
    %v37 = vld [vmem:[%s2 + $0x48] sm:$0xff]
    %v38 = vld [vmem:[%s2 + $0x50] sm:$0xff]
    %v39 = vld [vmem:[%s2 + $0x58] sm:$0xff]
    %v40 = vld [vmem:[%s2 + $0x60] sm:$0xff]
    %v41 = vld [vmem:[%s2 + $0x68] sm:$0xff]
    %v42 = vld [vmem:[%s2 + $0x70] sm:$0xff]
    %v43 = vld [vmem:[%s2 + $0x78] sm:$0xff]
    %vm44 = vcmask 261120
    %v46 = vsel %vm44, %v24, 0
    %v49 = vsel %vm44, %v25, 0
    %51 = vmatpush.msra.mxu0 0.0
    %52 = vmatpush.msra.mxu0 0.0
    %53 = vmatpush.msra.mxu0 0.0
    %54 = vmatpush.msra.mxu0 0.0
    %55 = vmatpush.msra.mxu0 0.0
    %56 = vmatpush.msra.mxu0 0.0
    %57 = vmatpush.msra.mxu0 0.0
    %58 = vmatpush.msra.mxu0 0.0
    %59 = vmatpush.msra.mxu0 0.0
    %60 = vmatpush.msra.mxu0 0.0
    %61 = vmatpush.msra.mxu0 0.0
    %62 = vmatpush.msra.mxu0 0.0
    %v63 = vand.u32 %v31, 4294901760
    %64 = vmatpush.msra.mxu0 %v63
    %v65 = vand.u32 %v30, 4294901760
    %66 = vmatpush.msra.mxu0 %v65
    %v67 = vand.u32 %v29, 4294901760
    %68 = vmatpush.msra.mxu0 %v67
    %v69 = vand.u32 %v28, 4294901760
    %70 = vmatpush.msra.mxu0 %v69
    %v71 = vand.u32 %v46, 4294901760
    %v72 = vsub.f32 %v46, %v71
    %v73 = vand.u32 %v72, 4294901760
    %v74 = vsub.f32 %v72, %v73
    %v75 = vand.u32 %v74, 4294901760
    %76 = vmatmul.f32.gmra.mxu0 %v75
    %v77 = vpop.f32.mrf.mxu0
    %v78 = vadd.f32 0.0, %v77
    %v79 = vand.u32 %v49, 4294901760
    %v80 = vsub.f32 %v49, %v79
    %v81 = vand.u32 %v80, 4294901760
    %v82 = vsub.f32 %v80, %v81
    %v83 = vand.u32 %v82, 4294901760
    %84 = vmatmul.f32.gmra.mxu0 %v83
    %v85 = vpop.f32.mrf.mxu0
    %v86 = vadd.f32 0.0, %v85
    %87 = vdwg.mxu0
    %88 = vmatpush.msra.mxu0 0.0
    %89 = vmatpush.msra.mxu0 0.0
    %90 = vmatpush.msra.mxu0 0.0
    %91 = vmatpush.msra.mxu0 0.0
    %92 = vmatpush.msra.mxu0 0.0
    %93 = vmatpush.msra.mxu0 0.0
    %94 = vmatpush.msra.mxu0 0.0
    %95 = vmatpush.msra.mxu0 0.0
    %96 = vmatpush.msra.mxu0 0.0
    %97 = vmatpush.msra.mxu0 0.0
    %98 = vmatpush.msra.mxu0 0.0
    %99 = vmatpush.msra.mxu0 0.0
    %v100 = vand.u32 %v31, 4294901760
    %v101 = vsub.f32 %v31, %v100
    %v102 = vand.u32 %v101, 4294901760
    %v103 = vsub.f32 %v101, %v102
    %v104 = vand.u32 %v103, 4294901760
    %105 = vmatpush.msra.mxu0 %v104
    %v106 = vand.u32 %v30, 4294901760
    %v107 = vsub.f32 %v30, %v106
    %v108 = vand.u32 %v107, 4294901760
    %v109 = vsub.f32 %v107, %v108
    %v110 = vand.u32 %v109, 4294901760
    %111 = vmatpush.msra.mxu0 %v110
    %v112 = vand.u32 %v29, 4294901760
    %v113 = vsub.f32 %v29, %v112
    %v114 = vand.u32 %v113, 4294901760
    %v115 = vsub.f32 %v113, %v114
    %v116 = vand.u32 %v115, 4294901760
    %117 = vmatpush.msra.mxu0 %v116
    %v118 = vand.u32 %v28, 4294901760
    %v119 = vsub.f32 %v28, %v118
    %v120 = vand.u32 %v119, 4294901760
    %v121 = vsub.f32 %v119, %v120
    %v122 = vand.u32 %v121, 4294901760
    %123 = vmatpush.msra.mxu0 %v122
    %v124 = vand.u32 %v46, 4294901760
    %125 = vmatmul.f32.gmra.mxu0 %v124
    %v126 = vpop.f32.mrf.mxu0
    %v127 = vadd.f32 %v78, %v126
    %v128 = vand.u32 %v49, 4294901760
    %129 = vmatmul.f32.gmra.mxu0 %v128
    %v130 = vpop.f32.mrf.mxu0
    %v131 = vadd.f32 %v86, %v130
    %132 = vdwg.mxu0
    %133 = vmatpush.msra.mxu0 0.0
    %134 = vmatpush.msra.mxu0 0.0
    %135 = vmatpush.msra.mxu0 0.0
    %136 = vmatpush.msra.mxu0 0.0
    %137 = vmatpush.msra.mxu0 0.0
    %138 = vmatpush.msra.mxu0 0.0
    %139 = vmatpush.msra.mxu0 0.0
    %140 = vmatpush.msra.mxu0 0.0
    %141 = vmatpush.msra.mxu0 0.0
    %142 = vmatpush.msra.mxu0 0.0
    %143 = vmatpush.msra.mxu0 0.0
    %144 = vmatpush.msra.mxu0 0.0
    %v145 = vand.u32 %v31, 4294901760
    %v146 = vsub.f32 %v31, %v145
    %147 = vmatpush.msra.mxu0 %v146
    %v148 = vand.u32 %v30, 4294901760
    %v149 = vsub.f32 %v30, %v148
    %150 = vmatpush.msra.mxu0 %v149
    %v151 = vand.u32 %v29, 4294901760
    %v152 = vsub.f32 %v29, %v151
    %153 = vmatpush.msra.mxu0 %v152
    %v154 = vand.u32 %v28, 4294901760
    %v155 = vsub.f32 %v28, %v154
    %156 = vmatpush.msra.mxu0 %v155
    %v157 = vand.u32 %v46, 4294901760
    %v158 = vsub.f32 %v46, %v157
    %159 = vmatmul.f32.gmra.mxu0 %v158
    %v160 = vpop.f32.mrf.mxu0
    %v161 = vadd.f32 %v127, %v160
    %v162 = vand.u32 %v49, 4294901760
    %v163 = vsub.f32 %v49, %v162
    %164 = vmatmul.f32.gmra.mxu0 %v163
    %v165 = vpop.f32.mrf.mxu0
    %v166 = vadd.f32 %v131, %v165
    %167 = vdwg.mxu0
    %168 = vmatpush.msra.mxu0 0.0
    %169 = vmatpush.msra.mxu0 0.0
    %170 = vmatpush.msra.mxu0 0.0
    %171 = vmatpush.msra.mxu0 0.0
    %172 = vmatpush.msra.mxu0 0.0
    %173 = vmatpush.msra.mxu0 0.0
    %174 = vmatpush.msra.mxu0 0.0
    %175 = vmatpush.msra.mxu0 0.0
    %176 = vmatpush.msra.mxu0 0.0
    %177 = vmatpush.msra.mxu0 0.0
    %178 = vmatpush.msra.mxu0 0.0
    %179 = vmatpush.msra.mxu0 0.0
    %v180 = vand.u32 %v31, 4294901760
    %181 = vmatpush.msra.mxu0 %v180
    %v182 = vand.u32 %v30, 4294901760
    %183 = vmatpush.msra.mxu0 %v182
    %v184 = vand.u32 %v29, 4294901760
    %185 = vmatpush.msra.mxu0 %v184
    %v186 = vand.u32 %v28, 4294901760
    %187 = vmatpush.msra.mxu0 %v186
    %v188 = vand.u32 %v46, 4294901760
    %v189 = vsub.f32 %v46, %v188
    %v190 = vand.u32 %v189, 4294901760
    %191 = vmatmul.f32.gmra.mxu0 %v190
    %v192 = vpop.f32.mrf.mxu0
    %v193 = vadd.f32 %v161, %v192
    %v194 = vand.u32 %v49, 4294901760
    %v195 = vsub.f32 %v49, %v194
    %v196 = vand.u32 %v195, 4294901760
    %197 = vmatmul.f32.gmra.mxu0 %v196
    %v198 = vpop.f32.mrf.mxu0
    %v199 = vadd.f32 %v166, %v198
    %200 = vdwg.mxu0
    %201 = vmatpush.msra.mxu0 0.0
    %202 = vmatpush.msra.mxu0 0.0
    %203 = vmatpush.msra.mxu0 0.0
    %204 = vmatpush.msra.mxu0 0.0
    %205 = vmatpush.msra.mxu0 0.0
    %206 = vmatpush.msra.mxu0 0.0
    %207 = vmatpush.msra.mxu0 0.0
    %208 = vmatpush.msra.mxu0 0.0
    %209 = vmatpush.msra.mxu0 0.0
    %210 = vmatpush.msra.mxu0 0.0
    %211 = vmatpush.msra.mxu0 0.0
    %212 = vmatpush.msra.mxu0 0.0
    %v213 = vand.u32 %v31, 4294901760
    %v214 = vsub.f32 %v31, %v213
    %v215 = vand.u32 %v214, 4294901760
    %216 = vmatpush.msra.mxu0 %v215
    %v217 = vand.u32 %v30, 4294901760
    %v218 = vsub.f32 %v30, %v217
    %v219 = vand.u32 %v218, 4294901760
    %220 = vmatpush.msra.mxu0 %v219
    %v221 = vand.u32 %v29, 4294901760
    %v222 = vsub.f32 %v29, %v221
    %v223 = vand.u32 %v222, 4294901760
    %224 = vmatpush.msra.mxu0 %v223
    %v225 = vand.u32 %v28, 4294901760
    %v226 = vsub.f32 %v28, %v225
    %v227 = vand.u32 %v226, 4294901760
    %228 = vmatpush.msra.mxu0 %v227
    %v229 = vand.u32 %v46, 4294901760
    %230 = vmatmul.f32.gmra.mxu0 %v229
    %v231 = vpop.f32.mrf.mxu0
    %v232 = vadd.f32 %v193, %v231
    %v233 = vand.u32 %v49, 4294901760
    %234 = vmatmul.f32.gmra.mxu0 %v233
    %v235 = vpop.f32.mrf.mxu0
    %v236 = vadd.f32 %v199, %v235
    %237 = vdwg.mxu0
    %238 = vmatpush.msra.mxu0 0.0
    %239 = vmatpush.msra.mxu0 0.0
    %240 = vmatpush.msra.mxu0 0.0
    %241 = vmatpush.msra.mxu0 0.0
    %242 = vmatpush.msra.mxu0 0.0
    %243 = vmatpush.msra.mxu0 0.0
    %244 = vmatpush.msra.mxu0 0.0
    %245 = vmatpush.msra.mxu0 0.0
    %246 = vmatpush.msra.mxu0 0.0
    %247 = vmatpush.msra.mxu0 0.0
    %248 = vmatpush.msra.mxu0 0.0
    %249 = vmatpush.msra.mxu0 0.0
    %v250 = vand.u32 %v31, 4294901760
    %251 = vmatpush.msra.mxu0 %v250
    %v252 = vand.u32 %v30, 4294901760
    %253 = vmatpush.msra.mxu0 %v252
    %v254 = vand.u32 %v29, 4294901760
    %255 = vmatpush.msra.mxu0 %v254
    %v256 = vand.u32 %v28, 4294901760
    %257 = vmatpush.msra.mxu0 %v256
    %v258 = vand.u32 %v46, 4294901760
    %259 = vmatmul.f32.gmra.mxu0 %v258
    %v260 = vpop.f32.mrf.mxu0
    %v261 = vadd.f32 %v232, %v260
    %v262 = vand.u32 %v49, 4294901760
    %263 = vmatmul.f32.gmra.mxu0 %v262
    %v264 = vpop.f32.mrf.mxu0
    %v265 = vadd.f32 %v236, %v264
    %266 = vdwg.mxu0
    %267 = vmatpush.msra.mxu0 0.0
    %268 = vmatpush.msra.mxu0 0.0
    %269 = vmatpush.msra.mxu0 0.0
    %270 = vmatpush.msra.mxu0 0.0
    %271 = vmatpush.msra.mxu0 0.0
    %272 = vmatpush.msra.mxu0 0.0
    %273 = vmatpush.msra.mxu0 0.0
    %274 = vmatpush.msra.mxu0 0.0
    %275 = vmatpush.msra.mxu0 0.0
    %276 = vmatpush.msra.mxu0 0.0
    %277 = vmatpush.msra.mxu0 0.0
    %278 = vmatpush.msra.mxu0 0.0
    %v279 = vand.u32 %v35, 4294901760
    %280 = vmatpush.msra.mxu0 %v279
    %v281 = vand.u32 %v34, 4294901760
    %282 = vmatpush.msra.mxu0 %v281
    %v283 = vand.u32 %v33, 4294901760
    %284 = vmatpush.msra.mxu0 %v283
    %v285 = vand.u32 %v32, 4294901760
    %286 = vmatpush.msra.mxu0 %v285
    %v287 = vand.u32 %v46, 4294901760
    %v288 = vsub.f32 %v46, %v287
    %v289 = vand.u32 %v288, 4294901760
    %v290 = vsub.f32 %v288, %v289
    %v291 = vand.u32 %v290, 4294901760
    %292 = vmatmul.f32.gmra.mxu0 %v291
    %v293 = vpop.f32.mrf.mxu0
    %v294 = vadd.f32 0.0, %v293
    %v295 = vand.u32 %v49, 4294901760
    %v296 = vsub.f32 %v49, %v295
    %v297 = vand.u32 %v296, 4294901760
    %v298 = vsub.f32 %v296, %v297
    %v299 = vand.u32 %v298, 4294901760
    %300 = vmatmul.f32.gmra.mxu0 %v299
    %v301 = vpop.f32.mrf.mxu0
    %v302 = vadd.f32 0.0, %v301
    %303 = vdwg.mxu0
    %304 = vmatpush.msra.mxu0 0.0
    %305 = vmatpush.msra.mxu0 0.0
    %306 = vmatpush.msra.mxu0 0.0
    %307 = vmatpush.msra.mxu0 0.0
    %308 = vmatpush.msra.mxu0 0.0
    %309 = vmatpush.msra.mxu0 0.0
    %310 = vmatpush.msra.mxu0 0.0
    %311 = vmatpush.msra.mxu0 0.0
    %312 = vmatpush.msra.mxu0 0.0
    %313 = vmatpush.msra.mxu0 0.0
    %314 = vmatpush.msra.mxu0 0.0
    %315 = vmatpush.msra.mxu0 0.0
    %v316 = vand.u32 %v35, 4294901760
    %v317 = vsub.f32 %v35, %v316
    %v318 = vand.u32 %v317, 4294901760
    %v319 = vsub.f32 %v317, %v318
    %v320 = vand.u32 %v319, 4294901760
    %321 = vmatpush.msra.mxu0 %v320
    %v322 = vand.u32 %v34, 4294901760
    %v323 = vsub.f32 %v34, %v322
    %v324 = vand.u32 %v323, 4294901760
    %v325 = vsub.f32 %v323, %v324
    %v326 = vand.u32 %v325, 4294901760
    %327 = vmatpush.msra.mxu0 %v326
    %v328 = vand.u32 %v33, 4294901760
    %v329 = vsub.f32 %v33, %v328
    %v330 = vand.u32 %v329, 4294901760
    %v331 = vsub.f32 %v329, %v330
    %v332 = vand.u32 %v331, 4294901760
    %333 = vmatpush.msra.mxu0 %v332
    %v334 = vand.u32 %v32, 4294901760
    %v335 = vsub.f32 %v32, %v334
    %v336 = vand.u32 %v335, 4294901760
    %v337 = vsub.f32 %v335, %v336
    %v338 = vand.u32 %v337, 4294901760
    %339 = vmatpush.msra.mxu0 %v338
    %v340 = vand.u32 %v46, 4294901760
    %341 = vmatmul.f32.gmra.mxu0 %v340
    %v342 = vpop.f32.mrf.mxu0
    %v343 = vadd.f32 %v294, %v342
    %v344 = vand.u32 %v49, 4294901760
    %345 = vmatmul.f32.gmra.mxu0 %v344
    %v346 = vpop.f32.mrf.mxu0
    %v347 = vadd.f32 %v302, %v346
    %348 = vdwg.mxu0
    %349 = vmatpush.msra.mxu0 0.0
    %350 = vmatpush.msra.mxu0 0.0
    %351 = vmatpush.msra.mxu0 0.0
    %352 = vmatpush.msra.mxu0 0.0
    %353 = vmatpush.msra.mxu0 0.0
    %354 = vmatpush.msra.mxu0 0.0
    %355 = vmatpush.msra.mxu0 0.0
    %356 = vmatpush.msra.mxu0 0.0
    %357 = vmatpush.msra.mxu0 0.0
    %358 = vmatpush.msra.mxu0 0.0
    %359 = vmatpush.msra.mxu0 0.0
    %360 = vmatpush.msra.mxu0 0.0
    %v361 = vand.u32 %v35, 4294901760
    %v362 = vsub.f32 %v35, %v361
    %363 = vmatpush.msra.mxu0 %v362
    %v364 = vand.u32 %v34, 4294901760
    %v365 = vsub.f32 %v34, %v364
    %366 = vmatpush.msra.mxu0 %v365
    %v367 = vand.u32 %v33, 4294901760
    %v368 = vsub.f32 %v33, %v367
    %369 = vmatpush.msra.mxu0 %v368
    %v370 = vand.u32 %v32, 4294901760
    %v371 = vsub.f32 %v32, %v370
    %372 = vmatpush.msra.mxu0 %v371
    %v373 = vand.u32 %v46, 4294901760
    %v374 = vsub.f32 %v46, %v373
    %375 = vmatmul.f32.gmra.mxu0 %v374
    %v376 = vpop.f32.mrf.mxu0
    %v377 = vadd.f32 %v343, %v376
    %v378 = vand.u32 %v49, 4294901760
    %v379 = vsub.f32 %v49, %v378
    %380 = vmatmul.f32.gmra.mxu0 %v379
    %v381 = vpop.f32.mrf.mxu0
    %v382 = vadd.f32 %v347, %v381
    %383 = vdwg.mxu0
    %384 = vmatpush.msra.mxu0 0.0
    %385 = vmatpush.msra.mxu0 0.0
    %386 = vmatpush.msra.mxu0 0.0
    %387 = vmatpush.msra.mxu0 0.0
    %388 = vmatpush.msra.mxu0 0.0
    %389 = vmatpush.msra.mxu0 0.0
    %390 = vmatpush.msra.mxu0 0.0
    %391 = vmatpush.msra.mxu0 0.0
    %392 = vmatpush.msra.mxu0 0.0
    %393 = vmatpush.msra.mxu0 0.0
    %394 = vmatpush.msra.mxu0 0.0
    %395 = vmatpush.msra.mxu0 0.0
    %v396 = vand.u32 %v35, 4294901760
    %397 = vmatpush.msra.mxu0 %v396
    %v398 = vand.u32 %v34, 4294901760
    %399 = vmatpush.msra.mxu0 %v398
    %v400 = vand.u32 %v33, 4294901760
    %401 = vmatpush.msra.mxu0 %v400
    %v402 = vand.u32 %v32, 4294901760
    %403 = vmatpush.msra.mxu0 %v402
    %v404 = vand.u32 %v46, 4294901760
    %v405 = vsub.f32 %v46, %v404
    %v406 = vand.u32 %v405, 4294901760
    %407 = vmatmul.f32.gmra.mxu0 %v406
    %v408 = vpop.f32.mrf.mxu0
    %v409 = vadd.f32 %v377, %v408
    %v410 = vand.u32 %v49, 4294901760
    %v411 = vsub.f32 %v49, %v410
    %v412 = vand.u32 %v411, 4294901760
    %413 = vmatmul.f32.gmra.mxu0 %v412
    %v414 = vpop.f32.mrf.mxu0
    %v415 = vadd.f32 %v382, %v414
    %416 = vdwg.mxu0
    %417 = vmatpush.msra.mxu0 0.0
    %418 = vmatpush.msra.mxu0 0.0
    %419 = vmatpush.msra.mxu0 0.0
    %420 = vmatpush.msra.mxu0 0.0
    %421 = vmatpush.msra.mxu0 0.0
    %422 = vmatpush.msra.mxu0 0.0
    %423 = vmatpush.msra.mxu0 0.0
    %424 = vmatpush.msra.mxu0 0.0
    %425 = vmatpush.msra.mxu0 0.0
    %426 = vmatpush.msra.mxu0 0.0
    %427 = vmatpush.msra.mxu0 0.0
    %428 = vmatpush.msra.mxu0 0.0
    %v429 = vand.u32 %v35, 4294901760
    %v430 = vsub.f32 %v35, %v429
    %v431 = vand.u32 %v430, 4294901760
    %432 = vmatpush.msra.mxu0 %v431
    %v433 = vand.u32 %v34, 4294901760
    %v434 = vsub.f32 %v34, %v433
    %v435 = vand.u32 %v434, 4294901760
    %436 = vmatpush.msra.mxu0 %v435
    %v437 = vand.u32 %v33, 4294901760
    %v438 = vsub.f32 %v33, %v437
    %v439 = vand.u32 %v438, 4294901760
    %440 = vmatpush.msra.mxu0 %v439
    %v441 = vand.u32 %v32, 4294901760
    %v442 = vsub.f32 %v32, %v441
    %v443 = vand.u32 %v442, 4294901760
    %444 = vmatpush.msra.mxu0 %v443
    %v445 = vand.u32 %v46, 4294901760
    %446 = vmatmul.f32.gmra.mxu0 %v445
    %v447 = vpop.f32.mrf.mxu0
    %v448 = vadd.f32 %v409, %v447
    %v449 = vand.u32 %v49, 4294901760
    %450 = vmatmul.f32.gmra.mxu0 %v449
    %v451 = vpop.f32.mrf.mxu0
    %v452 = vadd.f32 %v415, %v451
    %453 = vdwg.mxu0
    %454 = vmatpush.msra.mxu0 0.0
    %455 = vmatpush.msra.mxu0 0.0
    %456 = vmatpush.msra.mxu0 0.0
    %457 = vmatpush.msra.mxu0 0.0
    %458 = vmatpush.msra.mxu0 0.0
    %459 = vmatpush.msra.mxu0 0.0
    %460 = vmatpush.msra.mxu0 0.0
    %461 = vmatpush.msra.mxu0 0.0
    %462 = vmatpush.msra.mxu0 0.0
    %463 = vmatpush.msra.mxu0 0.0
    %464 = vmatpush.msra.mxu0 0.0
    %465 = vmatpush.msra.mxu0 0.0
    %v466 = vand.u32 %v35, 4294901760
    %467 = vmatpush.msra.mxu0 %v466
    %v468 = vand.u32 %v34, 4294901760
    %469 = vmatpush.msra.mxu0 %v468
    %v470 = vand.u32 %v33, 4294901760
    %471 = vmatpush.msra.mxu0 %v470
    %v472 = vand.u32 %v32, 4294901760
    %473 = vmatpush.msra.mxu0 %v472
    %v474 = vand.u32 %v46, 4294901760
    %475 = vmatmul.f32.gmra.mxu0 %v474
    %v476 = vpop.f32.mrf.mxu0
    %v477 = vadd.f32 %v448, %v476
    %v478 = vand.u32 %v49, 4294901760
    %479 = vmatmul.f32.gmra.mxu0 %v478
    %v480 = vpop.f32.mrf.mxu0
    %v481 = vadd.f32 %v452, %v480
    %482 = vdwg.mxu0
    %483 = vmatpush.msra.mxu0 0.0
    %484 = vmatpush.msra.mxu0 0.0
    %485 = vmatpush.msra.mxu0 0.0
    %486 = vmatpush.msra.mxu0 0.0
    %487 = vmatpush.msra.mxu0 0.0
    %488 = vmatpush.msra.mxu0 0.0
    %489 = vmatpush.msra.mxu0 0.0
    %490 = vmatpush.msra.mxu0 0.0
    %491 = vmatpush.msra.mxu0 0.0
    %492 = vmatpush.msra.mxu0 0.0
    %493 = vmatpush.msra.mxu0 0.0
    %494 = vmatpush.msra.mxu0 0.0
    %v495 = vand.u32 %v39, 4294901760
    %496 = vmatpush.msra.mxu0 %v495
    %v497 = vand.u32 %v38, 4294901760
    %498 = vmatpush.msra.mxu0 %v497
    %v499 = vand.u32 %v37, 4294901760
    %500 = vmatpush.msra.mxu0 %v499
    %v501 = vand.u32 %v36, 4294901760
    %502 = vmatpush.msra.mxu0 %v501
    %v503 = vand.u32 %v46, 4294901760
    %v504 = vsub.f32 %v46, %v503
    %v505 = vand.u32 %v504, 4294901760
    %v506 = vsub.f32 %v504, %v505
    %v507 = vand.u32 %v506, 4294901760
    %508 = vmatmul.f32.gmra.mxu0 %v507
    %v509 = vpop.f32.mrf.mxu0
    %v510 = vadd.f32 0.0, %v509
    %v511 = vand.u32 %v49, 4294901760
    %v512 = vsub.f32 %v49, %v511
    %v513 = vand.u32 %v512, 4294901760
    %v514 = vsub.f32 %v512, %v513
    %v515 = vand.u32 %v514, 4294901760
    %516 = vmatmul.f32.gmra.mxu0 %v515
    %v517 = vpop.f32.mrf.mxu0
    %v518 = vadd.f32 0.0, %v517
    %519 = vdwg.mxu0
    %520 = vmatpush.msra.mxu0 0.0
    %521 = vmatpush.msra.mxu0 0.0
    %522 = vmatpush.msra.mxu0 0.0
    %523 = vmatpush.msra.mxu0 0.0
    %524 = vmatpush.msra.mxu0 0.0
    %525 = vmatpush.msra.mxu0 0.0
    %526 = vmatpush.msra.mxu0 0.0
    %527 = vmatpush.msra.mxu0 0.0
    %528 = vmatpush.msra.mxu0 0.0
    %529 = vmatpush.msra.mxu0 0.0
    %530 = vmatpush.msra.mxu0 0.0
    %531 = vmatpush.msra.mxu0 0.0
    %v532 = vand.u32 %v39, 4294901760
    %v533 = vsub.f32 %v39, %v532
    %v534 = vand.u32 %v533, 4294901760
    %v535 = vsub.f32 %v533, %v534
    %v536 = vand.u32 %v535, 4294901760
    %537 = vmatpush.msra.mxu0 %v536
    %v538 = vand.u32 %v38, 4294901760
    %v539 = vsub.f32 %v38, %v538
    %v540 = vand.u32 %v539, 4294901760
    %v541 = vsub.f32 %v539, %v540
    %v542 = vand.u32 %v541, 4294901760
    %543 = vmatpush.msra.mxu0 %v542
    %v544 = vand.u32 %v37, 4294901760
    %v545 = vsub.f32 %v37, %v544
    %v546 = vand.u32 %v545, 4294901760
    %v547 = vsub.f32 %v545, %v546
    %v548 = vand.u32 %v547, 4294901760
    %549 = vmatpush.msra.mxu0 %v548
    %v550 = vand.u32 %v36, 4294901760
    %v551 = vsub.f32 %v36, %v550
    %v552 = vand.u32 %v551, 4294901760
    %v553 = vsub.f32 %v551, %v552
    %v554 = vand.u32 %v553, 4294901760
    %555 = vmatpush.msra.mxu0 %v554
    %v556 = vand.u32 %v46, 4294901760
    %557 = vmatmul.f32.gmra.mxu0 %v556
    %v558 = vpop.f32.mrf.mxu0
    %v559 = vadd.f32 %v510, %v558
    %v560 = vand.u32 %v49, 4294901760
    %561 = vmatmul.f32.gmra.mxu0 %v560
    %v562 = vpop.f32.mrf.mxu0
    %v563 = vadd.f32 %v518, %v562
    %564 = vdwg.mxu0
    %565 = vmatpush.msra.mxu0 0.0
    %566 = vmatpush.msra.mxu0 0.0
    %567 = vmatpush.msra.mxu0 0.0
    %568 = vmatpush.msra.mxu0 0.0
    %569 = vmatpush.msra.mxu0 0.0
    %570 = vmatpush.msra.mxu0 0.0
    %571 = vmatpush.msra.mxu0 0.0
    %572 = vmatpush.msra.mxu0 0.0
    %573 = vmatpush.msra.mxu0 0.0
    %574 = vmatpush.msra.mxu0 0.0
    %575 = vmatpush.msra.mxu0 0.0
    %576 = vmatpush.msra.mxu0 0.0
    %v577 = vand.u32 %v39, 4294901760
    %v578 = vsub.f32 %v39, %v577
    %579 = vmatpush.msra.mxu0 %v578
    %v580 = vand.u32 %v38, 4294901760
    %v581 = vsub.f32 %v38, %v580
    %582 = vmatpush.msra.mxu0 %v581
    %v583 = vand.u32 %v37, 4294901760
    %v584 = vsub.f32 %v37, %v583
    %585 = vmatpush.msra.mxu0 %v584
    %v586 = vand.u32 %v36, 4294901760
    %v587 = vsub.f32 %v36, %v586
    %588 = vmatpush.msra.mxu0 %v587
    %v589 = vand.u32 %v46, 4294901760
    %v590 = vsub.f32 %v46, %v589
    %591 = vmatmul.f32.gmra.mxu0 %v590
    %v592 = vpop.f32.mrf.mxu0
    %v593 = vadd.f32 %v559, %v592
    %v594 = vand.u32 %v49, 4294901760
    %v595 = vsub.f32 %v49, %v594
    %596 = vmatmul.f32.gmra.mxu0 %v595
    %v597 = vpop.f32.mrf.mxu0
    %v598 = vadd.f32 %v563, %v597
    %599 = vdwg.mxu0
    %600 = vmatpush.msra.mxu0 0.0
    %601 = vmatpush.msra.mxu0 0.0
    %602 = vmatpush.msra.mxu0 0.0
    %603 = vmatpush.msra.mxu0 0.0
    %604 = vmatpush.msra.mxu0 0.0
    %605 = vmatpush.msra.mxu0 0.0
    %606 = vmatpush.msra.mxu0 0.0
    %607 = vmatpush.msra.mxu0 0.0
    %608 = vmatpush.msra.mxu0 0.0
    %609 = vmatpush.msra.mxu0 0.0
    %610 = vmatpush.msra.mxu0 0.0
    %611 = vmatpush.msra.mxu0 0.0
    %v612 = vand.u32 %v39, 4294901760
    %613 = vmatpush.msra.mxu0 %v612
    %v614 = vand.u32 %v38, 4294901760
    %615 = vmatpush.msra.mxu0 %v614
    %v616 = vand.u32 %v37, 4294901760
    %617 = vmatpush.msra.mxu0 %v616
    %v618 = vand.u32 %v36, 4294901760
    %619 = vmatpush.msra.mxu0 %v618
    %v620 = vand.u32 %v46, 4294901760
    %v621 = vsub.f32 %v46, %v620
    %v622 = vand.u32 %v621, 4294901760
    %623 = vmatmul.f32.gmra.mxu0 %v622
    %v624 = vpop.f32.mrf.mxu0
    %v625 = vadd.f32 %v593, %v624
    %v626 = vand.u32 %v49, 4294901760
    %v627 = vsub.f32 %v49, %v626
    %v628 = vand.u32 %v627, 4294901760
    %629 = vmatmul.f32.gmra.mxu0 %v628
    %v630 = vpop.f32.mrf.mxu0
    %v631 = vadd.f32 %v598, %v630
    %632 = vdwg.mxu0
    %633 = vmatpush.msra.mxu0 0.0
    %634 = vmatpush.msra.mxu0 0.0
    %635 = vmatpush.msra.mxu0 0.0
    %636 = vmatpush.msra.mxu0 0.0
    %637 = vmatpush.msra.mxu0 0.0
    %638 = vmatpush.msra.mxu0 0.0
    %639 = vmatpush.msra.mxu0 0.0
    %640 = vmatpush.msra.mxu0 0.0
    %641 = vmatpush.msra.mxu0 0.0
    %642 = vmatpush.msra.mxu0 0.0
    %643 = vmatpush.msra.mxu0 0.0
    %644 = vmatpush.msra.mxu0 0.0
    %v645 = vand.u32 %v39, 4294901760
    %v646 = vsub.f32 %v39, %v645
    %v647 = vand.u32 %v646, 4294901760
    %648 = vmatpush.msra.mxu0 %v647
    %v649 = vand.u32 %v38, 4294901760
    %v650 = vsub.f32 %v38, %v649
    %v651 = vand.u32 %v650, 4294901760
    %652 = vmatpush.msra.mxu0 %v651
    %v653 = vand.u32 %v37, 4294901760
    %v654 = vsub.f32 %v37, %v653
    %v655 = vand.u32 %v654, 4294901760
    %656 = vmatpush.msra.mxu0 %v655
    %v657 = vand.u32 %v36, 4294901760
    %v658 = vsub.f32 %v36, %v657
    %v659 = vand.u32 %v658, 4294901760
    %660 = vmatpush.msra.mxu0 %v659
    %v661 = vand.u32 %v46, 4294901760
    %662 = vmatmul.f32.gmra.mxu0 %v661
    %v663 = vpop.f32.mrf.mxu0
    %v664 = vadd.f32 %v625, %v663
    %v665 = vand.u32 %v49, 4294901760
    %666 = vmatmul.f32.gmra.mxu0 %v665
    %v667 = vpop.f32.mrf.mxu0
    %v668 = vadd.f32 %v631, %v667
    %669 = vdwg.mxu0
    %670 = vmatpush.msra.mxu0 0.0
    %671 = vmatpush.msra.mxu0 0.0
    %672 = vmatpush.msra.mxu0 0.0
    %673 = vmatpush.msra.mxu0 0.0
    %674 = vmatpush.msra.mxu0 0.0
    %675 = vmatpush.msra.mxu0 0.0
    %676 = vmatpush.msra.mxu0 0.0
    %677 = vmatpush.msra.mxu0 0.0
    %678 = vmatpush.msra.mxu0 0.0
    %679 = vmatpush.msra.mxu0 0.0
    %680 = vmatpush.msra.mxu0 0.0
    %681 = vmatpush.msra.mxu0 0.0
    %v682 = vand.u32 %v39, 4294901760
    %683 = vmatpush.msra.mxu0 %v682
    %v684 = vand.u32 %v38, 4294901760
    %685 = vmatpush.msra.mxu0 %v684
    %v686 = vand.u32 %v37, 4294901760
    %687 = vmatpush.msra.mxu0 %v686
    %v688 = vand.u32 %v36, 4294901760
    %689 = vmatpush.msra.mxu0 %v688
    %v690 = vand.u32 %v46, 4294901760
    %691 = vmatmul.f32.gmra.mxu0 %v690
    %v692 = vpop.f32.mrf.mxu0
    %v693 = vadd.f32 %v664, %v692
    %v694 = vand.u32 %v49, 4294901760
    %695 = vmatmul.f32.gmra.mxu0 %v694
    %v696 = vpop.f32.mrf.mxu0
    %v697 = vadd.f32 %v668, %v696
    %698 = vdwg.mxu0
    %699 = vmatpush.msra.mxu0 0.0
    %700 = vmatpush.msra.mxu0 0.0
    %701 = vmatpush.msra.mxu0 0.0
    %702 = vmatpush.msra.mxu0 0.0
    %703 = vmatpush.msra.mxu0 0.0
    %704 = vmatpush.msra.mxu0 0.0
    %705 = vmatpush.msra.mxu0 0.0
    %706 = vmatpush.msra.mxu0 0.0
    %707 = vmatpush.msra.mxu0 0.0
    %708 = vmatpush.msra.mxu0 0.0
    %709 = vmatpush.msra.mxu0 0.0
    %710 = vmatpush.msra.mxu0 0.0
    %v711 = vand.u32 %v43, 4294901760
    %712 = vmatpush.msra.mxu0 %v711
    %v713 = vand.u32 %v42, 4294901760
    %714 = vmatpush.msra.mxu0 %v713
    %v715 = vand.u32 %v41, 4294901760
    %716 = vmatpush.msra.mxu0 %v715
    %v717 = vand.u32 %v40, 4294901760
    %718 = vmatpush.msra.mxu0 %v717
    %v719 = vand.u32 %v46, 4294901760
    %v720 = vsub.f32 %v46, %v719
    %v721 = vand.u32 %v720, 4294901760
    %v722 = vsub.f32 %v720, %v721
    %v723 = vand.u32 %v722, 4294901760
    %724 = vmatmul.f32.gmra.mxu0 %v723
    %v725 = vpop.f32.mrf.mxu0
    %v726 = vadd.f32 0.0, %v725
    %v727 = vand.u32 %v49, 4294901760
    %v728 = vsub.f32 %v49, %v727
    %v729 = vand.u32 %v728, 4294901760
    %v730 = vsub.f32 %v728, %v729
    %v731 = vand.u32 %v730, 4294901760
    %732 = vmatmul.f32.gmra.mxu0 %v731
    %v733 = vpop.f32.mrf.mxu0
    %v734 = vadd.f32 0.0, %v733
    %735 = vdwg.mxu0
    %736 = vmatpush.msra.mxu0 0.0
    %737 = vmatpush.msra.mxu0 0.0
    %738 = vmatpush.msra.mxu0 0.0
    %739 = vmatpush.msra.mxu0 0.0
    %740 = vmatpush.msra.mxu0 0.0
    %741 = vmatpush.msra.mxu0 0.0
    %742 = vmatpush.msra.mxu0 0.0
    %743 = vmatpush.msra.mxu0 0.0
    %744 = vmatpush.msra.mxu0 0.0
    %745 = vmatpush.msra.mxu0 0.0
    %746 = vmatpush.msra.mxu0 0.0
    %747 = vmatpush.msra.mxu0 0.0
    %v748 = vand.u32 %v43, 4294901760
    %v749 = vsub.f32 %v43, %v748
    %v750 = vand.u32 %v749, 4294901760
    %v751 = vsub.f32 %v749, %v750
    %v752 = vand.u32 %v751, 4294901760
    %753 = vmatpush.msra.mxu0 %v752
    %v754 = vand.u32 %v42, 4294901760
    %v755 = vsub.f32 %v42, %v754
    %v756 = vand.u32 %v755, 4294901760
    %v757 = vsub.f32 %v755, %v756
    %v758 = vand.u32 %v757, 4294901760
    %759 = vmatpush.msra.mxu0 %v758
    %v760 = vand.u32 %v41, 4294901760
    %v761 = vsub.f32 %v41, %v760
    %v762 = vand.u32 %v761, 4294901760
    %v763 = vsub.f32 %v761, %v762
    %v764 = vand.u32 %v763, 4294901760
    %765 = vmatpush.msra.mxu0 %v764
    %v766 = vand.u32 %v40, 4294901760
    %v767 = vsub.f32 %v40, %v766
    %v768 = vand.u32 %v767, 4294901760
    %v769 = vsub.f32 %v767, %v768
    %v770 = vand.u32 %v769, 4294901760
    %771 = vmatpush.msra.mxu0 %v770
    %v772 = vand.u32 %v46, 4294901760
    %773 = vmatmul.f32.gmra.mxu0 %v772
    %v774 = vpop.f32.mrf.mxu0
    %v775 = vadd.f32 %v726, %v774
    %v776 = vand.u32 %v49, 4294901760
    %777 = vmatmul.f32.gmra.mxu0 %v776
    %v778 = vpop.f32.mrf.mxu0
    %v779 = vadd.f32 %v734, %v778
    %780 = vdwg.mxu0
    %781 = vmatpush.msra.mxu0 0.0
    %782 = vmatpush.msra.mxu0 0.0
    %783 = vmatpush.msra.mxu0 0.0
    %784 = vmatpush.msra.mxu0 0.0
    %785 = vmatpush.msra.mxu0 0.0
    %786 = vmatpush.msra.mxu0 0.0
    %787 = vmatpush.msra.mxu0 0.0
    %788 = vmatpush.msra.mxu0 0.0
    %789 = vmatpush.msra.mxu0 0.0
    %790 = vmatpush.msra.mxu0 0.0
    %791 = vmatpush.msra.mxu0 0.0
    %792 = vmatpush.msra.mxu0 0.0
    %v793 = vand.u32 %v43, 4294901760
    %v794 = vsub.f32 %v43, %v793
    %795 = vmatpush.msra.mxu0 %v794
    %v796 = vand.u32 %v42, 4294901760
    %v797 = vsub.f32 %v42, %v796
    %798 = vmatpush.msra.mxu0 %v797
    %v799 = vand.u32 %v41, 4294901760
    %v800 = vsub.f32 %v41, %v799
    %801 = vmatpush.msra.mxu0 %v800
    %v802 = vand.u32 %v40, 4294901760
    %v803 = vsub.f32 %v40, %v802
    %804 = vmatpush.msra.mxu0 %v803
    %v805 = vand.u32 %v46, 4294901760
    %v806 = vsub.f32 %v46, %v805
    %807 = vmatmul.f32.gmra.mxu0 %v806
    %v808 = vpop.f32.mrf.mxu0
    %v809 = vadd.f32 %v775, %v808
    %v810 = vand.u32 %v49, 4294901760
    %v811 = vsub.f32 %v49, %v810
    %812 = vmatmul.f32.gmra.mxu0 %v811
    %v813 = vpop.f32.mrf.mxu0
    %v814 = vadd.f32 %v779, %v813
    %815 = vdwg.mxu0
    %816 = vmatpush.msra.mxu0 0.0
    %817 = vmatpush.msra.mxu0 0.0
    %818 = vmatpush.msra.mxu0 0.0
    %819 = vmatpush.msra.mxu0 0.0
    %820 = vmatpush.msra.mxu0 0.0
    %821 = vmatpush.msra.mxu0 0.0
    %822 = vmatpush.msra.mxu0 0.0
    %823 = vmatpush.msra.mxu0 0.0
    %824 = vmatpush.msra.mxu0 0.0
    %825 = vmatpush.msra.mxu0 0.0
    %826 = vmatpush.msra.mxu0 0.0
    %827 = vmatpush.msra.mxu0 0.0
    %v828 = vand.u32 %v43, 4294901760
    %829 = vmatpush.msra.mxu0 %v828
    %v830 = vand.u32 %v42, 4294901760
    %831 = vmatpush.msra.mxu0 %v830
    %v832 = vand.u32 %v41, 4294901760
    %833 = vmatpush.msra.mxu0 %v832
    %v834 = vand.u32 %v40, 4294901760
    %835 = vmatpush.msra.mxu0 %v834
    %v836 = vand.u32 %v46, 4294901760
    %v837 = vsub.f32 %v46, %v836
    %v838 = vand.u32 %v837, 4294901760
    %839 = vmatmul.f32.gmra.mxu0 %v838
    %v840 = vpop.f32.mrf.mxu0
    %v841 = vadd.f32 %v809, %v840
    %v842 = vand.u32 %v49, 4294901760
    %v843 = vsub.f32 %v49, %v842
    %v844 = vand.u32 %v843, 4294901760
    %845 = vmatmul.f32.gmra.mxu0 %v844
    %v846 = vpop.f32.mrf.mxu0
    %v847 = vadd.f32 %v814, %v846
    %848 = vdwg.mxu0
    %849 = vmatpush.msra.mxu0 0.0
    %850 = vmatpush.msra.mxu0 0.0
    %851 = vmatpush.msra.mxu0 0.0
    %852 = vmatpush.msra.mxu0 0.0
    %853 = vmatpush.msra.mxu0 0.0
    %854 = vmatpush.msra.mxu0 0.0
    %855 = vmatpush.msra.mxu0 0.0
    %856 = vmatpush.msra.mxu0 0.0
    %857 = vmatpush.msra.mxu0 0.0
    %858 = vmatpush.msra.mxu0 0.0
    %859 = vmatpush.msra.mxu0 0.0
    %860 = vmatpush.msra.mxu0 0.0
    %v861 = vand.u32 %v43, 4294901760
    %v862 = vsub.f32 %v43, %v861
    %v863 = vand.u32 %v862, 4294901760
    %864 = vmatpush.msra.mxu0 %v863
    %v865 = vand.u32 %v42, 4294901760
    %v866 = vsub.f32 %v42, %v865
    %v867 = vand.u32 %v866, 4294901760
    %868 = vmatpush.msra.mxu0 %v867
    %v869 = vand.u32 %v41, 4294901760
    %v870 = vsub.f32 %v41, %v869
    %v871 = vand.u32 %v870, 4294901760
    %872 = vmatpush.msra.mxu0 %v871
    %v873 = vand.u32 %v40, 4294901760
    %v874 = vsub.f32 %v40, %v873
    %v875 = vand.u32 %v874, 4294901760
    %876 = vmatpush.msra.mxu0 %v875
    %v877 = vand.u32 %v46, 4294901760
    %878 = vmatmul.f32.gmra.mxu0 %v877
    %v879 = vpop.f32.mrf.mxu0
    %v880 = vadd.f32 %v841, %v879
    %v881 = vand.u32 %v49, 4294901760
    %882 = vmatmul.f32.gmra.mxu0 %v881
    %v883 = vpop.f32.mrf.mxu0
    %v884 = vadd.f32 %v847, %v883
    %885 = vdwg.mxu0
    %886 = vmatpush.msra.mxu0 0.0
    %887 = vmatpush.msra.mxu0 0.0
    %888 = vmatpush.msra.mxu0 0.0
    %889 = vmatpush.msra.mxu0 0.0
    %890 = vmatpush.msra.mxu0 0.0
    %891 = vmatpush.msra.mxu0 0.0
    %892 = vmatpush.msra.mxu0 0.0
    %893 = vmatpush.msra.mxu0 0.0
    %894 = vmatpush.msra.mxu0 0.0
    %895 = vmatpush.msra.mxu0 0.0
    %896 = vmatpush.msra.mxu0 0.0
    %897 = vmatpush.msra.mxu0 0.0
    %v898 = vand.u32 %v43, 4294901760
    %899 = vmatpush.msra.mxu0 %v898
    %v900 = vand.u32 %v42, 4294901760
    %901 = vmatpush.msra.mxu0 %v900
    %v902 = vand.u32 %v41, 4294901760
    %903 = vmatpush.msra.mxu0 %v902
    %v904 = vand.u32 %v40, 4294901760
    %905 = vmatpush.msra.mxu0 %v904
    %v906 = vand.u32 %v46, 4294901760
    %907 = vmatmul.f32.gmra.mxu0 %v906
    %v908 = vpop.f32.mrf.mxu0
    %v909 = vadd.f32 %v880, %v908
    %v910 = vand.u32 %v49, 4294901760
    %911 = vmatmul.f32.gmra.mxu0 %v910
    %v912 = vpop.f32.mrf.mxu0
    %v913 = vadd.f32 %v884, %v912
    %914 = vdwg.mxu0
    %v915 = vmul.f32 %v261, 0.35355338
    %v916 = vmul.f32 %v265, 0.35355338
    %v917 = vmul.f32 %v477, 0.35355338
    %v918 = vmul.f32 %v481, 0.35355338
    %v919 = vmul.f32 %v693, 0.35355338
    %v920 = vmul.f32 %v697, 0.35355338
    %v921 = vmul.f32 %v909, 0.35355338
    %v922 = vmul.f32 %v913, 0.35355338
    %v923 = vld [vmem:[%s3] sm:$0xff]
    %v924 = vld [vmem:[%s3 + $0x8] sm:$0xff]
    %v925 = vld [vmem:[%s3 + $0x10] sm:$0xff]
    %v926 = vld [vmem:[%s3 + $0x18] sm:$0xff]
    %v927 = vld [vmem:[%s3 + $0x20] sm:$0xff]
    %v928 = vld [vmem:[%s3 + $0x28] sm:$0xff]
    %v929 = vld [vmem:[%s3 + $0x30] sm:$0xff]
    %v930 = vld [vmem:[%s3 + $0x38] sm:$0xff]
    %v931 = vld [vmem:[%s3 + $0x40] sm:$0xff]
    %v932 = vld [vmem:[%s3 + $0x48] sm:$0xff]
    %v933 = vld [vmem:[%s3 + $0x50] sm:$0xff]
    %v934 = vld [vmem:[%s3 + $0x58] sm:$0xff]
    %v935 = vld [vmem:[%s3 + $0x60] sm:$0xff]
    %v936 = vld [vmem:[%s3 + $0x68] sm:$0xff]
    %v937 = vld [vmem:[%s3 + $0x70] sm:$0xff]
    %v938 = vld [vmem:[%s3 + $0x78] sm:$0xff]
    %v940 = vsel %vm44, %v26, 0
    %v943 = vsel %vm44, %v27, 0
    %945 = vmatpush.msra.mxu0 0.0
    %946 = vmatpush.msra.mxu0 0.0
    %947 = vmatpush.msra.mxu0 0.0
    %948 = vmatpush.msra.mxu0 0.0
    %949 = vmatpush.msra.mxu0 0.0
    %950 = vmatpush.msra.mxu0 0.0
    %951 = vmatpush.msra.mxu0 0.0
    %952 = vmatpush.msra.mxu0 0.0
    %953 = vmatpush.msra.mxu0 0.0
    %954 = vmatpush.msra.mxu0 0.0
    %955 = vmatpush.msra.mxu0 0.0
    %956 = vmatpush.msra.mxu0 0.0
    %v957 = vand.u32 %v926, 4294901760
    %958 = vmatpush.msra.mxu0 %v957
    %v959 = vand.u32 %v925, 4294901760
    %960 = vmatpush.msra.mxu0 %v959
    %v961 = vand.u32 %v924, 4294901760
    %962 = vmatpush.msra.mxu0 %v961
    %v963 = vand.u32 %v923, 4294901760
    %964 = vmatpush.msra.mxu0 %v963
    %v965 = vand.u32 %v940, 4294901760
    %v966 = vsub.f32 %v940, %v965
    %v967 = vand.u32 %v966, 4294901760
    %v968 = vsub.f32 %v966, %v967
    %v969 = vand.u32 %v968, 4294901760
    %970 = vmatmul.f32.gmra.mxu0 %v969
    %v971 = vpop.f32.mrf.mxu0
    %v972 = vadd.f32 0.0, %v971
    %v973 = vand.u32 %v943, 4294901760
    %v974 = vsub.f32 %v943, %v973
    %v975 = vand.u32 %v974, 4294901760
    %v976 = vsub.f32 %v974, %v975
    %v977 = vand.u32 %v976, 4294901760
    %978 = vmatmul.f32.gmra.mxu0 %v977
    %v979 = vpop.f32.mrf.mxu0
    %v980 = vadd.f32 0.0, %v979
    %981 = vdwg.mxu0
    %982 = vmatpush.msra.mxu0 0.0
    %983 = vmatpush.msra.mxu0 0.0
    %984 = vmatpush.msra.mxu0 0.0
    %985 = vmatpush.msra.mxu0 0.0
    %986 = vmatpush.msra.mxu0 0.0
    %987 = vmatpush.msra.mxu0 0.0
    %988 = vmatpush.msra.mxu0 0.0
    %989 = vmatpush.msra.mxu0 0.0
    %990 = vmatpush.msra.mxu0 0.0
    %991 = vmatpush.msra.mxu0 0.0
    %992 = vmatpush.msra.mxu0 0.0
    %993 = vmatpush.msra.mxu0 0.0
    %v994 = vand.u32 %v926, 4294901760
    %v995 = vsub.f32 %v926, %v994
    %v996 = vand.u32 %v995, 4294901760
    %v997 = vsub.f32 %v995, %v996
    %v998 = vand.u32 %v997, 4294901760
    %999 = vmatpush.msra.mxu0 %v998
    %v1000 = vand.u32 %v925, 4294901760
    %v1001 = vsub.f32 %v925, %v1000
    %v1002 = vand.u32 %v1001, 4294901760
    %v1003 = vsub.f32 %v1001, %v1002
    %v1004 = vand.u32 %v1003, 4294901760
    %1005 = vmatpush.msra.mxu0 %v1004
    %v1006 = vand.u32 %v924, 4294901760
    %v1007 = vsub.f32 %v924, %v1006
    %v1008 = vand.u32 %v1007, 4294901760
    %v1009 = vsub.f32 %v1007, %v1008
    %v1010 = vand.u32 %v1009, 4294901760
    %1011 = vmatpush.msra.mxu0 %v1010
    %v1012 = vand.u32 %v923, 4294901760
    %v1013 = vsub.f32 %v923, %v1012
    %v1014 = vand.u32 %v1013, 4294901760
    %v1015 = vsub.f32 %v1013, %v1014
    %v1016 = vand.u32 %v1015, 4294901760
    %1017 = vmatpush.msra.mxu0 %v1016
    %v1018 = vand.u32 %v940, 4294901760
    %1019 = vmatmul.f32.gmra.mxu0 %v1018
    %v1020 = vpop.f32.mrf.mxu0
    %v1021 = vadd.f32 %v972, %v1020
    %v1022 = vand.u32 %v943, 4294901760
    %1023 = vmatmul.f32.gmra.mxu0 %v1022
    %v1024 = vpop.f32.mrf.mxu0
    %v1025 = vadd.f32 %v980, %v1024
    %1026 = vdwg.mxu0
    %1027 = vmatpush.msra.mxu0 0.0
    %1028 = vmatpush.msra.mxu0 0.0
    %1029 = vmatpush.msra.mxu0 0.0
    %1030 = vmatpush.msra.mxu0 0.0
    %1031 = vmatpush.msra.mxu0 0.0
    %1032 = vmatpush.msra.mxu0 0.0
    %1033 = vmatpush.msra.mxu0 0.0
    %1034 = vmatpush.msra.mxu0 0.0
    %1035 = vmatpush.msra.mxu0 0.0
    %1036 = vmatpush.msra.mxu0 0.0
    %1037 = vmatpush.msra.mxu0 0.0
    %1038 = vmatpush.msra.mxu0 0.0
    %v1039 = vand.u32 %v926, 4294901760
    %v1040 = vsub.f32 %v926, %v1039
    %1041 = vmatpush.msra.mxu0 %v1040
    %v1042 = vand.u32 %v925, 4294901760
    %v1043 = vsub.f32 %v925, %v1042
    %1044 = vmatpush.msra.mxu0 %v1043
    %v1045 = vand.u32 %v924, 4294901760
    %v1046 = vsub.f32 %v924, %v1045
    %1047 = vmatpush.msra.mxu0 %v1046
    %v1048 = vand.u32 %v923, 4294901760
    %v1049 = vsub.f32 %v923, %v1048
    %1050 = vmatpush.msra.mxu0 %v1049
    %v1051 = vand.u32 %v940, 4294901760
    %v1052 = vsub.f32 %v940, %v1051
    %1053 = vmatmul.f32.gmra.mxu0 %v1052
    %v1054 = vpop.f32.mrf.mxu0
    %v1055 = vadd.f32 %v1021, %v1054
    %v1056 = vand.u32 %v943, 4294901760
    %v1057 = vsub.f32 %v943, %v1056
    %1058 = vmatmul.f32.gmra.mxu0 %v1057
    %v1059 = vpop.f32.mrf.mxu0
    %v1060 = vadd.f32 %v1025, %v1059
    %1061 = vdwg.mxu0
    %1062 = vmatpush.msra.mxu0 0.0
    %1063 = vmatpush.msra.mxu0 0.0
    %1064 = vmatpush.msra.mxu0 0.0
    %1065 = vmatpush.msra.mxu0 0.0
    %1066 = vmatpush.msra.mxu0 0.0
    %1067 = vmatpush.msra.mxu0 0.0
    %1068 = vmatpush.msra.mxu0 0.0
    %1069 = vmatpush.msra.mxu0 0.0
    %1070 = vmatpush.msra.mxu0 0.0
    %1071 = vmatpush.msra.mxu0 0.0
    %1072 = vmatpush.msra.mxu0 0.0
    %1073 = vmatpush.msra.mxu0 0.0
    %v1074 = vand.u32 %v926, 4294901760
    %1075 = vmatpush.msra.mxu0 %v1074
    %v1076 = vand.u32 %v925, 4294901760
    %1077 = vmatpush.msra.mxu0 %v1076
    %v1078 = vand.u32 %v924, 4294901760
    %1079 = vmatpush.msra.mxu0 %v1078
    %v1080 = vand.u32 %v923, 4294901760
    %1081 = vmatpush.msra.mxu0 %v1080
    %v1082 = vand.u32 %v940, 4294901760
    %v1083 = vsub.f32 %v940, %v1082
    %v1084 = vand.u32 %v1083, 4294901760
    %1085 = vmatmul.f32.gmra.mxu0 %v1084
    %v1086 = vpop.f32.mrf.mxu0
    %v1087 = vadd.f32 %v1055, %v1086
    %v1088 = vand.u32 %v943, 4294901760
    %v1089 = vsub.f32 %v943, %v1088
    %v1090 = vand.u32 %v1089, 4294901760
    %1091 = vmatmul.f32.gmra.mxu0 %v1090
    %v1092 = vpop.f32.mrf.mxu0
    %v1093 = vadd.f32 %v1060, %v1092
    %1094 = vdwg.mxu0
    %1095 = vmatpush.msra.mxu0 0.0
    %1096 = vmatpush.msra.mxu0 0.0
    %1097 = vmatpush.msra.mxu0 0.0
    %1098 = vmatpush.msra.mxu0 0.0
    %1099 = vmatpush.msra.mxu0 0.0
    %1100 = vmatpush.msra.mxu0 0.0
    %1101 = vmatpush.msra.mxu0 0.0
    %1102 = vmatpush.msra.mxu0 0.0
    %1103 = vmatpush.msra.mxu0 0.0
    %1104 = vmatpush.msra.mxu0 0.0
    %1105 = vmatpush.msra.mxu0 0.0
    %1106 = vmatpush.msra.mxu0 0.0
    %v1107 = vand.u32 %v926, 4294901760
    %v1108 = vsub.f32 %v926, %v1107
    %v1109 = vand.u32 %v1108, 4294901760
    %1110 = vmatpush.msra.mxu0 %v1109
    %v1111 = vand.u32 %v925, 4294901760
    %v1112 = vsub.f32 %v925, %v1111
    %v1113 = vand.u32 %v1112, 4294901760
    %1114 = vmatpush.msra.mxu0 %v1113
    %v1115 = vand.u32 %v924, 4294901760
    %v1116 = vsub.f32 %v924, %v1115
    %v1117 = vand.u32 %v1116, 4294901760
    %1118 = vmatpush.msra.mxu0 %v1117
    %v1119 = vand.u32 %v923, 4294901760
    %v1120 = vsub.f32 %v923, %v1119
    %v1121 = vand.u32 %v1120, 4294901760
    %1122 = vmatpush.msra.mxu0 %v1121
    %v1123 = vand.u32 %v940, 4294901760
    %1124 = vmatmul.f32.gmra.mxu0 %v1123
    %v1125 = vpop.f32.mrf.mxu0
    %v1126 = vadd.f32 %v1087, %v1125
    %v1127 = vand.u32 %v943, 4294901760
    %1128 = vmatmul.f32.gmra.mxu0 %v1127
    %v1129 = vpop.f32.mrf.mxu0
    %v1130 = vadd.f32 %v1093, %v1129
    %1131 = vdwg.mxu0
    %1132 = vmatpush.msra.mxu0 0.0
    %1133 = vmatpush.msra.mxu0 0.0
    %1134 = vmatpush.msra.mxu0 0.0
    %1135 = vmatpush.msra.mxu0 0.0
    %1136 = vmatpush.msra.mxu0 0.0
    %1137 = vmatpush.msra.mxu0 0.0
    %1138 = vmatpush.msra.mxu0 0.0
    %1139 = vmatpush.msra.mxu0 0.0
    %1140 = vmatpush.msra.mxu0 0.0
    %1141 = vmatpush.msra.mxu0 0.0
    %1142 = vmatpush.msra.mxu0 0.0
    %1143 = vmatpush.msra.mxu0 0.0
    %v1144 = vand.u32 %v926, 4294901760
    %1145 = vmatpush.msra.mxu0 %v1144
    %v1146 = vand.u32 %v925, 4294901760
    %1147 = vmatpush.msra.mxu0 %v1146
    %v1148 = vand.u32 %v924, 4294901760
    %1149 = vmatpush.msra.mxu0 %v1148
    %v1150 = vand.u32 %v923, 4294901760
    %1151 = vmatpush.msra.mxu0 %v1150
    %v1152 = vand.u32 %v940, 4294901760
    %1153 = vmatmul.f32.gmra.mxu0 %v1152
    %v1154 = vpop.f32.mrf.mxu0
    %v1155 = vadd.f32 %v1126, %v1154
    %v1156 = vand.u32 %v943, 4294901760
    %1157 = vmatmul.f32.gmra.mxu0 %v1156
    %v1158 = vpop.f32.mrf.mxu0
    %v1159 = vadd.f32 %v1130, %v1158
    %1160 = vdwg.mxu0
    %1161 = vmatpush.msra.mxu0 0.0
    %1162 = vmatpush.msra.mxu0 0.0
    %1163 = vmatpush.msra.mxu0 0.0
    %1164 = vmatpush.msra.mxu0 0.0
    %1165 = vmatpush.msra.mxu0 0.0
    %1166 = vmatpush.msra.mxu0 0.0
    %1167 = vmatpush.msra.mxu0 0.0
    %1168 = vmatpush.msra.mxu0 0.0
    %1169 = vmatpush.msra.mxu0 0.0
    %1170 = vmatpush.msra.mxu0 0.0
    %1171 = vmatpush.msra.mxu0 0.0
    %1172 = vmatpush.msra.mxu0 0.0
    %v1173 = vand.u32 %v930, 4294901760
    %1174 = vmatpush.msra.mxu0 %v1173
    %v1175 = vand.u32 %v929, 4294901760
    %1176 = vmatpush.msra.mxu0 %v1175
    %v1177 = vand.u32 %v928, 4294901760
    %1178 = vmatpush.msra.mxu0 %v1177
    %v1179 = vand.u32 %v927, 4294901760
    %1180 = vmatpush.msra.mxu0 %v1179
    %v1181 = vand.u32 %v940, 4294901760
    %v1182 = vsub.f32 %v940, %v1181
    %v1183 = vand.u32 %v1182, 4294901760
    %v1184 = vsub.f32 %v1182, %v1183
    %v1185 = vand.u32 %v1184, 4294901760
    %1186 = vmatmul.f32.gmra.mxu0 %v1185
    %v1187 = vpop.f32.mrf.mxu0
    %v1188 = vadd.f32 0.0, %v1187
    %v1189 = vand.u32 %v943, 4294901760
    %v1190 = vsub.f32 %v943, %v1189
    %v1191 = vand.u32 %v1190, 4294901760
    %v1192 = vsub.f32 %v1190, %v1191
    %v1193 = vand.u32 %v1192, 4294901760
    %1194 = vmatmul.f32.gmra.mxu0 %v1193
    %v1195 = vpop.f32.mrf.mxu0
    %v1196 = vadd.f32 0.0, %v1195
    %1197 = vdwg.mxu0
    %1198 = vmatpush.msra.mxu0 0.0
    %1199 = vmatpush.msra.mxu0 0.0
    %1200 = vmatpush.msra.mxu0 0.0
    %1201 = vmatpush.msra.mxu0 0.0
    %1202 = vmatpush.msra.mxu0 0.0
    %1203 = vmatpush.msra.mxu0 0.0
    %1204 = vmatpush.msra.mxu0 0.0
    %1205 = vmatpush.msra.mxu0 0.0
    %1206 = vmatpush.msra.mxu0 0.0
    %1207 = vmatpush.msra.mxu0 0.0
    %1208 = vmatpush.msra.mxu0 0.0
    %1209 = vmatpush.msra.mxu0 0.0
    %v1210 = vand.u32 %v930, 4294901760
    %v1211 = vsub.f32 %v930, %v1210
    %v1212 = vand.u32 %v1211, 4294901760
    %v1213 = vsub.f32 %v1211, %v1212
    %v1214 = vand.u32 %v1213, 4294901760
    %1215 = vmatpush.msra.mxu0 %v1214
    %v1216 = vand.u32 %v929, 4294901760
    %v1217 = vsub.f32 %v929, %v1216
    %v1218 = vand.u32 %v1217, 4294901760
    %v1219 = vsub.f32 %v1217, %v1218
    %v1220 = vand.u32 %v1219, 4294901760
    %1221 = vmatpush.msra.mxu0 %v1220
    %v1222 = vand.u32 %v928, 4294901760
    %v1223 = vsub.f32 %v928, %v1222
    %v1224 = vand.u32 %v1223, 4294901760
    %v1225 = vsub.f32 %v1223, %v1224
    %v1226 = vand.u32 %v1225, 4294901760
    %1227 = vmatpush.msra.mxu0 %v1226
    %v1228 = vand.u32 %v927, 4294901760
    %v1229 = vsub.f32 %v927, %v1228
    %v1230 = vand.u32 %v1229, 4294901760
    %v1231 = vsub.f32 %v1229, %v1230
    %v1232 = vand.u32 %v1231, 4294901760
    %1233 = vmatpush.msra.mxu0 %v1232
    %v1234 = vand.u32 %v940, 4294901760
    %1235 = vmatmul.f32.gmra.mxu0 %v1234
    %v1236 = vpop.f32.mrf.mxu0
    %v1237 = vadd.f32 %v1188, %v1236
    %v1238 = vand.u32 %v943, 4294901760
    %1239 = vmatmul.f32.gmra.mxu0 %v1238
    %v1240 = vpop.f32.mrf.mxu0
    %v1241 = vadd.f32 %v1196, %v1240
    %1242 = vdwg.mxu0
    %1243 = vmatpush.msra.mxu0 0.0
    %1244 = vmatpush.msra.mxu0 0.0
    %1245 = vmatpush.msra.mxu0 0.0
    %1246 = vmatpush.msra.mxu0 0.0
    %1247 = vmatpush.msra.mxu0 0.0
    %1248 = vmatpush.msra.mxu0 0.0
    %1249 = vmatpush.msra.mxu0 0.0
    %1250 = vmatpush.msra.mxu0 0.0
    %1251 = vmatpush.msra.mxu0 0.0
    %1252 = vmatpush.msra.mxu0 0.0
    %1253 = vmatpush.msra.mxu0 0.0
    %1254 = vmatpush.msra.mxu0 0.0
    %v1255 = vand.u32 %v930, 4294901760
    %v1256 = vsub.f32 %v930, %v1255
    %1257 = vmatpush.msra.mxu0 %v1256
    %v1258 = vand.u32 %v929, 4294901760
    %v1259 = vsub.f32 %v929, %v1258
    %1260 = vmatpush.msra.mxu0 %v1259
    %v1261 = vand.u32 %v928, 4294901760
    %v1262 = vsub.f32 %v928, %v1261
    %1263 = vmatpush.msra.mxu0 %v1262
    %v1264 = vand.u32 %v927, 4294901760
    %v1265 = vsub.f32 %v927, %v1264
    %1266 = vmatpush.msra.mxu0 %v1265
    %v1267 = vand.u32 %v940, 4294901760
    %v1268 = vsub.f32 %v940, %v1267
    %1269 = vmatmul.f32.gmra.mxu0 %v1268
    %v1270 = vpop.f32.mrf.mxu0
    %v1271 = vadd.f32 %v1237, %v1270
    %v1272 = vand.u32 %v943, 4294901760
    %v1273 = vsub.f32 %v943, %v1272
    %1274 = vmatmul.f32.gmra.mxu0 %v1273
    %v1275 = vpop.f32.mrf.mxu0
    %v1276 = vadd.f32 %v1241, %v1275
    %1277 = vdwg.mxu0
    %1278 = vmatpush.msra.mxu0 0.0
    %1279 = vmatpush.msra.mxu0 0.0
    %1280 = vmatpush.msra.mxu0 0.0
    %1281 = vmatpush.msra.mxu0 0.0
    %1282 = vmatpush.msra.mxu0 0.0
    %1283 = vmatpush.msra.mxu0 0.0
    %1284 = vmatpush.msra.mxu0 0.0
    %1285 = vmatpush.msra.mxu0 0.0
    %1286 = vmatpush.msra.mxu0 0.0
    %1287 = vmatpush.msra.mxu0 0.0
    %1288 = vmatpush.msra.mxu0 0.0
    %1289 = vmatpush.msra.mxu0 0.0
    %v1290 = vand.u32 %v930, 4294901760
    %1291 = vmatpush.msra.mxu0 %v1290
    %v1292 = vand.u32 %v929, 4294901760
    %1293 = vmatpush.msra.mxu0 %v1292
    %v1294 = vand.u32 %v928, 4294901760
    %1295 = vmatpush.msra.mxu0 %v1294
    %v1296 = vand.u32 %v927, 4294901760
    %1297 = vmatpush.msra.mxu0 %v1296
    %v1298 = vand.u32 %v940, 4294901760
    %v1299 = vsub.f32 %v940, %v1298
    %v1300 = vand.u32 %v1299, 4294901760
    %1301 = vmatmul.f32.gmra.mxu0 %v1300
    %v1302 = vpop.f32.mrf.mxu0
    %v1303 = vadd.f32 %v1271, %v1302
    %v1304 = vand.u32 %v943, 4294901760
    %v1305 = vsub.f32 %v943, %v1304
    %v1306 = vand.u32 %v1305, 4294901760
    %1307 = vmatmul.f32.gmra.mxu0 %v1306
    %v1308 = vpop.f32.mrf.mxu0
    %v1309 = vadd.f32 %v1276, %v1308
    %1310 = vdwg.mxu0
    %1311 = vmatpush.msra.mxu0 0.0
    %1312 = vmatpush.msra.mxu0 0.0
    %1313 = vmatpush.msra.mxu0 0.0
    %1314 = vmatpush.msra.mxu0 0.0
    %1315 = vmatpush.msra.mxu0 0.0
    %1316 = vmatpush.msra.mxu0 0.0
    %1317 = vmatpush.msra.mxu0 0.0
    %1318 = vmatpush.msra.mxu0 0.0
    %1319 = vmatpush.msra.mxu0 0.0
    %1320 = vmatpush.msra.mxu0 0.0
    %1321 = vmatpush.msra.mxu0 0.0
    %1322 = vmatpush.msra.mxu0 0.0
    %v1323 = vand.u32 %v930, 4294901760
    %v1324 = vsub.f32 %v930, %v1323
    %v1325 = vand.u32 %v1324, 4294901760
    %1326 = vmatpush.msra.mxu0 %v1325
    %v1327 = vand.u32 %v929, 4294901760
    %v1328 = vsub.f32 %v929, %v1327
    %v1329 = vand.u32 %v1328, 4294901760
    %1330 = vmatpush.msra.mxu0 %v1329
    %v1331 = vand.u32 %v928, 4294901760
    %v1332 = vsub.f32 %v928, %v1331
    %v1333 = vand.u32 %v1332, 4294901760
    %1334 = vmatpush.msra.mxu0 %v1333
    %v1335 = vand.u32 %v927, 4294901760
    %v1336 = vsub.f32 %v927, %v1335
    %v1337 = vand.u32 %v1336, 4294901760
    %1338 = vmatpush.msra.mxu0 %v1337
    %v1339 = vand.u32 %v940, 4294901760
    %1340 = vmatmul.f32.gmra.mxu0 %v1339
    %v1341 = vpop.f32.mrf.mxu0
    %v1342 = vadd.f32 %v1303, %v1341
    %v1343 = vand.u32 %v943, 4294901760
    %1344 = vmatmul.f32.gmra.mxu0 %v1343
    %v1345 = vpop.f32.mrf.mxu0
    %v1346 = vadd.f32 %v1309, %v1345
    %1347 = vdwg.mxu0
    %1348 = vmatpush.msra.mxu0 0.0
    %1349 = vmatpush.msra.mxu0 0.0
    %1350 = vmatpush.msra.mxu0 0.0
    %1351 = vmatpush.msra.mxu0 0.0
    %1352 = vmatpush.msra.mxu0 0.0
    %1353 = vmatpush.msra.mxu0 0.0
    %1354 = vmatpush.msra.mxu0 0.0
    %1355 = vmatpush.msra.mxu0 0.0
    %1356 = vmatpush.msra.mxu0 0.0
    %1357 = vmatpush.msra.mxu0 0.0
    %1358 = vmatpush.msra.mxu0 0.0
    %1359 = vmatpush.msra.mxu0 0.0
    %v1360 = vand.u32 %v930, 4294901760
    %1361 = vmatpush.msra.mxu0 %v1360
    %v1362 = vand.u32 %v929, 4294901760
    %1363 = vmatpush.msra.mxu0 %v1362
    %v1364 = vand.u32 %v928, 4294901760
    %1365 = vmatpush.msra.mxu0 %v1364
    %v1366 = vand.u32 %v927, 4294901760
    %1367 = vmatpush.msra.mxu0 %v1366
    %v1368 = vand.u32 %v940, 4294901760
    %1369 = vmatmul.f32.gmra.mxu0 %v1368
    %v1370 = vpop.f32.mrf.mxu0
    %v1371 = vadd.f32 %v1342, %v1370
    %v1372 = vand.u32 %v943, 4294901760
    %1373 = vmatmul.f32.gmra.mxu0 %v1372
    %v1374 = vpop.f32.mrf.mxu0
    %v1375 = vadd.f32 %v1346, %v1374
    %1376 = vdwg.mxu0
    %1377 = vmatpush.msra.mxu0 0.0
    %1378 = vmatpush.msra.mxu0 0.0
    %1379 = vmatpush.msra.mxu0 0.0
    %1380 = vmatpush.msra.mxu0 0.0
    %1381 = vmatpush.msra.mxu0 0.0
    %1382 = vmatpush.msra.mxu0 0.0
    %1383 = vmatpush.msra.mxu0 0.0
    %1384 = vmatpush.msra.mxu0 0.0
    %1385 = vmatpush.msra.mxu0 0.0
    %1386 = vmatpush.msra.mxu0 0.0
    %1387 = vmatpush.msra.mxu0 0.0
    %1388 = vmatpush.msra.mxu0 0.0
    %v1389 = vand.u32 %v934, 4294901760
    %1390 = vmatpush.msra.mxu0 %v1389
    %v1391 = vand.u32 %v933, 4294901760
    %1392 = vmatpush.msra.mxu0 %v1391
    %v1393 = vand.u32 %v932, 4294901760
    %1394 = vmatpush.msra.mxu0 %v1393
    %v1395 = vand.u32 %v931, 4294901760
    %1396 = vmatpush.msra.mxu0 %v1395
    %v1397 = vand.u32 %v940, 4294901760
    %v1398 = vsub.f32 %v940, %v1397
    %v1399 = vand.u32 %v1398, 4294901760
    %v1400 = vsub.f32 %v1398, %v1399
    %v1401 = vand.u32 %v1400, 4294901760
    %1402 = vmatmul.f32.gmra.mxu0 %v1401
    %v1403 = vpop.f32.mrf.mxu0
    %v1404 = vadd.f32 0.0, %v1403
    %v1405 = vand.u32 %v943, 4294901760
    %v1406 = vsub.f32 %v943, %v1405
    %v1407 = vand.u32 %v1406, 4294901760
    %v1408 = vsub.f32 %v1406, %v1407
    %v1409 = vand.u32 %v1408, 4294901760
    %1410 = vmatmul.f32.gmra.mxu0 %v1409
    %v1411 = vpop.f32.mrf.mxu0
    %v1412 = vadd.f32 0.0, %v1411
    %1413 = vdwg.mxu0
    %1414 = vmatpush.msra.mxu0 0.0
    %1415 = vmatpush.msra.mxu0 0.0
    %1416 = vmatpush.msra.mxu0 0.0
    %1417 = vmatpush.msra.mxu0 0.0
    %1418 = vmatpush.msra.mxu0 0.0
    %1419 = vmatpush.msra.mxu0 0.0
    %1420 = vmatpush.msra.mxu0 0.0
    %1421 = vmatpush.msra.mxu0 0.0
    %1422 = vmatpush.msra.mxu0 0.0
    %1423 = vmatpush.msra.mxu0 0.0
    %1424 = vmatpush.msra.mxu0 0.0
    %1425 = vmatpush.msra.mxu0 0.0
    %v1426 = vand.u32 %v934, 4294901760
    %v1427 = vsub.f32 %v934, %v1426
    %v1428 = vand.u32 %v1427, 4294901760
    %v1429 = vsub.f32 %v1427, %v1428
    %v1430 = vand.u32 %v1429, 4294901760
    %1431 = vmatpush.msra.mxu0 %v1430
    %v1432 = vand.u32 %v933, 4294901760
    %v1433 = vsub.f32 %v933, %v1432
    %v1434 = vand.u32 %v1433, 4294901760
    %v1435 = vsub.f32 %v1433, %v1434
    %v1436 = vand.u32 %v1435, 4294901760
    %1437 = vmatpush.msra.mxu0 %v1436
    %v1438 = vand.u32 %v932, 4294901760
    %v1439 = vsub.f32 %v932, %v1438
    %v1440 = vand.u32 %v1439, 4294901760
    %v1441 = vsub.f32 %v1439, %v1440
    %v1442 = vand.u32 %v1441, 4294901760
    %1443 = vmatpush.msra.mxu0 %v1442
    %v1444 = vand.u32 %v931, 4294901760
    %v1445 = vsub.f32 %v931, %v1444
    %v1446 = vand.u32 %v1445, 4294901760
    %v1447 = vsub.f32 %v1445, %v1446
    %v1448 = vand.u32 %v1447, 4294901760
    %1449 = vmatpush.msra.mxu0 %v1448
    %v1450 = vand.u32 %v940, 4294901760
    %1451 = vmatmul.f32.gmra.mxu0 %v1450
    %v1452 = vpop.f32.mrf.mxu0
    %v1453 = vadd.f32 %v1404, %v1452
    %v1454 = vand.u32 %v943, 4294901760
    %1455 = vmatmul.f32.gmra.mxu0 %v1454
    %v1456 = vpop.f32.mrf.mxu0
    %v1457 = vadd.f32 %v1412, %v1456
    %1458 = vdwg.mxu0
    %1459 = vmatpush.msra.mxu0 0.0
    %1460 = vmatpush.msra.mxu0 0.0
    %1461 = vmatpush.msra.mxu0 0.0
    %1462 = vmatpush.msra.mxu0 0.0
    %1463 = vmatpush.msra.mxu0 0.0
    %1464 = vmatpush.msra.mxu0 0.0
    %1465 = vmatpush.msra.mxu0 0.0
    %1466 = vmatpush.msra.mxu0 0.0
    %1467 = vmatpush.msra.mxu0 0.0
    %1468 = vmatpush.msra.mxu0 0.0
    %1469 = vmatpush.msra.mxu0 0.0
    %1470 = vmatpush.msra.mxu0 0.0
    %v1471 = vand.u32 %v934, 4294901760
    %v1472 = vsub.f32 %v934, %v1471
    %1473 = vmatpush.msra.mxu0 %v1472
    %v1474 = vand.u32 %v933, 4294901760
    %v1475 = vsub.f32 %v933, %v1474
    %1476 = vmatpush.msra.mxu0 %v1475
    %v1477 = vand.u32 %v932, 4294901760
    %v1478 = vsub.f32 %v932, %v1477
    %1479 = vmatpush.msra.mxu0 %v1478
    %v1480 = vand.u32 %v931, 4294901760
    %v1481 = vsub.f32 %v931, %v1480
    %1482 = vmatpush.msra.mxu0 %v1481
    %v1483 = vand.u32 %v940, 4294901760
    %v1484 = vsub.f32 %v940, %v1483
    %1485 = vmatmul.f32.gmra.mxu0 %v1484
    %v1486 = vpop.f32.mrf.mxu0
    %v1487 = vadd.f32 %v1453, %v1486
    %v1488 = vand.u32 %v943, 4294901760
    %v1489 = vsub.f32 %v943, %v1488
    %1490 = vmatmul.f32.gmra.mxu0 %v1489
    %v1491 = vpop.f32.mrf.mxu0
    %v1492 = vadd.f32 %v1457, %v1491
    %1493 = vdwg.mxu0
    %1494 = vmatpush.msra.mxu0 0.0
    %1495 = vmatpush.msra.mxu0 0.0
    %1496 = vmatpush.msra.mxu0 0.0
    %1497 = vmatpush.msra.mxu0 0.0
    %1498 = vmatpush.msra.mxu0 0.0
    %1499 = vmatpush.msra.mxu0 0.0
    %1500 = vmatpush.msra.mxu0 0.0
    %1501 = vmatpush.msra.mxu0 0.0
    %1502 = vmatpush.msra.mxu0 0.0
    %1503 = vmatpush.msra.mxu0 0.0
    %1504 = vmatpush.msra.mxu0 0.0
    %1505 = vmatpush.msra.mxu0 0.0
    %v1506 = vand.u32 %v934, 4294901760
    %1507 = vmatpush.msra.mxu0 %v1506
    %v1508 = vand.u32 %v933, 4294901760
    %1509 = vmatpush.msra.mxu0 %v1508
    %v1510 = vand.u32 %v932, 4294901760
    %1511 = vmatpush.msra.mxu0 %v1510
    %v1512 = vand.u32 %v931, 4294901760
    %1513 = vmatpush.msra.mxu0 %v1512
    %v1514 = vand.u32 %v940, 4294901760
    %v1515 = vsub.f32 %v940, %v1514
    %v1516 = vand.u32 %v1515, 4294901760
    %1517 = vmatmul.f32.gmra.mxu0 %v1516
    %v1518 = vpop.f32.mrf.mxu0
    %v1519 = vadd.f32 %v1487, %v1518
    %v1520 = vand.u32 %v943, 4294901760
    %v1521 = vsub.f32 %v943, %v1520
    %v1522 = vand.u32 %v1521, 4294901760
    %1523 = vmatmul.f32.gmra.mxu0 %v1522
    %v1524 = vpop.f32.mrf.mxu0
    %v1525 = vadd.f32 %v1492, %v1524
    %1526 = vdwg.mxu0
    %1527 = vmatpush.msra.mxu0 0.0
    %1528 = vmatpush.msra.mxu0 0.0
    %1529 = vmatpush.msra.mxu0 0.0
    %1530 = vmatpush.msra.mxu0 0.0
    %1531 = vmatpush.msra.mxu0 0.0
    %1532 = vmatpush.msra.mxu0 0.0
    %1533 = vmatpush.msra.mxu0 0.0
    %1534 = vmatpush.msra.mxu0 0.0
    %1535 = vmatpush.msra.mxu0 0.0
    %1536 = vmatpush.msra.mxu0 0.0
    %1537 = vmatpush.msra.mxu0 0.0
    %1538 = vmatpush.msra.mxu0 0.0
    %v1539 = vand.u32 %v934, 4294901760
    %v1540 = vsub.f32 %v934, %v1539
    %v1541 = vand.u32 %v1540, 4294901760
    %1542 = vmatpush.msra.mxu0 %v1541
    %v1543 = vand.u32 %v933, 4294901760
    %v1544 = vsub.f32 %v933, %v1543
    %v1545 = vand.u32 %v1544, 4294901760
    %1546 = vmatpush.msra.mxu0 %v1545
    %v1547 = vand.u32 %v932, 4294901760
    %v1548 = vsub.f32 %v932, %v1547
    %v1549 = vand.u32 %v1548, 4294901760
    %1550 = vmatpush.msra.mxu0 %v1549
    %v1551 = vand.u32 %v931, 4294901760
    %v1552 = vsub.f32 %v931, %v1551
    %v1553 = vand.u32 %v1552, 4294901760
    %1554 = vmatpush.msra.mxu0 %v1553
    %v1555 = vand.u32 %v940, 4294901760
    %1556 = vmatmul.f32.gmra.mxu0 %v1555
    %v1557 = vpop.f32.mrf.mxu0
    %v1558 = vadd.f32 %v1519, %v1557
    %v1559 = vand.u32 %v943, 4294901760
    %1560 = vmatmul.f32.gmra.mxu0 %v1559
    %v1561 = vpop.f32.mrf.mxu0
    %v1562 = vadd.f32 %v1525, %v1561
    %1563 = vdwg.mxu0
    %1564 = vmatpush.msra.mxu0 0.0
    %1565 = vmatpush.msra.mxu0 0.0
    %1566 = vmatpush.msra.mxu0 0.0
    %1567 = vmatpush.msra.mxu0 0.0
    %1568 = vmatpush.msra.mxu0 0.0
    %1569 = vmatpush.msra.mxu0 0.0
    %1570 = vmatpush.msra.mxu0 0.0
    %1571 = vmatpush.msra.mxu0 0.0
    %1572 = vmatpush.msra.mxu0 0.0
    %1573 = vmatpush.msra.mxu0 0.0
    %1574 = vmatpush.msra.mxu0 0.0
    %1575 = vmatpush.msra.mxu0 0.0
    %v1576 = vand.u32 %v934, 4294901760
    %1577 = vmatpush.msra.mxu0 %v1576
    %v1578 = vand.u32 %v933, 4294901760
    %1579 = vmatpush.msra.mxu0 %v1578
    %v1580 = vand.u32 %v932, 4294901760
    %1581 = vmatpush.msra.mxu0 %v1580
    %v1582 = vand.u32 %v931, 4294901760
    %1583 = vmatpush.msra.mxu0 %v1582
    %v1584 = vand.u32 %v940, 4294901760
    %1585 = vmatmul.f32.gmra.mxu0 %v1584
    %v1586 = vpop.f32.mrf.mxu0
    %v1587 = vadd.f32 %v1558, %v1586
    %v1588 = vand.u32 %v943, 4294901760
    %1589 = vmatmul.f32.gmra.mxu0 %v1588
    %v1590 = vpop.f32.mrf.mxu0
    %v1591 = vadd.f32 %v1562, %v1590
    %1592 = vdwg.mxu0
    %1593 = vmatpush.msra.mxu0 0.0
    %1594 = vmatpush.msra.mxu0 0.0
    %1595 = vmatpush.msra.mxu0 0.0
    %1596 = vmatpush.msra.mxu0 0.0
    %1597 = vmatpush.msra.mxu0 0.0
    %1598 = vmatpush.msra.mxu0 0.0
    %1599 = vmatpush.msra.mxu0 0.0
    %1600 = vmatpush.msra.mxu0 0.0
    %1601 = vmatpush.msra.mxu0 0.0
    %1602 = vmatpush.msra.mxu0 0.0
    %1603 = vmatpush.msra.mxu0 0.0
    %1604 = vmatpush.msra.mxu0 0.0
    %v1605 = vand.u32 %v938, 4294901760
    %1606 = vmatpush.msra.mxu0 %v1605
    %v1607 = vand.u32 %v937, 4294901760
    %1608 = vmatpush.msra.mxu0 %v1607
    %v1609 = vand.u32 %v936, 4294901760
    %1610 = vmatpush.msra.mxu0 %v1609
    %v1611 = vand.u32 %v935, 4294901760
    %1612 = vmatpush.msra.mxu0 %v1611
    %v1613 = vand.u32 %v940, 4294901760
    %v1614 = vsub.f32 %v940, %v1613
    %v1615 = vand.u32 %v1614, 4294901760
    %v1616 = vsub.f32 %v1614, %v1615
    %v1617 = vand.u32 %v1616, 4294901760
    %1618 = vmatmul.f32.gmra.mxu0 %v1617
    %v1619 = vpop.f32.mrf.mxu0
    %v1620 = vadd.f32 0.0, %v1619
    %v1621 = vand.u32 %v943, 4294901760
    %v1622 = vsub.f32 %v943, %v1621
    %v1623 = vand.u32 %v1622, 4294901760
    %v1624 = vsub.f32 %v1622, %v1623
    %v1625 = vand.u32 %v1624, 4294901760
    %1626 = vmatmul.f32.gmra.mxu0 %v1625
    %v1627 = vpop.f32.mrf.mxu0
    %v1628 = vadd.f32 0.0, %v1627
    %1629 = vdwg.mxu0
    %1630 = vmatpush.msra.mxu0 0.0
    %1631 = vmatpush.msra.mxu0 0.0
    %1632 = vmatpush.msra.mxu0 0.0
    %1633 = vmatpush.msra.mxu0 0.0
    %1634 = vmatpush.msra.mxu0 0.0
    %1635 = vmatpush.msra.mxu0 0.0
    %1636 = vmatpush.msra.mxu0 0.0
    %1637 = vmatpush.msra.mxu0 0.0
    %1638 = vmatpush.msra.mxu0 0.0
    %1639 = vmatpush.msra.mxu0 0.0
    %1640 = vmatpush.msra.mxu0 0.0
    %1641 = vmatpush.msra.mxu0 0.0
    %v1642 = vand.u32 %v938, 4294901760
    %v1643 = vsub.f32 %v938, %v1642
    %v1644 = vand.u32 %v1643, 4294901760
    %v1645 = vsub.f32 %v1643, %v1644
    %v1646 = vand.u32 %v1645, 4294901760
    %1647 = vmatpush.msra.mxu0 %v1646
    %v1648 = vand.u32 %v937, 4294901760
    %v1649 = vsub.f32 %v937, %v1648
    %v1650 = vand.u32 %v1649, 4294901760
    %v1651 = vsub.f32 %v1649, %v1650
    %v1652 = vand.u32 %v1651, 4294901760
    %1653 = vmatpush.msra.mxu0 %v1652
    %v1654 = vand.u32 %v936, 4294901760
    %v1655 = vsub.f32 %v936, %v1654
    %v1656 = vand.u32 %v1655, 4294901760
    %v1657 = vsub.f32 %v1655, %v1656
    %v1658 = vand.u32 %v1657, 4294901760
    %1659 = vmatpush.msra.mxu0 %v1658
    %v1660 = vand.u32 %v935, 4294901760
    %v1661 = vsub.f32 %v935, %v1660
    %v1662 = vand.u32 %v1661, 4294901760
    %v1663 = vsub.f32 %v1661, %v1662
    %v1664 = vand.u32 %v1663, 4294901760
    %1665 = vmatpush.msra.mxu0 %v1664
    %v1666 = vand.u32 %v940, 4294901760
    %1667 = vmatmul.f32.gmra.mxu0 %v1666
    %v1668 = vpop.f32.mrf.mxu0
    %v1669 = vadd.f32 %v1620, %v1668
    %v1670 = vand.u32 %v943, 4294901760
    %1671 = vmatmul.f32.gmra.mxu0 %v1670
    %v1672 = vpop.f32.mrf.mxu0
    %v1673 = vadd.f32 %v1628, %v1672
    %1674 = vdwg.mxu0
    %1675 = vmatpush.msra.mxu0 0.0
    %1676 = vmatpush.msra.mxu0 0.0
    %1677 = vmatpush.msra.mxu0 0.0
    %1678 = vmatpush.msra.mxu0 0.0
    %1679 = vmatpush.msra.mxu0 0.0
    %1680 = vmatpush.msra.mxu0 0.0
    %1681 = vmatpush.msra.mxu0 0.0
    %1682 = vmatpush.msra.mxu0 0.0
    %1683 = vmatpush.msra.mxu0 0.0
    %1684 = vmatpush.msra.mxu0 0.0
    %1685 = vmatpush.msra.mxu0 0.0
    %1686 = vmatpush.msra.mxu0 0.0
    %v1687 = vand.u32 %v938, 4294901760
    %v1688 = vsub.f32 %v938, %v1687
    %1689 = vmatpush.msra.mxu0 %v1688
    %v1690 = vand.u32 %v937, 4294901760
    %v1691 = vsub.f32 %v937, %v1690
    %1692 = vmatpush.msra.mxu0 %v1691
    %v1693 = vand.u32 %v936, 4294901760
    %v1694 = vsub.f32 %v936, %v1693
    %1695 = vmatpush.msra.mxu0 %v1694
    %v1696 = vand.u32 %v935, 4294901760
    %v1697 = vsub.f32 %v935, %v1696
    %1698 = vmatpush.msra.mxu0 %v1697
    %v1699 = vand.u32 %v940, 4294901760
    %v1700 = vsub.f32 %v940, %v1699
    %1701 = vmatmul.f32.gmra.mxu0 %v1700
    %v1702 = vpop.f32.mrf.mxu0
    %v1703 = vadd.f32 %v1669, %v1702
    %v1704 = vand.u32 %v943, 4294901760
    %v1705 = vsub.f32 %v943, %v1704
    %1706 = vmatmul.f32.gmra.mxu0 %v1705
    %v1707 = vpop.f32.mrf.mxu0
    %v1708 = vadd.f32 %v1673, %v1707
    %1709 = vdwg.mxu0
    %1710 = vmatpush.msra.mxu0 0.0
    %1711 = vmatpush.msra.mxu0 0.0
    %1712 = vmatpush.msra.mxu0 0.0
    %1713 = vmatpush.msra.mxu0 0.0
    %1714 = vmatpush.msra.mxu0 0.0
    %1715 = vmatpush.msra.mxu0 0.0
    %1716 = vmatpush.msra.mxu0 0.0
    %1717 = vmatpush.msra.mxu0 0.0
    %1718 = vmatpush.msra.mxu0 0.0
    %1719 = vmatpush.msra.mxu0 0.0
    %1720 = vmatpush.msra.mxu0 0.0
    %1721 = vmatpush.msra.mxu0 0.0
    %v1722 = vand.u32 %v938, 4294901760
    %1723 = vmatpush.msra.mxu0 %v1722
    %v1724 = vand.u32 %v937, 4294901760
    %1725 = vmatpush.msra.mxu0 %v1724
    %v1726 = vand.u32 %v936, 4294901760
    %1727 = vmatpush.msra.mxu0 %v1726
    %v1728 = vand.u32 %v935, 4294901760
    %1729 = vmatpush.msra.mxu0 %v1728
    %v1730 = vand.u32 %v940, 4294901760
    %v1731 = vsub.f32 %v940, %v1730
    %v1732 = vand.u32 %v1731, 4294901760
    %1733 = vmatmul.f32.gmra.mxu0 %v1732
    %v1734 = vpop.f32.mrf.mxu0
    %v1735 = vadd.f32 %v1703, %v1734
    %v1736 = vand.u32 %v943, 4294901760
    %v1737 = vsub.f32 %v943, %v1736
    %v1738 = vand.u32 %v1737, 4294901760
    %1739 = vmatmul.f32.gmra.mxu0 %v1738
    %v1740 = vpop.f32.mrf.mxu0
    %v1741 = vadd.f32 %v1708, %v1740
    %1742 = vdwg.mxu0
    %1743 = vmatpush.msra.mxu0 0.0
    %1744 = vmatpush.msra.mxu0 0.0
    %1745 = vmatpush.msra.mxu0 0.0
    %1746 = vmatpush.msra.mxu0 0.0
    %1747 = vmatpush.msra.mxu0 0.0
    %1748 = vmatpush.msra.mxu0 0.0
    %1749 = vmatpush.msra.mxu0 0.0
    %1750 = vmatpush.msra.mxu0 0.0
    %1751 = vmatpush.msra.mxu0 0.0
    %1752 = vmatpush.msra.mxu0 0.0
    %1753 = vmatpush.msra.mxu0 0.0
    %1754 = vmatpush.msra.mxu0 0.0
    %v1755 = vand.u32 %v938, 4294901760
    %v1756 = vsub.f32 %v938, %v1755
    %v1757 = vand.u32 %v1756, 4294901760
    %1758 = vmatpush.msra.mxu0 %v1757
    %v1759 = vand.u32 %v937, 4294901760
    %v1760 = vsub.f32 %v937, %v1759
    %v1761 = vand.u32 %v1760, 4294901760
    %1762 = vmatpush.msra.mxu0 %v1761
    %v1763 = vand.u32 %v936, 4294901760
    %v1764 = vsub.f32 %v936, %v1763
    %v1765 = vand.u32 %v1764, 4294901760
    %1766 = vmatpush.msra.mxu0 %v1765
    %v1767 = vand.u32 %v935, 4294901760
    %v1768 = vsub.f32 %v935, %v1767
    %v1769 = vand.u32 %v1768, 4294901760
    %1770 = vmatpush.msra.mxu0 %v1769
    %v1771 = vand.u32 %v940, 4294901760
    %1772 = vmatmul.f32.gmra.mxu0 %v1771
    %v1773 = vpop.f32.mrf.mxu0
    %v1774 = vadd.f32 %v1735, %v1773
    %v1775 = vand.u32 %v943, 4294901760
    %1776 = vmatmul.f32.gmra.mxu0 %v1775
    %v1777 = vpop.f32.mrf.mxu0
    %v1778 = vadd.f32 %v1741, %v1777
    %1779 = vdwg.mxu0
    %1780 = vmatpush.msra.mxu0 0.0
    %1781 = vmatpush.msra.mxu0 0.0
    %1782 = vmatpush.msra.mxu0 0.0
    %1783 = vmatpush.msra.mxu0 0.0
    %1784 = vmatpush.msra.mxu0 0.0
    %1785 = vmatpush.msra.mxu0 0.0
    %1786 = vmatpush.msra.mxu0 0.0
    %1787 = vmatpush.msra.mxu0 0.0
    %1788 = vmatpush.msra.mxu0 0.0
    %1789 = vmatpush.msra.mxu0 0.0
    %1790 = vmatpush.msra.mxu0 0.0
    %1791 = vmatpush.msra.mxu0 0.0
    %v1792 = vand.u32 %v938, 4294901760
    %1793 = vmatpush.msra.mxu0 %v1792
    %v1794 = vand.u32 %v937, 4294901760
    %1795 = vmatpush.msra.mxu0 %v1794
    %v1796 = vand.u32 %v936, 4294901760
    %1797 = vmatpush.msra.mxu0 %v1796
    %v1798 = vand.u32 %v935, 4294901760
    %1799 = vmatpush.msra.mxu0 %v1798
    %v1800 = vand.u32 %v940, 4294901760
    %1801 = vmatmul.f32.gmra.mxu0 %v1800
    %v1802 = vpop.f32.mrf.mxu0
    %v1803 = vadd.f32 %v1774, %v1802
    %v1804 = vand.u32 %v943, 4294901760
    %1805 = vmatmul.f32.gmra.mxu0 %v1804
    %v1806 = vpop.f32.mrf.mxu0
    %v1807 = vadd.f32 %v1778, %v1806
    %1808 = vdwg.mxu0
    %v1809 = vld [vmem:[%s4] sm:$0xff]
    %v1810 = vld [vmem:[%s4 + $0x8] sm:$0xff]
    %v1811 = vld [vmem:[%s4 + $0x10] sm:$0xff]
    %v1812 = vld [vmem:[%s4 + $0x18] sm:$0xff]
    %v1813 = vld [vmem:[%s4 + $0x20] sm:$0xff]
    %v1814 = vld [vmem:[%s4 + $0x28] sm:$0xff]
    %v1815 = vld [vmem:[%s4 + $0x30] sm:$0xff]
    %v1816 = vld [vmem:[%s4 + $0x38] sm:$0xff]
    %v1817 = vld [vmem:[%s4 + $0x40] sm:$0xff]
    %v1818 = vld [vmem:[%s4 + $0x48] sm:$0xff]
    %v1819 = vld [vmem:[%s4 + $0x50] sm:$0xff]
    %v1820 = vld [vmem:[%s4 + $0x58] sm:$0xff]
    %v1821 = vld [vmem:[%s4 + $0x60] sm:$0xff]
    %v1822 = vld [vmem:[%s4 + $0x68] sm:$0xff]
    %v1823 = vld [vmem:[%s4 + $0x70] sm:$0xff]
    %v1824 = vld [vmem:[%s4 + $0x78] sm:$0xff]
    %1825 = vmatpush.msra.mxu0 0.0
    %1826 = vmatpush.msra.mxu0 0.0
    %1827 = vmatpush.msra.mxu0 0.0
    %1828 = vmatpush.msra.mxu0 0.0
    %1829 = vmatpush.msra.mxu0 0.0
    %1830 = vmatpush.msra.mxu0 0.0
    %1831 = vmatpush.msra.mxu0 0.0
    %1832 = vmatpush.msra.mxu0 0.0
    %1833 = vmatpush.msra.mxu0 0.0
    %1834 = vmatpush.msra.mxu0 0.0
    %1835 = vmatpush.msra.mxu0 0.0
    %1836 = vmatpush.msra.mxu0 0.0
    %v1837 = vand.u32 %v1812, 4294901760
    %1838 = vmatpush.msra.mxu0 %v1837
    %v1839 = vand.u32 %v1811, 4294901760
    %1840 = vmatpush.msra.mxu0 %v1839
    %v1841 = vand.u32 %v1810, 4294901760
    %1842 = vmatpush.msra.mxu0 %v1841
    %v1843 = vand.u32 %v1809, 4294901760
    %1844 = vmatpush.msra.mxu0 %v1843
    %v1845 = vand.u32 %v940, 4294901760
    %v1846 = vsub.f32 %v940, %v1845
    %v1847 = vand.u32 %v1846, 4294901760
    %v1848 = vsub.f32 %v1846, %v1847
    %v1849 = vand.u32 %v1848, 4294901760
    %1850 = vmatmul.f32.gmra.mxu0 %v1849
    %v1851 = vpop.f32.mrf.mxu0
    %v1852 = vadd.f32 0.0, %v1851
    %v1853 = vand.u32 %v943, 4294901760
    %v1854 = vsub.f32 %v943, %v1853
    %v1855 = vand.u32 %v1854, 4294901760
    %v1856 = vsub.f32 %v1854, %v1855
    %v1857 = vand.u32 %v1856, 4294901760
    %1858 = vmatmul.f32.gmra.mxu0 %v1857
    %v1859 = vpop.f32.mrf.mxu0
    %v1860 = vadd.f32 0.0, %v1859
    %1861 = vdwg.mxu0
    %1862 = vmatpush.msra.mxu0 0.0
    %1863 = vmatpush.msra.mxu0 0.0
    %1864 = vmatpush.msra.mxu0 0.0
    %1865 = vmatpush.msra.mxu0 0.0
    %1866 = vmatpush.msra.mxu0 0.0
    %1867 = vmatpush.msra.mxu0 0.0
    %1868 = vmatpush.msra.mxu0 0.0
    %1869 = vmatpush.msra.mxu0 0.0
    %1870 = vmatpush.msra.mxu0 0.0
    %1871 = vmatpush.msra.mxu0 0.0
    %1872 = vmatpush.msra.mxu0 0.0
    %1873 = vmatpush.msra.mxu0 0.0
    %v1874 = vand.u32 %v1812, 4294901760
    %v1875 = vsub.f32 %v1812, %v1874
    %v1876 = vand.u32 %v1875, 4294901760
    %v1877 = vsub.f32 %v1875, %v1876
    %v1878 = vand.u32 %v1877, 4294901760
    %1879 = vmatpush.msra.mxu0 %v1878
    %v1880 = vand.u32 %v1811, 4294901760
    %v1881 = vsub.f32 %v1811, %v1880
    %v1882 = vand.u32 %v1881, 4294901760
    %v1883 = vsub.f32 %v1881, %v1882
    %v1884 = vand.u32 %v1883, 4294901760
    %1885 = vmatpush.msra.mxu0 %v1884
    %v1886 = vand.u32 %v1810, 4294901760
    %v1887 = vsub.f32 %v1810, %v1886
    %v1888 = vand.u32 %v1887, 4294901760
    %v1889 = vsub.f32 %v1887, %v1888
    %v1890 = vand.u32 %v1889, 4294901760
    %1891 = vmatpush.msra.mxu0 %v1890
    %v1892 = vand.u32 %v1809, 4294901760
    %v1893 = vsub.f32 %v1809, %v1892
    %v1894 = vand.u32 %v1893, 4294901760
    %v1895 = vsub.f32 %v1893, %v1894
    %v1896 = vand.u32 %v1895, 4294901760
    %1897 = vmatpush.msra.mxu0 %v1896
    %v1898 = vand.u32 %v940, 4294901760
    %1899 = vmatmul.f32.gmra.mxu0 %v1898
    %v1900 = vpop.f32.mrf.mxu0
    %v1901 = vadd.f32 %v1852, %v1900
    %v1902 = vand.u32 %v943, 4294901760
    %1903 = vmatmul.f32.gmra.mxu0 %v1902
    %v1904 = vpop.f32.mrf.mxu0
    %v1905 = vadd.f32 %v1860, %v1904
    %1906 = vdwg.mxu0
    %1907 = vmatpush.msra.mxu0 0.0
    %1908 = vmatpush.msra.mxu0 0.0
    %1909 = vmatpush.msra.mxu0 0.0
    %1910 = vmatpush.msra.mxu0 0.0
    %1911 = vmatpush.msra.mxu0 0.0
    %1912 = vmatpush.msra.mxu0 0.0
    %1913 = vmatpush.msra.mxu0 0.0
    %1914 = vmatpush.msra.mxu0 0.0
    %1915 = vmatpush.msra.mxu0 0.0
    %1916 = vmatpush.msra.mxu0 0.0
    %1917 = vmatpush.msra.mxu0 0.0
    %1918 = vmatpush.msra.mxu0 0.0
    %v1919 = vand.u32 %v1812, 4294901760
    %v1920 = vsub.f32 %v1812, %v1919
    %1921 = vmatpush.msra.mxu0 %v1920
    %v1922 = vand.u32 %v1811, 4294901760
    %v1923 = vsub.f32 %v1811, %v1922
    %1924 = vmatpush.msra.mxu0 %v1923
    %v1925 = vand.u32 %v1810, 4294901760
    %v1926 = vsub.f32 %v1810, %v1925
    %1927 = vmatpush.msra.mxu0 %v1926
    %v1928 = vand.u32 %v1809, 4294901760
    %v1929 = vsub.f32 %v1809, %v1928
    %1930 = vmatpush.msra.mxu0 %v1929
    %v1931 = vand.u32 %v940, 4294901760
    %v1932 = vsub.f32 %v940, %v1931
    %1933 = vmatmul.f32.gmra.mxu0 %v1932
    %v1934 = vpop.f32.mrf.mxu0
    %v1935 = vadd.f32 %v1901, %v1934
    %v1936 = vand.u32 %v943, 4294901760
    %v1937 = vsub.f32 %v943, %v1936
    %1938 = vmatmul.f32.gmra.mxu0 %v1937
    %v1939 = vpop.f32.mrf.mxu0
    %v1940 = vadd.f32 %v1905, %v1939
    %1941 = vdwg.mxu0
    %1942 = vmatpush.msra.mxu0 0.0
    %1943 = vmatpush.msra.mxu0 0.0
    %1944 = vmatpush.msra.mxu0 0.0
    %1945 = vmatpush.msra.mxu0 0.0
    %1946 = vmatpush.msra.mxu0 0.0
    %1947 = vmatpush.msra.mxu0 0.0
    %1948 = vmatpush.msra.mxu0 0.0
    %1949 = vmatpush.msra.mxu0 0.0
    %1950 = vmatpush.msra.mxu0 0.0
    %1951 = vmatpush.msra.mxu0 0.0
    %1952 = vmatpush.msra.mxu0 0.0
    %1953 = vmatpush.msra.mxu0 0.0
    %v1954 = vand.u32 %v1812, 4294901760
    %1955 = vmatpush.msra.mxu0 %v1954
    %v1956 = vand.u32 %v1811, 4294901760
    %1957 = vmatpush.msra.mxu0 %v1956
    %v1958 = vand.u32 %v1810, 4294901760
    %1959 = vmatpush.msra.mxu0 %v1958
    %v1960 = vand.u32 %v1809, 4294901760
    %1961 = vmatpush.msra.mxu0 %v1960
    %v1962 = vand.u32 %v940, 4294901760
    %v1963 = vsub.f32 %v940, %v1962
    %v1964 = vand.u32 %v1963, 4294901760
    %1965 = vmatmul.f32.gmra.mxu0 %v1964
    %v1966 = vpop.f32.mrf.mxu0
    %v1967 = vadd.f32 %v1935, %v1966
    %v1968 = vand.u32 %v943, 4294901760
    %v1969 = vsub.f32 %v943, %v1968
    %v1970 = vand.u32 %v1969, 4294901760
    %1971 = vmatmul.f32.gmra.mxu0 %v1970
    %v1972 = vpop.f32.mrf.mxu0
    %v1973 = vadd.f32 %v1940, %v1972
    %1974 = vdwg.mxu0
    %1975 = vmatpush.msra.mxu0 0.0
    %1976 = vmatpush.msra.mxu0 0.0
    %1977 = vmatpush.msra.mxu0 0.0
    %1978 = vmatpush.msra.mxu0 0.0
    %1979 = vmatpush.msra.mxu0 0.0
    %1980 = vmatpush.msra.mxu0 0.0
    %1981 = vmatpush.msra.mxu0 0.0
    %1982 = vmatpush.msra.mxu0 0.0
    %1983 = vmatpush.msra.mxu0 0.0
    %1984 = vmatpush.msra.mxu0 0.0
    %1985 = vmatpush.msra.mxu0 0.0
    %1986 = vmatpush.msra.mxu0 0.0
    %v1987 = vand.u32 %v1812, 4294901760
    %v1988 = vsub.f32 %v1812, %v1987
    %v1989 = vand.u32 %v1988, 4294901760
    %1990 = vmatpush.msra.mxu0 %v1989
    %v1991 = vand.u32 %v1811, 4294901760
    %v1992 = vsub.f32 %v1811, %v1991
    %v1993 = vand.u32 %v1992, 4294901760
    %1994 = vmatpush.msra.mxu0 %v1993
    %v1995 = vand.u32 %v1810, 4294901760
    %v1996 = vsub.f32 %v1810, %v1995
    %v1997 = vand.u32 %v1996, 4294901760
    %1998 = vmatpush.msra.mxu0 %v1997
    %v1999 = vand.u32 %v1809, 4294901760
    %v2000 = vsub.f32 %v1809, %v1999
    %v2001 = vand.u32 %v2000, 4294901760
    %2002 = vmatpush.msra.mxu0 %v2001
    %v2003 = vand.u32 %v940, 4294901760
    %2004 = vmatmul.f32.gmra.mxu0 %v2003
    %v2005 = vpop.f32.mrf.mxu0
    %v2006 = vadd.f32 %v1967, %v2005
    %v2007 = vand.u32 %v943, 4294901760
    %2008 = vmatmul.f32.gmra.mxu0 %v2007
    %v2009 = vpop.f32.mrf.mxu0
    %v2010 = vadd.f32 %v1973, %v2009
    %2011 = vdwg.mxu0
    %2012 = vmatpush.msra.mxu0 0.0
    %2013 = vmatpush.msra.mxu0 0.0
    %2014 = vmatpush.msra.mxu0 0.0
    %2015 = vmatpush.msra.mxu0 0.0
    %2016 = vmatpush.msra.mxu0 0.0
    %2017 = vmatpush.msra.mxu0 0.0
    %2018 = vmatpush.msra.mxu0 0.0
    %2019 = vmatpush.msra.mxu0 0.0
    %2020 = vmatpush.msra.mxu0 0.0
    %2021 = vmatpush.msra.mxu0 0.0
    %2022 = vmatpush.msra.mxu0 0.0
    %2023 = vmatpush.msra.mxu0 0.0
    %v2024 = vand.u32 %v1812, 4294901760
    %2025 = vmatpush.msra.mxu0 %v2024
    %v2026 = vand.u32 %v1811, 4294901760
    %2027 = vmatpush.msra.mxu0 %v2026
    %v2028 = vand.u32 %v1810, 4294901760
    %2029 = vmatpush.msra.mxu0 %v2028
    %v2030 = vand.u32 %v1809, 4294901760
    %2031 = vmatpush.msra.mxu0 %v2030
    %v2032 = vand.u32 %v940, 4294901760
    %2033 = vmatmul.f32.gmra.mxu0 %v2032
    %v2034 = vpop.f32.mrf.mxu0
    %v2035 = vadd.f32 %v2006, %v2034
    %v2036 = vand.u32 %v943, 4294901760
    %2037 = vmatmul.f32.gmra.mxu0 %v2036
    %v2038 = vpop.f32.mrf.mxu0
    %v2039 = vadd.f32 %v2010, %v2038
    %2040 = vdwg.mxu0
    %2041 = vmatpush.msra.mxu0 0.0
    %2042 = vmatpush.msra.mxu0 0.0
    %2043 = vmatpush.msra.mxu0 0.0
    %2044 = vmatpush.msra.mxu0 0.0
    %2045 = vmatpush.msra.mxu0 0.0
    %2046 = vmatpush.msra.mxu0 0.0
    %2047 = vmatpush.msra.mxu0 0.0
    %2048 = vmatpush.msra.mxu0 0.0
    %2049 = vmatpush.msra.mxu0 0.0
    %2050 = vmatpush.msra.mxu0 0.0
    %2051 = vmatpush.msra.mxu0 0.0
    %2052 = vmatpush.msra.mxu0 0.0
    %v2053 = vand.u32 %v1816, 4294901760
    %2054 = vmatpush.msra.mxu0 %v2053
    %v2055 = vand.u32 %v1815, 4294901760
    %2056 = vmatpush.msra.mxu0 %v2055
    %v2057 = vand.u32 %v1814, 4294901760
    %2058 = vmatpush.msra.mxu0 %v2057
    %v2059 = vand.u32 %v1813, 4294901760
    %2060 = vmatpush.msra.mxu0 %v2059
    %v2061 = vand.u32 %v940, 4294901760
    %v2062 = vsub.f32 %v940, %v2061
    %v2063 = vand.u32 %v2062, 4294901760
    %v2064 = vsub.f32 %v2062, %v2063
    %v2065 = vand.u32 %v2064, 4294901760
    %2066 = vmatmul.f32.gmra.mxu0 %v2065
    %v2067 = vpop.f32.mrf.mxu0
    %v2068 = vadd.f32 0.0, %v2067
    %v2069 = vand.u32 %v943, 4294901760
    %v2070 = vsub.f32 %v943, %v2069
    %v2071 = vand.u32 %v2070, 4294901760
    %v2072 = vsub.f32 %v2070, %v2071
    %v2073 = vand.u32 %v2072, 4294901760
    %2074 = vmatmul.f32.gmra.mxu0 %v2073
    %v2075 = vpop.f32.mrf.mxu0
    %v2076 = vadd.f32 0.0, %v2075
    %2077 = vdwg.mxu0
    %2078 = vmatpush.msra.mxu0 0.0
    %2079 = vmatpush.msra.mxu0 0.0
    %2080 = vmatpush.msra.mxu0 0.0
    %2081 = vmatpush.msra.mxu0 0.0
    %2082 = vmatpush.msra.mxu0 0.0
    %2083 = vmatpush.msra.mxu0 0.0
    %2084 = vmatpush.msra.mxu0 0.0
    %2085 = vmatpush.msra.mxu0 0.0
    %2086 = vmatpush.msra.mxu0 0.0
    %2087 = vmatpush.msra.mxu0 0.0
    %2088 = vmatpush.msra.mxu0 0.0
    %2089 = vmatpush.msra.mxu0 0.0
    %v2090 = vand.u32 %v1816, 4294901760
    %v2091 = vsub.f32 %v1816, %v2090
    %v2092 = vand.u32 %v2091, 4294901760
    %v2093 = vsub.f32 %v2091, %v2092
    %v2094 = vand.u32 %v2093, 4294901760
    %2095 = vmatpush.msra.mxu0 %v2094
    %v2096 = vand.u32 %v1815, 4294901760
    %v2097 = vsub.f32 %v1815, %v2096
    %v2098 = vand.u32 %v2097, 4294901760
    %v2099 = vsub.f32 %v2097, %v2098
    %v2100 = vand.u32 %v2099, 4294901760
    %2101 = vmatpush.msra.mxu0 %v2100
    %v2102 = vand.u32 %v1814, 4294901760
    %v2103 = vsub.f32 %v1814, %v2102
    %v2104 = vand.u32 %v2103, 4294901760
    %v2105 = vsub.f32 %v2103, %v2104
    %v2106 = vand.u32 %v2105, 4294901760
    %2107 = vmatpush.msra.mxu0 %v2106
    %v2108 = vand.u32 %v1813, 4294901760
    %v2109 = vsub.f32 %v1813, %v2108
    %v2110 = vand.u32 %v2109, 4294901760
    %v2111 = vsub.f32 %v2109, %v2110
    %v2112 = vand.u32 %v2111, 4294901760
    %2113 = vmatpush.msra.mxu0 %v2112
    %v2114 = vand.u32 %v940, 4294901760
    %2115 = vmatmul.f32.gmra.mxu0 %v2114
    %v2116 = vpop.f32.mrf.mxu0
    %v2117 = vadd.f32 %v2068, %v2116
    %v2118 = vand.u32 %v943, 4294901760
    %2119 = vmatmul.f32.gmra.mxu0 %v2118
    %v2120 = vpop.f32.mrf.mxu0
    %v2121 = vadd.f32 %v2076, %v2120
    %2122 = vdwg.mxu0
    %2123 = vmatpush.msra.mxu0 0.0
    %2124 = vmatpush.msra.mxu0 0.0
    %2125 = vmatpush.msra.mxu0 0.0
    %2126 = vmatpush.msra.mxu0 0.0
    %2127 = vmatpush.msra.mxu0 0.0
    %2128 = vmatpush.msra.mxu0 0.0
    %2129 = vmatpush.msra.mxu0 0.0
    %2130 = vmatpush.msra.mxu0 0.0
    %2131 = vmatpush.msra.mxu0 0.0
    %2132 = vmatpush.msra.mxu0 0.0
    %2133 = vmatpush.msra.mxu0 0.0
    %2134 = vmatpush.msra.mxu0 0.0
    %v2135 = vand.u32 %v1816, 4294901760
    %v2136 = vsub.f32 %v1816, %v2135
    %2137 = vmatpush.msra.mxu0 %v2136
    %v2138 = vand.u32 %v1815, 4294901760
    %v2139 = vsub.f32 %v1815, %v2138
    %2140 = vmatpush.msra.mxu0 %v2139
    %v2141 = vand.u32 %v1814, 4294901760
    %v2142 = vsub.f32 %v1814, %v2141
    %2143 = vmatpush.msra.mxu0 %v2142
    %v2144 = vand.u32 %v1813, 4294901760
    %v2145 = vsub.f32 %v1813, %v2144
    %2146 = vmatpush.msra.mxu0 %v2145
    %v2147 = vand.u32 %v940, 4294901760
    %v2148 = vsub.f32 %v940, %v2147
    %2149 = vmatmul.f32.gmra.mxu0 %v2148
    %v2150 = vpop.f32.mrf.mxu0
    %v2151 = vadd.f32 %v2117, %v2150
    %v2152 = vand.u32 %v943, 4294901760
    %v2153 = vsub.f32 %v943, %v2152
    %2154 = vmatmul.f32.gmra.mxu0 %v2153
    %v2155 = vpop.f32.mrf.mxu0
    %v2156 = vadd.f32 %v2121, %v2155
    %2157 = vdwg.mxu0
    %2158 = vmatpush.msra.mxu0 0.0
    %2159 = vmatpush.msra.mxu0 0.0
    %2160 = vmatpush.msra.mxu0 0.0
    %2161 = vmatpush.msra.mxu0 0.0
    %2162 = vmatpush.msra.mxu0 0.0
    %2163 = vmatpush.msra.mxu0 0.0
    %2164 = vmatpush.msra.mxu0 0.0
    %2165 = vmatpush.msra.mxu0 0.0
    %2166 = vmatpush.msra.mxu0 0.0
    %2167 = vmatpush.msra.mxu0 0.0
    %2168 = vmatpush.msra.mxu0 0.0
    %2169 = vmatpush.msra.mxu0 0.0
    %v2170 = vand.u32 %v1816, 4294901760
    %2171 = vmatpush.msra.mxu0 %v2170
    %v2172 = vand.u32 %v1815, 4294901760
    %2173 = vmatpush.msra.mxu0 %v2172
    %v2174 = vand.u32 %v1814, 4294901760
    %2175 = vmatpush.msra.mxu0 %v2174
    %v2176 = vand.u32 %v1813, 4294901760
    %2177 = vmatpush.msra.mxu0 %v2176
    %v2178 = vand.u32 %v940, 4294901760
    %v2179 = vsub.f32 %v940, %v2178
    %v2180 = vand.u32 %v2179, 4294901760
    %2181 = vmatmul.f32.gmra.mxu0 %v2180
    %v2182 = vpop.f32.mrf.mxu0
    %v2183 = vadd.f32 %v2151, %v2182
    %v2184 = vand.u32 %v943, 4294901760
    %v2185 = vsub.f32 %v943, %v2184
    %v2186 = vand.u32 %v2185, 4294901760
    %2187 = vmatmul.f32.gmra.mxu0 %v2186
    %v2188 = vpop.f32.mrf.mxu0
    %v2189 = vadd.f32 %v2156, %v2188
    %2190 = vdwg.mxu0
    %2191 = vmatpush.msra.mxu0 0.0
    %2192 = vmatpush.msra.mxu0 0.0
    %2193 = vmatpush.msra.mxu0 0.0
    %2194 = vmatpush.msra.mxu0 0.0
    %2195 = vmatpush.msra.mxu0 0.0
    %2196 = vmatpush.msra.mxu0 0.0
    %2197 = vmatpush.msra.mxu0 0.0
    %2198 = vmatpush.msra.mxu0 0.0
    %2199 = vmatpush.msra.mxu0 0.0
    %2200 = vmatpush.msra.mxu0 0.0
    %2201 = vmatpush.msra.mxu0 0.0
    %2202 = vmatpush.msra.mxu0 0.0
    %v2203 = vand.u32 %v1816, 4294901760
    %v2204 = vsub.f32 %v1816, %v2203
    %v2205 = vand.u32 %v2204, 4294901760
    %2206 = vmatpush.msra.mxu0 %v2205
    %v2207 = vand.u32 %v1815, 4294901760
    %v2208 = vsub.f32 %v1815, %v2207
    %v2209 = vand.u32 %v2208, 4294901760
    %2210 = vmatpush.msra.mxu0 %v2209
    %v2211 = vand.u32 %v1814, 4294901760
    %v2212 = vsub.f32 %v1814, %v2211
    %v2213 = vand.u32 %v2212, 4294901760
    %2214 = vmatpush.msra.mxu0 %v2213
    %v2215 = vand.u32 %v1813, 4294901760
    %v2216 = vsub.f32 %v1813, %v2215
    %v2217 = vand.u32 %v2216, 4294901760
    %2218 = vmatpush.msra.mxu0 %v2217
    %v2219 = vand.u32 %v940, 4294901760
    %2220 = vmatmul.f32.gmra.mxu0 %v2219
    %v2221 = vpop.f32.mrf.mxu0
    %v2222 = vadd.f32 %v2183, %v2221
    %v2223 = vand.u32 %v943, 4294901760
    %2224 = vmatmul.f32.gmra.mxu0 %v2223
    %v2225 = vpop.f32.mrf.mxu0
    %v2226 = vadd.f32 %v2189, %v2225
    %2227 = vdwg.mxu0
    %2228 = vmatpush.msra.mxu0 0.0
    %2229 = vmatpush.msra.mxu0 0.0
    %2230 = vmatpush.msra.mxu0 0.0
    %2231 = vmatpush.msra.mxu0 0.0
    %2232 = vmatpush.msra.mxu0 0.0
    %2233 = vmatpush.msra.mxu0 0.0
    %2234 = vmatpush.msra.mxu0 0.0
    %2235 = vmatpush.msra.mxu0 0.0
    %2236 = vmatpush.msra.mxu0 0.0
    %2237 = vmatpush.msra.mxu0 0.0
    %2238 = vmatpush.msra.mxu0 0.0
    %2239 = vmatpush.msra.mxu0 0.0
    %v2240 = vand.u32 %v1816, 4294901760
    %2241 = vmatpush.msra.mxu0 %v2240
    %v2242 = vand.u32 %v1815, 4294901760
    %2243 = vmatpush.msra.mxu0 %v2242
    %v2244 = vand.u32 %v1814, 4294901760
    %2245 = vmatpush.msra.mxu0 %v2244
    %v2246 = vand.u32 %v1813, 4294901760
    %2247 = vmatpush.msra.mxu0 %v2246
    %v2248 = vand.u32 %v940, 4294901760
    %2249 = vmatmul.f32.gmra.mxu0 %v2248
    %v2250 = vpop.f32.mrf.mxu0
    %v2251 = vadd.f32 %v2222, %v2250
    %v2252 = vand.u32 %v943, 4294901760
    %2253 = vmatmul.f32.gmra.mxu0 %v2252
    %v2254 = vpop.f32.mrf.mxu0
    %v2255 = vadd.f32 %v2226, %v2254
    %2256 = vdwg.mxu0
    %2257 = vmatpush.msra.mxu0 0.0
    %2258 = vmatpush.msra.mxu0 0.0
    %2259 = vmatpush.msra.mxu0 0.0
    %2260 = vmatpush.msra.mxu0 0.0
    %2261 = vmatpush.msra.mxu0 0.0
    %2262 = vmatpush.msra.mxu0 0.0
    %2263 = vmatpush.msra.mxu0 0.0
    %2264 = vmatpush.msra.mxu0 0.0
    %2265 = vmatpush.msra.mxu0 0.0
    %2266 = vmatpush.msra.mxu0 0.0
    %2267 = vmatpush.msra.mxu0 0.0
    %2268 = vmatpush.msra.mxu0 0.0
    %v2269 = vand.u32 %v1820, 4294901760
    %2270 = vmatpush.msra.mxu0 %v2269
    %v2271 = vand.u32 %v1819, 4294901760
    %2272 = vmatpush.msra.mxu0 %v2271
    %v2273 = vand.u32 %v1818, 4294901760
    %2274 = vmatpush.msra.mxu0 %v2273
    %v2275 = vand.u32 %v1817, 4294901760
    %2276 = vmatpush.msra.mxu0 %v2275
    %v2277 = vand.u32 %v940, 4294901760
    %v2278 = vsub.f32 %v940, %v2277
    %v2279 = vand.u32 %v2278, 4294901760
    %v2280 = vsub.f32 %v2278, %v2279
    %v2281 = vand.u32 %v2280, 4294901760
    %2282 = vmatmul.f32.gmra.mxu0 %v2281
    %v2283 = vpop.f32.mrf.mxu0
    %v2284 = vadd.f32 0.0, %v2283
    %v2285 = vand.u32 %v943, 4294901760
    %v2286 = vsub.f32 %v943, %v2285
    %v2287 = vand.u32 %v2286, 4294901760
    %v2288 = vsub.f32 %v2286, %v2287
    %v2289 = vand.u32 %v2288, 4294901760
    %2290 = vmatmul.f32.gmra.mxu0 %v2289
    %v2291 = vpop.f32.mrf.mxu0
    %v2292 = vadd.f32 0.0, %v2291
    %2293 = vdwg.mxu0
    %2294 = vmatpush.msra.mxu0 0.0
    %2295 = vmatpush.msra.mxu0 0.0
    %2296 = vmatpush.msra.mxu0 0.0
    %2297 = vmatpush.msra.mxu0 0.0
    %2298 = vmatpush.msra.mxu0 0.0
    %2299 = vmatpush.msra.mxu0 0.0
    %2300 = vmatpush.msra.mxu0 0.0
    %2301 = vmatpush.msra.mxu0 0.0
    %2302 = vmatpush.msra.mxu0 0.0
    %2303 = vmatpush.msra.mxu0 0.0
    %2304 = vmatpush.msra.mxu0 0.0
    %2305 = vmatpush.msra.mxu0 0.0
    %v2306 = vand.u32 %v1820, 4294901760
    %v2307 = vsub.f32 %v1820, %v2306
    %v2308 = vand.u32 %v2307, 4294901760
    %v2309 = vsub.f32 %v2307, %v2308
    %v2310 = vand.u32 %v2309, 4294901760
    %2311 = vmatpush.msra.mxu0 %v2310
    %v2312 = vand.u32 %v1819, 4294901760
    %v2313 = vsub.f32 %v1819, %v2312
    %v2314 = vand.u32 %v2313, 4294901760
    %v2315 = vsub.f32 %v2313, %v2314
    %v2316 = vand.u32 %v2315, 4294901760
    %2317 = vmatpush.msra.mxu0 %v2316
    %v2318 = vand.u32 %v1818, 4294901760
    %v2319 = vsub.f32 %v1818, %v2318
    %v2320 = vand.u32 %v2319, 4294901760
    %v2321 = vsub.f32 %v2319, %v2320
    %v2322 = vand.u32 %v2321, 4294901760
    %2323 = vmatpush.msra.mxu0 %v2322
    %v2324 = vand.u32 %v1817, 4294901760
    %v2325 = vsub.f32 %v1817, %v2324
    %v2326 = vand.u32 %v2325, 4294901760
    %v2327 = vsub.f32 %v2325, %v2326
    %v2328 = vand.u32 %v2327, 4294901760
    %2329 = vmatpush.msra.mxu0 %v2328
    %v2330 = vand.u32 %v940, 4294901760
    %2331 = vmatmul.f32.gmra.mxu0 %v2330
    %v2332 = vpop.f32.mrf.mxu0
    %v2333 = vadd.f32 %v2284, %v2332
    %v2334 = vand.u32 %v943, 4294901760
    %2335 = vmatmul.f32.gmra.mxu0 %v2334
    %v2336 = vpop.f32.mrf.mxu0
    %v2337 = vadd.f32 %v2292, %v2336
    %2338 = vdwg.mxu0
    %2339 = vmatpush.msra.mxu0 0.0
    %2340 = vmatpush.msra.mxu0 0.0
    %2341 = vmatpush.msra.mxu0 0.0
    %2342 = vmatpush.msra.mxu0 0.0
    %2343 = vmatpush.msra.mxu0 0.0
    %2344 = vmatpush.msra.mxu0 0.0
    %2345 = vmatpush.msra.mxu0 0.0
    %2346 = vmatpush.msra.mxu0 0.0
    %2347 = vmatpush.msra.mxu0 0.0
    %2348 = vmatpush.msra.mxu0 0.0
    %2349 = vmatpush.msra.mxu0 0.0
    %2350 = vmatpush.msra.mxu0 0.0
    %v2351 = vand.u32 %v1820, 4294901760
    %v2352 = vsub.f32 %v1820, %v2351
    %2353 = vmatpush.msra.mxu0 %v2352
    %v2354 = vand.u32 %v1819, 4294901760
    %v2355 = vsub.f32 %v1819, %v2354
    %2356 = vmatpush.msra.mxu0 %v2355
    %v2357 = vand.u32 %v1818, 4294901760
    %v2358 = vsub.f32 %v1818, %v2357
    %2359 = vmatpush.msra.mxu0 %v2358
    %v2360 = vand.u32 %v1817, 4294901760
    %v2361 = vsub.f32 %v1817, %v2360
    %2362 = vmatpush.msra.mxu0 %v2361
    %v2363 = vand.u32 %v940, 4294901760
    %v2364 = vsub.f32 %v940, %v2363
    %2365 = vmatmul.f32.gmra.mxu0 %v2364
    %v2366 = vpop.f32.mrf.mxu0
    %v2367 = vadd.f32 %v2333, %v2366
    %v2368 = vand.u32 %v943, 4294901760
    %v2369 = vsub.f32 %v943, %v2368
    %2370 = vmatmul.f32.gmra.mxu0 %v2369
    %v2371 = vpop.f32.mrf.mxu0
    %v2372 = vadd.f32 %v2337, %v2371
    %2373 = vdwg.mxu0
    %2374 = vmatpush.msra.mxu0 0.0
    %2375 = vmatpush.msra.mxu0 0.0
    %2376 = vmatpush.msra.mxu0 0.0
    %2377 = vmatpush.msra.mxu0 0.0
    %2378 = vmatpush.msra.mxu0 0.0
    %2379 = vmatpush.msra.mxu0 0.0
    %2380 = vmatpush.msra.mxu0 0.0
    %2381 = vmatpush.msra.mxu0 0.0
    %2382 = vmatpush.msra.mxu0 0.0
    %2383 = vmatpush.msra.mxu0 0.0
    %2384 = vmatpush.msra.mxu0 0.0
    %2385 = vmatpush.msra.mxu0 0.0
    %v2386 = vand.u32 %v1820, 4294901760
    %2387 = vmatpush.msra.mxu0 %v2386
    %v2388 = vand.u32 %v1819, 4294901760
    %2389 = vmatpush.msra.mxu0 %v2388
    %v2390 = vand.u32 %v1818, 4294901760
    %2391 = vmatpush.msra.mxu0 %v2390
    %v2392 = vand.u32 %v1817, 4294901760
    %2393 = vmatpush.msra.mxu0 %v2392
    %v2394 = vand.u32 %v940, 4294901760
    %v2395 = vsub.f32 %v940, %v2394
    %v2396 = vand.u32 %v2395, 4294901760
    %2397 = vmatmul.f32.gmra.mxu0 %v2396
    %v2398 = vpop.f32.mrf.mxu0
    %v2399 = vadd.f32 %v2367, %v2398
    %v2400 = vand.u32 %v943, 4294901760
    %v2401 = vsub.f32 %v943, %v2400
    %v2402 = vand.u32 %v2401, 4294901760
    %2403 = vmatmul.f32.gmra.mxu0 %v2402
    %v2404 = vpop.f32.mrf.mxu0
    %v2405 = vadd.f32 %v2372, %v2404
    %2406 = vdwg.mxu0
    %2407 = vmatpush.msra.mxu0 0.0
    %2408 = vmatpush.msra.mxu0 0.0
    %2409 = vmatpush.msra.mxu0 0.0
    %2410 = vmatpush.msra.mxu0 0.0
    %2411 = vmatpush.msra.mxu0 0.0
    %2412 = vmatpush.msra.mxu0 0.0
    %2413 = vmatpush.msra.mxu0 0.0
    %2414 = vmatpush.msra.mxu0 0.0
    %2415 = vmatpush.msra.mxu0 0.0
    %2416 = vmatpush.msra.mxu0 0.0
    %2417 = vmatpush.msra.mxu0 0.0
    %2418 = vmatpush.msra.mxu0 0.0
    %v2419 = vand.u32 %v1820, 4294901760
    %v2420 = vsub.f32 %v1820, %v2419
    %v2421 = vand.u32 %v2420, 4294901760
    %2422 = vmatpush.msra.mxu0 %v2421
    %v2423 = vand.u32 %v1819, 4294901760
    %v2424 = vsub.f32 %v1819, %v2423
    %v2425 = vand.u32 %v2424, 4294901760
    %2426 = vmatpush.msra.mxu0 %v2425
    %v2427 = vand.u32 %v1818, 4294901760
    %v2428 = vsub.f32 %v1818, %v2427
    %v2429 = vand.u32 %v2428, 4294901760
    %2430 = vmatpush.msra.mxu0 %v2429
    %v2431 = vand.u32 %v1817, 4294901760
    %v2432 = vsub.f32 %v1817, %v2431
    %v2433 = vand.u32 %v2432, 4294901760
    %2434 = vmatpush.msra.mxu0 %v2433
    %v2435 = vand.u32 %v940, 4294901760
    %2436 = vmatmul.f32.gmra.mxu0 %v2435
    %v2437 = vpop.f32.mrf.mxu0
    %v2438 = vadd.f32 %v2399, %v2437
    %v2439 = vand.u32 %v943, 4294901760
    %2440 = vmatmul.f32.gmra.mxu0 %v2439
    %v2441 = vpop.f32.mrf.mxu0
    %v2442 = vadd.f32 %v2405, %v2441
    %2443 = vdwg.mxu0
    %2444 = vmatpush.msra.mxu0 0.0
    %2445 = vmatpush.msra.mxu0 0.0
    %2446 = vmatpush.msra.mxu0 0.0
    %2447 = vmatpush.msra.mxu0 0.0
    %2448 = vmatpush.msra.mxu0 0.0
    %2449 = vmatpush.msra.mxu0 0.0
    %2450 = vmatpush.msra.mxu0 0.0
    %2451 = vmatpush.msra.mxu0 0.0
    %2452 = vmatpush.msra.mxu0 0.0
    %2453 = vmatpush.msra.mxu0 0.0
    %2454 = vmatpush.msra.mxu0 0.0
    %2455 = vmatpush.msra.mxu0 0.0
    %v2456 = vand.u32 %v1820, 4294901760
    %2457 = vmatpush.msra.mxu0 %v2456
    %v2458 = vand.u32 %v1819, 4294901760
    %2459 = vmatpush.msra.mxu0 %v2458
    %v2460 = vand.u32 %v1818, 4294901760
    %2461 = vmatpush.msra.mxu0 %v2460
    %v2462 = vand.u32 %v1817, 4294901760
    %2463 = vmatpush.msra.mxu0 %v2462
    %v2464 = vand.u32 %v940, 4294901760
    %2465 = vmatmul.f32.gmra.mxu0 %v2464
    %v2466 = vpop.f32.mrf.mxu0
    %v2467 = vadd.f32 %v2438, %v2466
    %v2468 = vand.u32 %v943, 4294901760
    %2469 = vmatmul.f32.gmra.mxu0 %v2468
    %v2470 = vpop.f32.mrf.mxu0
    %v2471 = vadd.f32 %v2442, %v2470
    %2472 = vdwg.mxu0
    %2473 = vmatpush.msra.mxu0 0.0
    %2474 = vmatpush.msra.mxu0 0.0
    %2475 = vmatpush.msra.mxu0 0.0
    %2476 = vmatpush.msra.mxu0 0.0
    %2477 = vmatpush.msra.mxu0 0.0
    %2478 = vmatpush.msra.mxu0 0.0
    %2479 = vmatpush.msra.mxu0 0.0
    %2480 = vmatpush.msra.mxu0 0.0
    %2481 = vmatpush.msra.mxu0 0.0
    %2482 = vmatpush.msra.mxu0 0.0
    %2483 = vmatpush.msra.mxu0 0.0
    %2484 = vmatpush.msra.mxu0 0.0
    %v2485 = vand.u32 %v1824, 4294901760
    %2486 = vmatpush.msra.mxu0 %v2485
    %v2487 = vand.u32 %v1823, 4294901760
    %2488 = vmatpush.msra.mxu0 %v2487
    %v2489 = vand.u32 %v1822, 4294901760
    %2490 = vmatpush.msra.mxu0 %v2489
    %v2491 = vand.u32 %v1821, 4294901760
    %2492 = vmatpush.msra.mxu0 %v2491
    %v2493 = vand.u32 %v940, 4294901760
    %v2494 = vsub.f32 %v940, %v2493
    %v2495 = vand.u32 %v2494, 4294901760
    %v2496 = vsub.f32 %v2494, %v2495
    %v2497 = vand.u32 %v2496, 4294901760
    %2498 = vmatmul.f32.gmra.mxu0 %v2497
    %v2499 = vpop.f32.mrf.mxu0
    %v2500 = vadd.f32 0.0, %v2499
    %v2501 = vand.u32 %v943, 4294901760
    %v2502 = vsub.f32 %v943, %v2501
    %v2503 = vand.u32 %v2502, 4294901760
    %v2504 = vsub.f32 %v2502, %v2503
    %v2505 = vand.u32 %v2504, 4294901760
    %2506 = vmatmul.f32.gmra.mxu0 %v2505
    %v2507 = vpop.f32.mrf.mxu0
    %v2508 = vadd.f32 0.0, %v2507
    %2509 = vdwg.mxu0
    %2510 = vmatpush.msra.mxu0 0.0
    %2511 = vmatpush.msra.mxu0 0.0
    %2512 = vmatpush.msra.mxu0 0.0
    %2513 = vmatpush.msra.mxu0 0.0
    %2514 = vmatpush.msra.mxu0 0.0
    %2515 = vmatpush.msra.mxu0 0.0
    %2516 = vmatpush.msra.mxu0 0.0
    %2517 = vmatpush.msra.mxu0 0.0
    %2518 = vmatpush.msra.mxu0 0.0
    %2519 = vmatpush.msra.mxu0 0.0
    %2520 = vmatpush.msra.mxu0 0.0
    %2521 = vmatpush.msra.mxu0 0.0
    %v2522 = vand.u32 %v1824, 4294901760
    %v2523 = vsub.f32 %v1824, %v2522
    %v2524 = vand.u32 %v2523, 4294901760
    %v2525 = vsub.f32 %v2523, %v2524
    %v2526 = vand.u32 %v2525, 4294901760
    %2527 = vmatpush.msra.mxu0 %v2526
    %v2528 = vand.u32 %v1823, 4294901760
    %v2529 = vsub.f32 %v1823, %v2528
    %v2530 = vand.u32 %v2529, 4294901760
    %v2531 = vsub.f32 %v2529, %v2530
    %v2532 = vand.u32 %v2531, 4294901760
    %2533 = vmatpush.msra.mxu0 %v2532
    %v2534 = vand.u32 %v1822, 4294901760
    %v2535 = vsub.f32 %v1822, %v2534
    %v2536 = vand.u32 %v2535, 4294901760
    %v2537 = vsub.f32 %v2535, %v2536
    %v2538 = vand.u32 %v2537, 4294901760
    %2539 = vmatpush.msra.mxu0 %v2538
    %v2540 = vand.u32 %v1821, 4294901760
    %v2541 = vsub.f32 %v1821, %v2540
    %v2542 = vand.u32 %v2541, 4294901760
    %v2543 = vsub.f32 %v2541, %v2542
    %v2544 = vand.u32 %v2543, 4294901760
    %2545 = vmatpush.msra.mxu0 %v2544
    %v2546 = vand.u32 %v940, 4294901760
    %2547 = vmatmul.f32.gmra.mxu0 %v2546
    %v2548 = vpop.f32.mrf.mxu0
    %v2549 = vadd.f32 %v2500, %v2548
    %v2550 = vand.u32 %v943, 4294901760
    %2551 = vmatmul.f32.gmra.mxu0 %v2550
    %v2552 = vpop.f32.mrf.mxu0
    %v2553 = vadd.f32 %v2508, %v2552
    %2554 = vdwg.mxu0
    %2555 = vmatpush.msra.mxu0 0.0
    %2556 = vmatpush.msra.mxu0 0.0
    %2557 = vmatpush.msra.mxu0 0.0
    %2558 = vmatpush.msra.mxu0 0.0
    %2559 = vmatpush.msra.mxu0 0.0
    %2560 = vmatpush.msra.mxu0 0.0
    %2561 = vmatpush.msra.mxu0 0.0
    %2562 = vmatpush.msra.mxu0 0.0
    %2563 = vmatpush.msra.mxu0 0.0
    %2564 = vmatpush.msra.mxu0 0.0
    %2565 = vmatpush.msra.mxu0 0.0
    %2566 = vmatpush.msra.mxu0 0.0
    %v2567 = vand.u32 %v1824, 4294901760
    %v2568 = vsub.f32 %v1824, %v2567
    %2569 = vmatpush.msra.mxu0 %v2568
    %v2570 = vand.u32 %v1823, 4294901760
    %v2571 = vsub.f32 %v1823, %v2570
    %2572 = vmatpush.msra.mxu0 %v2571
    %v2573 = vand.u32 %v1822, 4294901760
    %v2574 = vsub.f32 %v1822, %v2573
    %2575 = vmatpush.msra.mxu0 %v2574
    %v2576 = vand.u32 %v1821, 4294901760
    %v2577 = vsub.f32 %v1821, %v2576
    %2578 = vmatpush.msra.mxu0 %v2577
    %v2579 = vand.u32 %v940, 4294901760
    %v2580 = vsub.f32 %v940, %v2579
    %2581 = vmatmul.f32.gmra.mxu0 %v2580
    %v2582 = vpop.f32.mrf.mxu0
    %v2583 = vadd.f32 %v2549, %v2582
    %v2584 = vand.u32 %v943, 4294901760
    %v2585 = vsub.f32 %v943, %v2584
    %2586 = vmatmul.f32.gmra.mxu0 %v2585
    %v2587 = vpop.f32.mrf.mxu0
    %v2588 = vadd.f32 %v2553, %v2587
    %2589 = vdwg.mxu0
    %2590 = vmatpush.msra.mxu0 0.0
    %2591 = vmatpush.msra.mxu0 0.0
    %2592 = vmatpush.msra.mxu0 0.0
    %2593 = vmatpush.msra.mxu0 0.0
    %2594 = vmatpush.msra.mxu0 0.0
    %2595 = vmatpush.msra.mxu0 0.0
    %2596 = vmatpush.msra.mxu0 0.0
    %2597 = vmatpush.msra.mxu0 0.0
    %2598 = vmatpush.msra.mxu0 0.0
    %2599 = vmatpush.msra.mxu0 0.0
    %2600 = vmatpush.msra.mxu0 0.0
    %2601 = vmatpush.msra.mxu0 0.0
    %v2602 = vand.u32 %v1824, 4294901760
    %2603 = vmatpush.msra.mxu0 %v2602
    %v2604 = vand.u32 %v1823, 4294901760
    %2605 = vmatpush.msra.mxu0 %v2604
    %v2606 = vand.u32 %v1822, 4294901760
    %2607 = vmatpush.msra.mxu0 %v2606
    %v2608 = vand.u32 %v1821, 4294901760
    %2609 = vmatpush.msra.mxu0 %v2608
    %v2610 = vand.u32 %v940, 4294901760
    %v2611 = vsub.f32 %v940, %v2610
    %v2612 = vand.u32 %v2611, 4294901760
    %2613 = vmatmul.f32.gmra.mxu0 %v2612
    %v2614 = vpop.f32.mrf.mxu0
    %v2615 = vadd.f32 %v2583, %v2614
    %v2616 = vand.u32 %v943, 4294901760
    %v2617 = vsub.f32 %v943, %v2616
    %v2618 = vand.u32 %v2617, 4294901760
    %2619 = vmatmul.f32.gmra.mxu0 %v2618
    %v2620 = vpop.f32.mrf.mxu0
    %v2621 = vadd.f32 %v2588, %v2620
    %2622 = vdwg.mxu0
    %2623 = vmatpush.msra.mxu0 0.0
    %2624 = vmatpush.msra.mxu0 0.0
    %2625 = vmatpush.msra.mxu0 0.0
    %2626 = vmatpush.msra.mxu0 0.0
    %2627 = vmatpush.msra.mxu0 0.0
    %2628 = vmatpush.msra.mxu0 0.0
    %2629 = vmatpush.msra.mxu0 0.0
    %2630 = vmatpush.msra.mxu0 0.0
    %2631 = vmatpush.msra.mxu0 0.0
    %2632 = vmatpush.msra.mxu0 0.0
    %2633 = vmatpush.msra.mxu0 0.0
    %2634 = vmatpush.msra.mxu0 0.0
    %v2635 = vand.u32 %v1824, 4294901760
    %v2636 = vsub.f32 %v1824, %v2635
    %v2637 = vand.u32 %v2636, 4294901760
    %2638 = vmatpush.msra.mxu0 %v2637
    %v2639 = vand.u32 %v1823, 4294901760
    %v2640 = vsub.f32 %v1823, %v2639
    %v2641 = vand.u32 %v2640, 4294901760
    %2642 = vmatpush.msra.mxu0 %v2641
    %v2643 = vand.u32 %v1822, 4294901760
    %v2644 = vsub.f32 %v1822, %v2643
    %v2645 = vand.u32 %v2644, 4294901760
    %2646 = vmatpush.msra.mxu0 %v2645
    %v2647 = vand.u32 %v1821, 4294901760
    %v2648 = vsub.f32 %v1821, %v2647
    %v2649 = vand.u32 %v2648, 4294901760
    %2650 = vmatpush.msra.mxu0 %v2649
    %v2651 = vand.u32 %v940, 4294901760
    %2652 = vmatmul.f32.gmra.mxu0 %v2651
    %v2653 = vpop.f32.mrf.mxu0
    %v2654 = vadd.f32 %v2615, %v2653
    %v2655 = vand.u32 %v943, 4294901760
    %2656 = vmatmul.f32.gmra.mxu0 %v2655
    %v2657 = vpop.f32.mrf.mxu0
    %v2658 = vadd.f32 %v2621, %v2657
    %2659 = vdwg.mxu0
    %2660 = vmatpush.msra.mxu0 0.0
    %2661 = vmatpush.msra.mxu0 0.0
    %2662 = vmatpush.msra.mxu0 0.0
    %2663 = vmatpush.msra.mxu0 0.0
    %2664 = vmatpush.msra.mxu0 0.0
    %2665 = vmatpush.msra.mxu0 0.0
    %2666 = vmatpush.msra.mxu0 0.0
    %2667 = vmatpush.msra.mxu0 0.0
    %2668 = vmatpush.msra.mxu0 0.0
    %2669 = vmatpush.msra.mxu0 0.0
    %2670 = vmatpush.msra.mxu0 0.0
    %2671 = vmatpush.msra.mxu0 0.0
    %v2672 = vand.u32 %v1824, 4294901760
    %2673 = vmatpush.msra.mxu0 %v2672
    %v2674 = vand.u32 %v1823, 4294901760
    %2675 = vmatpush.msra.mxu0 %v2674
    %v2676 = vand.u32 %v1822, 4294901760
    %2677 = vmatpush.msra.mxu0 %v2676
    %v2678 = vand.u32 %v1821, 4294901760
    %2679 = vmatpush.msra.mxu0 %v2678
    %v2680 = vand.u32 %v940, 4294901760
    %2681 = vmatmul.f32.gmra.mxu0 %v2680
    %v2682 = vpop.f32.mrf.mxu0
    %v2683 = vadd.f32 %v2654, %v2682
    %v2684 = vand.u32 %v943, 4294901760
    %2685 = vmatmul.f32.gmra.mxu0 %v2684
    %v2686 = vpop.f32.mrf.mxu0
    %v2687 = vadd.f32 %v2658, %v2686
    %2688 = vdwg.mxu0
    %v2689 = vld [vmem:[%s5] sm:$0xff]
    %v2690 = vld [vmem:[%s5 + $0x8] sm:$0xff]
    %vm2691 = vcmask 64512
    %v2693 = vsel %vm2691, %v915, 0
    %v2696 = vsel %vm2691, %v916, 0
    %v2699 = vsel %vm2691, %v1155, 0
    %v2702 = vsel %vm2691, %v1159, 0
    %2704 = vmatpush.xpose.msra.mxu0 0.0
    %2705 = vmatpush.xpose.msra.mxu0 0.0
    %2706 = vmatpush.xpose.msra.mxu0 0.0
    %2707 = vmatpush.xpose.msra.mxu0 0.0
    %2708 = vmatpush.xpose.msra.mxu0 0.0
    %2709 = vmatpush.xpose.msra.mxu0 0.0
    %2710 = vmatpush.xpose.msra.mxu0 0.0
    %2711 = vmatpush.xpose.msra.mxu0 0.0
    %2712 = vmatpush.xpose.msra.mxu0 0.0
    %2713 = vmatpush.xpose.msra.mxu0 0.0
    %2714 = vmatpush.xpose.msra.mxu0 0.0
    %2715 = vmatpush.xpose.msra.mxu0 0.0
    %2716 = vmatpush.xpose.msra.mxu0 0.0
    %2717 = vmatpush.xpose.msra.mxu0 0.0
    %v2718 = vand.u32 %v2702, 4294901760
    %2719 = vmatpush.xpose.msra.mxu0 %v2718
    %v2720 = vand.u32 %v2699, 4294901760
    %2721 = vmatpush.xpose.msra.mxu0 %v2720
    %v2722 = vand.u32 %v2693, 4294901760
    %v2723 = vsub.f32 %v2693, %v2722
    %v2724 = vand.u32 %v2723, 4294901760
    %v2725 = vsub.f32 %v2723, %v2724
    %v2726 = vand.u32 %v2725, 4294901760
    %2727 = vmatmul.f32.gmra.mxu0 %v2726
    %v2728 = vpop.f32.mrf.mxu0
    %v2729 = vadd.f32 %v2689, %v2728
    %v2730 = vand.u32 %v2696, 4294901760
    %v2731 = vsub.f32 %v2696, %v2730
    %v2732 = vand.u32 %v2731, 4294901760
    %v2733 = vsub.f32 %v2731, %v2732
    %v2734 = vand.u32 %v2733, 4294901760
    %2735 = vmatmul.f32.gmra.mxu0 %v2734
    %v2736 = vpop.f32.mrf.mxu0
    %v2737 = vadd.f32 %v2690, %v2736
    %2738 = vdwg.mxu0
    %2739 = vmatpush.xpose.msra.mxu0 0.0
    %2740 = vmatpush.xpose.msra.mxu0 0.0
    %2741 = vmatpush.xpose.msra.mxu0 0.0
    %2742 = vmatpush.xpose.msra.mxu0 0.0
    %2743 = vmatpush.xpose.msra.mxu0 0.0
    %2744 = vmatpush.xpose.msra.mxu0 0.0
    %2745 = vmatpush.xpose.msra.mxu0 0.0
    %2746 = vmatpush.xpose.msra.mxu0 0.0
    %2747 = vmatpush.xpose.msra.mxu0 0.0
    %2748 = vmatpush.xpose.msra.mxu0 0.0
    %2749 = vmatpush.xpose.msra.mxu0 0.0
    %2750 = vmatpush.xpose.msra.mxu0 0.0
    %2751 = vmatpush.xpose.msra.mxu0 0.0
    %2752 = vmatpush.xpose.msra.mxu0 0.0
    %v2753 = vand.u32 %v2702, 4294901760
    %v2754 = vsub.f32 %v2702, %v2753
    %v2755 = vand.u32 %v2754, 4294901760
    %v2756 = vsub.f32 %v2754, %v2755
    %v2757 = vand.u32 %v2756, 4294901760
    %2758 = vmatpush.xpose.msra.mxu0 %v2757
    %v2759 = vand.u32 %v2699, 4294901760
    %v2760 = vsub.f32 %v2699, %v2759
    %v2761 = vand.u32 %v2760, 4294901760
    %v2762 = vsub.f32 %v2760, %v2761
    %v2763 = vand.u32 %v2762, 4294901760
    %2764 = vmatpush.xpose.msra.mxu0 %v2763
    %v2765 = vand.u32 %v2693, 4294901760
    %2766 = vmatmul.f32.gmra.mxu0 %v2765
    %v2767 = vpop.f32.mrf.mxu0
    %v2768 = vadd.f32 %v2729, %v2767
    %v2769 = vand.u32 %v2696, 4294901760
    %2770 = vmatmul.f32.gmra.mxu0 %v2769
    %v2771 = vpop.f32.mrf.mxu0
    %v2772 = vadd.f32 %v2737, %v2771
    %2773 = vdwg.mxu0
    %2774 = vmatpush.xpose.msra.mxu0 0.0
    %2775 = vmatpush.xpose.msra.mxu0 0.0
    %2776 = vmatpush.xpose.msra.mxu0 0.0
    %2777 = vmatpush.xpose.msra.mxu0 0.0
    %2778 = vmatpush.xpose.msra.mxu0 0.0
    %2779 = vmatpush.xpose.msra.mxu0 0.0
    %2780 = vmatpush.xpose.msra.mxu0 0.0
    %2781 = vmatpush.xpose.msra.mxu0 0.0
    %2782 = vmatpush.xpose.msra.mxu0 0.0
    %2783 = vmatpush.xpose.msra.mxu0 0.0
    %2784 = vmatpush.xpose.msra.mxu0 0.0
    %2785 = vmatpush.xpose.msra.mxu0 0.0
    %2786 = vmatpush.xpose.msra.mxu0 0.0
    %2787 = vmatpush.xpose.msra.mxu0 0.0
    %v2788 = vand.u32 %v2702, 4294901760
    %v2789 = vsub.f32 %v2702, %v2788
    %2790 = vmatpush.xpose.msra.mxu0 %v2789
    %v2791 = vand.u32 %v2699, 4294901760
    %v2792 = vsub.f32 %v2699, %v2791
    %2793 = vmatpush.xpose.msra.mxu0 %v2792
    %v2794 = vand.u32 %v2693, 4294901760
    %v2795 = vsub.f32 %v2693, %v2794
    %2796 = vmatmul.f32.gmra.mxu0 %v2795
    %v2797 = vpop.f32.mrf.mxu0
    %v2798 = vadd.f32 %v2768, %v2797
    %v2799 = vand.u32 %v2696, 4294901760
    %v2800 = vsub.f32 %v2696, %v2799
    %2801 = vmatmul.f32.gmra.mxu0 %v2800
    %v2802 = vpop.f32.mrf.mxu0
    %v2803 = vadd.f32 %v2772, %v2802
    %2804 = vdwg.mxu0
    %2805 = vmatpush.xpose.msra.mxu0 0.0
    %2806 = vmatpush.xpose.msra.mxu0 0.0
    %2807 = vmatpush.xpose.msra.mxu0 0.0
    %2808 = vmatpush.xpose.msra.mxu0 0.0
    %2809 = vmatpush.xpose.msra.mxu0 0.0
    %2810 = vmatpush.xpose.msra.mxu0 0.0
    %2811 = vmatpush.xpose.msra.mxu0 0.0
    %2812 = vmatpush.xpose.msra.mxu0 0.0
    %2813 = vmatpush.xpose.msra.mxu0 0.0
    %2814 = vmatpush.xpose.msra.mxu0 0.0
    %2815 = vmatpush.xpose.msra.mxu0 0.0
    %2816 = vmatpush.xpose.msra.mxu0 0.0
    %2817 = vmatpush.xpose.msra.mxu0 0.0
    %2818 = vmatpush.xpose.msra.mxu0 0.0
    %v2819 = vand.u32 %v2702, 4294901760
    %2820 = vmatpush.xpose.msra.mxu0 %v2819
    %v2821 = vand.u32 %v2699, 4294901760
    %2822 = vmatpush.xpose.msra.mxu0 %v2821
    %v2823 = vand.u32 %v2693, 4294901760
    %v2824 = vsub.f32 %v2693, %v2823
    %v2825 = vand.u32 %v2824, 4294901760
    %2826 = vmatmul.f32.gmra.mxu0 %v2825
    %v2827 = vpop.f32.mrf.mxu0
    %v2828 = vadd.f32 %v2798, %v2827
    %v2829 = vand.u32 %v2696, 4294901760
    %v2830 = vsub.f32 %v2696, %v2829
    %v2831 = vand.u32 %v2830, 4294901760
    %2832 = vmatmul.f32.gmra.mxu0 %v2831
    %v2833 = vpop.f32.mrf.mxu0
    %v2834 = vadd.f32 %v2803, %v2833
    %2835 = vdwg.mxu0
    %2836 = vmatpush.xpose.msra.mxu0 0.0
    %2837 = vmatpush.xpose.msra.mxu0 0.0
    %2838 = vmatpush.xpose.msra.mxu0 0.0
    %2839 = vmatpush.xpose.msra.mxu0 0.0
    %2840 = vmatpush.xpose.msra.mxu0 0.0
    %2841 = vmatpush.xpose.msra.mxu0 0.0
    %2842 = vmatpush.xpose.msra.mxu0 0.0
    %2843 = vmatpush.xpose.msra.mxu0 0.0
    %2844 = vmatpush.xpose.msra.mxu0 0.0
    %2845 = vmatpush.xpose.msra.mxu0 0.0
    %2846 = vmatpush.xpose.msra.mxu0 0.0
    %2847 = vmatpush.xpose.msra.mxu0 0.0
    %2848 = vmatpush.xpose.msra.mxu0 0.0
    %2849 = vmatpush.xpose.msra.mxu0 0.0
    %v2850 = vand.u32 %v2702, 4294901760
    %v2851 = vsub.f32 %v2702, %v2850
    %v2852 = vand.u32 %v2851, 4294901760
    %2853 = vmatpush.xpose.msra.mxu0 %v2852
    %v2854 = vand.u32 %v2699, 4294901760
    %v2855 = vsub.f32 %v2699, %v2854
    %v2856 = vand.u32 %v2855, 4294901760
    %2857 = vmatpush.xpose.msra.mxu0 %v2856
    %v2858 = vand.u32 %v2693, 4294901760
    %2859 = vmatmul.f32.gmra.mxu0 %v2858
    %v2860 = vpop.f32.mrf.mxu0
    %v2861 = vadd.f32 %v2828, %v2860
    %v2862 = vand.u32 %v2696, 4294901760
    %2863 = vmatmul.f32.gmra.mxu0 %v2862
    %v2864 = vpop.f32.mrf.mxu0
    %v2865 = vadd.f32 %v2834, %v2864
    %2866 = vdwg.mxu0
    %2867 = vmatpush.xpose.msra.mxu0 0.0
    %2868 = vmatpush.xpose.msra.mxu0 0.0
    %2869 = vmatpush.xpose.msra.mxu0 0.0
    %2870 = vmatpush.xpose.msra.mxu0 0.0
    %2871 = vmatpush.xpose.msra.mxu0 0.0
    %2872 = vmatpush.xpose.msra.mxu0 0.0
    %2873 = vmatpush.xpose.msra.mxu0 0.0
    %2874 = vmatpush.xpose.msra.mxu0 0.0
    %2875 = vmatpush.xpose.msra.mxu0 0.0
    %2876 = vmatpush.xpose.msra.mxu0 0.0
    %2877 = vmatpush.xpose.msra.mxu0 0.0
    %2878 = vmatpush.xpose.msra.mxu0 0.0
    %2879 = vmatpush.xpose.msra.mxu0 0.0
    %2880 = vmatpush.xpose.msra.mxu0 0.0
    %v2881 = vand.u32 %v2702, 4294901760
    %2882 = vmatpush.xpose.msra.mxu0 %v2881
    %v2883 = vand.u32 %v2699, 4294901760
    %2884 = vmatpush.xpose.msra.mxu0 %v2883
    %v2885 = vand.u32 %v2693, 4294901760
    %2886 = vmatmul.f32.gmra.mxu0 %v2885
    %v2887 = vpop.f32.mrf.mxu0
    %v2888 = vadd.f32 %v2861, %v2887
    %v2889 = vand.u32 %v2696, 4294901760
    %2890 = vmatmul.f32.gmra.mxu0 %v2889
    %v2891 = vpop.f32.mrf.mxu0
    %v2892 = vadd.f32 %v2865, %v2891
    %2893 = vdwg.mxu0
    %v2895 = vsel %vm2691, %v917, 0
    %v2898 = vsel %vm2691, %v918, 0
    %v2901 = vsel %vm2691, %v1371, 0
    %v2904 = vsel %vm2691, %v1375, 0
    %2906 = vmatpush.xpose.msra.mxu0 0.0
    %2907 = vmatpush.xpose.msra.mxu0 0.0
    %2908 = vmatpush.xpose.msra.mxu0 0.0
    %2909 = vmatpush.xpose.msra.mxu0 0.0
    %2910 = vmatpush.xpose.msra.mxu0 0.0
    %2911 = vmatpush.xpose.msra.mxu0 0.0
    %2912 = vmatpush.xpose.msra.mxu0 0.0
    %2913 = vmatpush.xpose.msra.mxu0 0.0
    %2914 = vmatpush.xpose.msra.mxu0 0.0
    %2915 = vmatpush.xpose.msra.mxu0 0.0
    %2916 = vmatpush.xpose.msra.mxu0 0.0
    %2917 = vmatpush.xpose.msra.mxu0 0.0
    %2918 = vmatpush.xpose.msra.mxu0 0.0
    %2919 = vmatpush.xpose.msra.mxu0 0.0
    %v2920 = vand.u32 %v2904, 4294901760
    %2921 = vmatpush.xpose.msra.mxu0 %v2920
    %v2922 = vand.u32 %v2901, 4294901760
    %2923 = vmatpush.xpose.msra.mxu0 %v2922
    %v2924 = vand.u32 %v2895, 4294901760
    %v2925 = vsub.f32 %v2895, %v2924
    %v2926 = vand.u32 %v2925, 4294901760
    %v2927 = vsub.f32 %v2925, %v2926
    %v2928 = vand.u32 %v2927, 4294901760
    %2929 = vmatmul.f32.gmra.mxu0 %v2928
    %v2930 = vpop.f32.mrf.mxu0
    %v2931 = vadd.f32 %v2689, %v2930
    %v2932 = vand.u32 %v2898, 4294901760
    %v2933 = vsub.f32 %v2898, %v2932
    %v2934 = vand.u32 %v2933, 4294901760
    %v2935 = vsub.f32 %v2933, %v2934
    %v2936 = vand.u32 %v2935, 4294901760
    %2937 = vmatmul.f32.gmra.mxu0 %v2936
    %v2938 = vpop.f32.mrf.mxu0
    %v2939 = vadd.f32 %v2690, %v2938
    %2940 = vdwg.mxu0
    %2941 = vmatpush.xpose.msra.mxu0 0.0
    %2942 = vmatpush.xpose.msra.mxu0 0.0
    %2943 = vmatpush.xpose.msra.mxu0 0.0
    %2944 = vmatpush.xpose.msra.mxu0 0.0
    %2945 = vmatpush.xpose.msra.mxu0 0.0
    %2946 = vmatpush.xpose.msra.mxu0 0.0
    %2947 = vmatpush.xpose.msra.mxu0 0.0
    %2948 = vmatpush.xpose.msra.mxu0 0.0
    %2949 = vmatpush.xpose.msra.mxu0 0.0
    %2950 = vmatpush.xpose.msra.mxu0 0.0
    %2951 = vmatpush.xpose.msra.mxu0 0.0
    %2952 = vmatpush.xpose.msra.mxu0 0.0
    %2953 = vmatpush.xpose.msra.mxu0 0.0
    %2954 = vmatpush.xpose.msra.mxu0 0.0
    %v2955 = vand.u32 %v2904, 4294901760
    %v2956 = vsub.f32 %v2904, %v2955
    %v2957 = vand.u32 %v2956, 4294901760
    %v2958 = vsub.f32 %v2956, %v2957
    %v2959 = vand.u32 %v2958, 4294901760
    %2960 = vmatpush.xpose.msra.mxu0 %v2959
    %v2961 = vand.u32 %v2901, 4294901760
    %v2962 = vsub.f32 %v2901, %v2961
    %v2963 = vand.u32 %v2962, 4294901760
    %v2964 = vsub.f32 %v2962, %v2963
    %v2965 = vand.u32 %v2964, 4294901760
    %2966 = vmatpush.xpose.msra.mxu0 %v2965
    %v2967 = vand.u32 %v2895, 4294901760
    %2968 = vmatmul.f32.gmra.mxu0 %v2967
    %v2969 = vpop.f32.mrf.mxu0
    %v2970 = vadd.f32 %v2931, %v2969
    %v2971 = vand.u32 %v2898, 4294901760
    %2972 = vmatmul.f32.gmra.mxu0 %v2971
    %v2973 = vpop.f32.mrf.mxu0
    %v2974 = vadd.f32 %v2939, %v2973
    %2975 = vdwg.mxu0
    %2976 = vmatpush.xpose.msra.mxu0 0.0
    %2977 = vmatpush.xpose.msra.mxu0 0.0
    %2978 = vmatpush.xpose.msra.mxu0 0.0
    %2979 = vmatpush.xpose.msra.mxu0 0.0
    %2980 = vmatpush.xpose.msra.mxu0 0.0
    %2981 = vmatpush.xpose.msra.mxu0 0.0
    %2982 = vmatpush.xpose.msra.mxu0 0.0
    %2983 = vmatpush.xpose.msra.mxu0 0.0
    %2984 = vmatpush.xpose.msra.mxu0 0.0
    %2985 = vmatpush.xpose.msra.mxu0 0.0
    %2986 = vmatpush.xpose.msra.mxu0 0.0
    %2987 = vmatpush.xpose.msra.mxu0 0.0
    %2988 = vmatpush.xpose.msra.mxu0 0.0
    %2989 = vmatpush.xpose.msra.mxu0 0.0
    %v2990 = vand.u32 %v2904, 4294901760
    %v2991 = vsub.f32 %v2904, %v2990
    %2992 = vmatpush.xpose.msra.mxu0 %v2991
    %v2993 = vand.u32 %v2901, 4294901760
    %v2994 = vsub.f32 %v2901, %v2993
    %2995 = vmatpush.xpose.msra.mxu0 %v2994
    %v2996 = vand.u32 %v2895, 4294901760
    %v2997 = vsub.f32 %v2895, %v2996
    %2998 = vmatmul.f32.gmra.mxu0 %v2997
    %v2999 = vpop.f32.mrf.mxu0
    %v3000 = vadd.f32 %v2970, %v2999
    %v3001 = vand.u32 %v2898, 4294901760
    %v3002 = vsub.f32 %v2898, %v3001
    %3003 = vmatmul.f32.gmra.mxu0 %v3002
    %v3004 = vpop.f32.mrf.mxu0
    %v3005 = vadd.f32 %v2974, %v3004
    %3006 = vdwg.mxu0
    %3007 = vmatpush.xpose.msra.mxu0 0.0
    %3008 = vmatpush.xpose.msra.mxu0 0.0
    %3009 = vmatpush.xpose.msra.mxu0 0.0
    %3010 = vmatpush.xpose.msra.mxu0 0.0
    %3011 = vmatpush.xpose.msra.mxu0 0.0
    %3012 = vmatpush.xpose.msra.mxu0 0.0
    %3013 = vmatpush.xpose.msra.mxu0 0.0
    %3014 = vmatpush.xpose.msra.mxu0 0.0
    %3015 = vmatpush.xpose.msra.mxu0 0.0
    %3016 = vmatpush.xpose.msra.mxu0 0.0
    %3017 = vmatpush.xpose.msra.mxu0 0.0
    %3018 = vmatpush.xpose.msra.mxu0 0.0
    %3019 = vmatpush.xpose.msra.mxu0 0.0
    %3020 = vmatpush.xpose.msra.mxu0 0.0
    %v3021 = vand.u32 %v2904, 4294901760
    %3022 = vmatpush.xpose.msra.mxu0 %v3021
    %v3023 = vand.u32 %v2901, 4294901760
    %3024 = vmatpush.xpose.msra.mxu0 %v3023
    %v3025 = vand.u32 %v2895, 4294901760
    %v3026 = vsub.f32 %v2895, %v3025
    %v3027 = vand.u32 %v3026, 4294901760
    %3028 = vmatmul.f32.gmra.mxu0 %v3027
    %v3029 = vpop.f32.mrf.mxu0
    %v3030 = vadd.f32 %v3000, %v3029
    %v3031 = vand.u32 %v2898, 4294901760
    %v3032 = vsub.f32 %v2898, %v3031
    %v3033 = vand.u32 %v3032, 4294901760
    %3034 = vmatmul.f32.gmra.mxu0 %v3033
    %v3035 = vpop.f32.mrf.mxu0
    %v3036 = vadd.f32 %v3005, %v3035
    %3037 = vdwg.mxu0
    %3038 = vmatpush.xpose.msra.mxu0 0.0
    %3039 = vmatpush.xpose.msra.mxu0 0.0
    %3040 = vmatpush.xpose.msra.mxu0 0.0
    %3041 = vmatpush.xpose.msra.mxu0 0.0
    %3042 = vmatpush.xpose.msra.mxu0 0.0
    %3043 = vmatpush.xpose.msra.mxu0 0.0
    %3044 = vmatpush.xpose.msra.mxu0 0.0
    %3045 = vmatpush.xpose.msra.mxu0 0.0
    %3046 = vmatpush.xpose.msra.mxu0 0.0
    %3047 = vmatpush.xpose.msra.mxu0 0.0
    %3048 = vmatpush.xpose.msra.mxu0 0.0
    %3049 = vmatpush.xpose.msra.mxu0 0.0
    %3050 = vmatpush.xpose.msra.mxu0 0.0
    %3051 = vmatpush.xpose.msra.mxu0 0.0
    %v3052 = vand.u32 %v2904, 4294901760
    %v3053 = vsub.f32 %v2904, %v3052
    %v3054 = vand.u32 %v3053, 4294901760
    %3055 = vmatpush.xpose.msra.mxu0 %v3054
    %v3056 = vand.u32 %v2901, 4294901760
    %v3057 = vsub.f32 %v2901, %v3056
    %v3058 = vand.u32 %v3057, 4294901760
    %3059 = vmatpush.xpose.msra.mxu0 %v3058
    %v3060 = vand.u32 %v2895, 4294901760
    %3061 = vmatmul.f32.gmra.mxu0 %v3060
    %v3062 = vpop.f32.mrf.mxu0
    %v3063 = vadd.f32 %v3030, %v3062
    %v3064 = vand.u32 %v2898, 4294901760
    %3065 = vmatmul.f32.gmra.mxu0 %v3064
    %v3066 = vpop.f32.mrf.mxu0
    %v3067 = vadd.f32 %v3036, %v3066
    %3068 = vdwg.mxu0
    %3069 = vmatpush.xpose.msra.mxu0 0.0
    %3070 = vmatpush.xpose.msra.mxu0 0.0
    %3071 = vmatpush.xpose.msra.mxu0 0.0
    %3072 = vmatpush.xpose.msra.mxu0 0.0
    %3073 = vmatpush.xpose.msra.mxu0 0.0
    %3074 = vmatpush.xpose.msra.mxu0 0.0
    %3075 = vmatpush.xpose.msra.mxu0 0.0
    %3076 = vmatpush.xpose.msra.mxu0 0.0
    %3077 = vmatpush.xpose.msra.mxu0 0.0
    %3078 = vmatpush.xpose.msra.mxu0 0.0
    %3079 = vmatpush.xpose.msra.mxu0 0.0
    %3080 = vmatpush.xpose.msra.mxu0 0.0
    %3081 = vmatpush.xpose.msra.mxu0 0.0
    %3082 = vmatpush.xpose.msra.mxu0 0.0
    %v3083 = vand.u32 %v2904, 4294901760
    %3084 = vmatpush.xpose.msra.mxu0 %v3083
    %v3085 = vand.u32 %v2901, 4294901760
    %3086 = vmatpush.xpose.msra.mxu0 %v3085
    %v3087 = vand.u32 %v2895, 4294901760
    %3088 = vmatmul.f32.gmra.mxu0 %v3087
    %v3089 = vpop.f32.mrf.mxu0
    %v3090 = vadd.f32 %v3063, %v3089
    %v3091 = vand.u32 %v2898, 4294901760
    %3092 = vmatmul.f32.gmra.mxu0 %v3091
    %v3093 = vpop.f32.mrf.mxu0
    %v3094 = vadd.f32 %v3067, %v3093
    %3095 = vdwg.mxu0
    %v3097 = vsel %vm2691, %v919, 0
    %v3100 = vsel %vm2691, %v920, 0
    %v3103 = vsel %vm2691, %v1587, 0
    %v3106 = vsel %vm2691, %v1591, 0
    %3108 = vmatpush.xpose.msra.mxu0 0.0
    %3109 = vmatpush.xpose.msra.mxu0 0.0
    %3110 = vmatpush.xpose.msra.mxu0 0.0
    %3111 = vmatpush.xpose.msra.mxu0 0.0
    %3112 = vmatpush.xpose.msra.mxu0 0.0
    %3113 = vmatpush.xpose.msra.mxu0 0.0
    %3114 = vmatpush.xpose.msra.mxu0 0.0
    %3115 = vmatpush.xpose.msra.mxu0 0.0
    %3116 = vmatpush.xpose.msra.mxu0 0.0
    %3117 = vmatpush.xpose.msra.mxu0 0.0
    %3118 = vmatpush.xpose.msra.mxu0 0.0
    %3119 = vmatpush.xpose.msra.mxu0 0.0
    %3120 = vmatpush.xpose.msra.mxu0 0.0
    %3121 = vmatpush.xpose.msra.mxu0 0.0
    %v3122 = vand.u32 %v3106, 4294901760
    %3123 = vmatpush.xpose.msra.mxu0 %v3122
    %v3124 = vand.u32 %v3103, 4294901760
    %3125 = vmatpush.xpose.msra.mxu0 %v3124
    %v3126 = vand.u32 %v3097, 4294901760
    %v3127 = vsub.f32 %v3097, %v3126
    %v3128 = vand.u32 %v3127, 4294901760
    %v3129 = vsub.f32 %v3127, %v3128
    %v3130 = vand.u32 %v3129, 4294901760
    %3131 = vmatmul.f32.gmra.mxu0 %v3130
    %v3132 = vpop.f32.mrf.mxu0
    %v3133 = vadd.f32 %v2689, %v3132
    %v3134 = vand.u32 %v3100, 4294901760
    %v3135 = vsub.f32 %v3100, %v3134
    %v3136 = vand.u32 %v3135, 4294901760
    %v3137 = vsub.f32 %v3135, %v3136
    %v3138 = vand.u32 %v3137, 4294901760
    %3139 = vmatmul.f32.gmra.mxu0 %v3138
    %v3140 = vpop.f32.mrf.mxu0
    %v3141 = vadd.f32 %v2690, %v3140
    %3142 = vdwg.mxu0
    %3143 = vmatpush.xpose.msra.mxu0 0.0
    %3144 = vmatpush.xpose.msra.mxu0 0.0
    %3145 = vmatpush.xpose.msra.mxu0 0.0
    %3146 = vmatpush.xpose.msra.mxu0 0.0
    %3147 = vmatpush.xpose.msra.mxu0 0.0
    %3148 = vmatpush.xpose.msra.mxu0 0.0
    %3149 = vmatpush.xpose.msra.mxu0 0.0
    %3150 = vmatpush.xpose.msra.mxu0 0.0
    %3151 = vmatpush.xpose.msra.mxu0 0.0
    %3152 = vmatpush.xpose.msra.mxu0 0.0
    %3153 = vmatpush.xpose.msra.mxu0 0.0
    %3154 = vmatpush.xpose.msra.mxu0 0.0
    %3155 = vmatpush.xpose.msra.mxu0 0.0
    %3156 = vmatpush.xpose.msra.mxu0 0.0
    %v3157 = vand.u32 %v3106, 4294901760
    %v3158 = vsub.f32 %v3106, %v3157
    %v3159 = vand.u32 %v3158, 4294901760
    %v3160 = vsub.f32 %v3158, %v3159
    %v3161 = vand.u32 %v3160, 4294901760
    %3162 = vmatpush.xpose.msra.mxu0 %v3161
    %v3163 = vand.u32 %v3103, 4294901760
    %v3164 = vsub.f32 %v3103, %v3163
    %v3165 = vand.u32 %v3164, 4294901760
    %v3166 = vsub.f32 %v3164, %v3165
    %v3167 = vand.u32 %v3166, 4294901760
    %3168 = vmatpush.xpose.msra.mxu0 %v3167
    %v3169 = vand.u32 %v3097, 4294901760
    %3170 = vmatmul.f32.gmra.mxu0 %v3169
    %v3171 = vpop.f32.mrf.mxu0
    %v3172 = vadd.f32 %v3133, %v3171
    %v3173 = vand.u32 %v3100, 4294901760
    %3174 = vmatmul.f32.gmra.mxu0 %v3173
    %v3175 = vpop.f32.mrf.mxu0
    %v3176 = vadd.f32 %v3141, %v3175
    %3177 = vdwg.mxu0
    %3178 = vmatpush.xpose.msra.mxu0 0.0
    %3179 = vmatpush.xpose.msra.mxu0 0.0
    %3180 = vmatpush.xpose.msra.mxu0 0.0
    %3181 = vmatpush.xpose.msra.mxu0 0.0
    %3182 = vmatpush.xpose.msra.mxu0 0.0
    %3183 = vmatpush.xpose.msra.mxu0 0.0
    %3184 = vmatpush.xpose.msra.mxu0 0.0
    %3185 = vmatpush.xpose.msra.mxu0 0.0
    %3186 = vmatpush.xpose.msra.mxu0 0.0
    %3187 = vmatpush.xpose.msra.mxu0 0.0
    %3188 = vmatpush.xpose.msra.mxu0 0.0
    %3189 = vmatpush.xpose.msra.mxu0 0.0
    %3190 = vmatpush.xpose.msra.mxu0 0.0
    %3191 = vmatpush.xpose.msra.mxu0 0.0
    %v3192 = vand.u32 %v3106, 4294901760
    %v3193 = vsub.f32 %v3106, %v3192
    %3194 = vmatpush.xpose.msra.mxu0 %v3193
    %v3195 = vand.u32 %v3103, 4294901760
    %v3196 = vsub.f32 %v3103, %v3195
    %3197 = vmatpush.xpose.msra.mxu0 %v3196
    %v3198 = vand.u32 %v3097, 4294901760
    %v3199 = vsub.f32 %v3097, %v3198
    %3200 = vmatmul.f32.gmra.mxu0 %v3199
    %v3201 = vpop.f32.mrf.mxu0
    %v3202 = vadd.f32 %v3172, %v3201
    %v3203 = vand.u32 %v3100, 4294901760
    %v3204 = vsub.f32 %v3100, %v3203
    %3205 = vmatmul.f32.gmra.mxu0 %v3204
    %v3206 = vpop.f32.mrf.mxu0
    %v3207 = vadd.f32 %v3176, %v3206
    %3208 = vdwg.mxu0
    %3209 = vmatpush.xpose.msra.mxu0 0.0
    %3210 = vmatpush.xpose.msra.mxu0 0.0
    %3211 = vmatpush.xpose.msra.mxu0 0.0
    %3212 = vmatpush.xpose.msra.mxu0 0.0
    %3213 = vmatpush.xpose.msra.mxu0 0.0
    %3214 = vmatpush.xpose.msra.mxu0 0.0
    %3215 = vmatpush.xpose.msra.mxu0 0.0
    %3216 = vmatpush.xpose.msra.mxu0 0.0
    %3217 = vmatpush.xpose.msra.mxu0 0.0
    %3218 = vmatpush.xpose.msra.mxu0 0.0
    %3219 = vmatpush.xpose.msra.mxu0 0.0
    %3220 = vmatpush.xpose.msra.mxu0 0.0
    %3221 = vmatpush.xpose.msra.mxu0 0.0
    %3222 = vmatpush.xpose.msra.mxu0 0.0
    %v3223 = vand.u32 %v3106, 4294901760
    %3224 = vmatpush.xpose.msra.mxu0 %v3223
    %v3225 = vand.u32 %v3103, 4294901760
    %3226 = vmatpush.xpose.msra.mxu0 %v3225
    %v3227 = vand.u32 %v3097, 4294901760
    %v3228 = vsub.f32 %v3097, %v3227
    %v3229 = vand.u32 %v3228, 4294901760
    %3230 = vmatmul.f32.gmra.mxu0 %v3229
    %v3231 = vpop.f32.mrf.mxu0
    %v3232 = vadd.f32 %v3202, %v3231
    %v3233 = vand.u32 %v3100, 4294901760
    %v3234 = vsub.f32 %v3100, %v3233
    %v3235 = vand.u32 %v3234, 4294901760
    %3236 = vmatmul.f32.gmra.mxu0 %v3235
    %v3237 = vpop.f32.mrf.mxu0
    %v3238 = vadd.f32 %v3207, %v3237
    %3239 = vdwg.mxu0
    %3240 = vmatpush.xpose.msra.mxu0 0.0
    %3241 = vmatpush.xpose.msra.mxu0 0.0
    %3242 = vmatpush.xpose.msra.mxu0 0.0
    %3243 = vmatpush.xpose.msra.mxu0 0.0
    %3244 = vmatpush.xpose.msra.mxu0 0.0
    %3245 = vmatpush.xpose.msra.mxu0 0.0
    %3246 = vmatpush.xpose.msra.mxu0 0.0
    %3247 = vmatpush.xpose.msra.mxu0 0.0
    %3248 = vmatpush.xpose.msra.mxu0 0.0
    %3249 = vmatpush.xpose.msra.mxu0 0.0
    %3250 = vmatpush.xpose.msra.mxu0 0.0
    %3251 = vmatpush.xpose.msra.mxu0 0.0
    %3252 = vmatpush.xpose.msra.mxu0 0.0
    %3253 = vmatpush.xpose.msra.mxu0 0.0
    %v3254 = vand.u32 %v3106, 4294901760
    %v3255 = vsub.f32 %v3106, %v3254
    %v3256 = vand.u32 %v3255, 4294901760
    %3257 = vmatpush.xpose.msra.mxu0 %v3256
    %v3258 = vand.u32 %v3103, 4294901760
    %v3259 = vsub.f32 %v3103, %v3258
    %v3260 = vand.u32 %v3259, 4294901760
    %3261 = vmatpush.xpose.msra.mxu0 %v3260
    %v3262 = vand.u32 %v3097, 4294901760
    %3263 = vmatmul.f32.gmra.mxu0 %v3262
    %v3264 = vpop.f32.mrf.mxu0
    %v3265 = vadd.f32 %v3232, %v3264
    %v3266 = vand.u32 %v3100, 4294901760
    %3267 = vmatmul.f32.gmra.mxu0 %v3266
    %v3268 = vpop.f32.mrf.mxu0
    %v3269 = vadd.f32 %v3238, %v3268
    %3270 = vdwg.mxu0
    %3271 = vmatpush.xpose.msra.mxu0 0.0
    %3272 = vmatpush.xpose.msra.mxu0 0.0
    %3273 = vmatpush.xpose.msra.mxu0 0.0
    %3274 = vmatpush.xpose.msra.mxu0 0.0
    %3275 = vmatpush.xpose.msra.mxu0 0.0
    %3276 = vmatpush.xpose.msra.mxu0 0.0
    %3277 = vmatpush.xpose.msra.mxu0 0.0
    %3278 = vmatpush.xpose.msra.mxu0 0.0
    %3279 = vmatpush.xpose.msra.mxu0 0.0
    %3280 = vmatpush.xpose.msra.mxu0 0.0
    %3281 = vmatpush.xpose.msra.mxu0 0.0
    %3282 = vmatpush.xpose.msra.mxu0 0.0
    %3283 = vmatpush.xpose.msra.mxu0 0.0
    %3284 = vmatpush.xpose.msra.mxu0 0.0
    %v3285 = vand.u32 %v3106, 4294901760
    %3286 = vmatpush.xpose.msra.mxu0 %v3285
    %v3287 = vand.u32 %v3103, 4294901760
    %3288 = vmatpush.xpose.msra.mxu0 %v3287
    %v3289 = vand.u32 %v3097, 4294901760
    %3290 = vmatmul.f32.gmra.mxu0 %v3289
    %v3291 = vpop.f32.mrf.mxu0
    %v3292 = vadd.f32 %v3265, %v3291
    %v3293 = vand.u32 %v3100, 4294901760
    %3294 = vmatmul.f32.gmra.mxu0 %v3293
    %v3295 = vpop.f32.mrf.mxu0
    %v3296 = vadd.f32 %v3269, %v3295
    %3297 = vdwg.mxu0
    %v3299 = vsel %vm2691, %v921, 0
    %v3302 = vsel %vm2691, %v922, 0
    %v3305 = vsel %vm2691, %v1803, 0
    %v3308 = vsel %vm2691, %v1807, 0
    %3310 = vmatpush.xpose.msra.mxu0 0.0
    %3311 = vmatpush.xpose.msra.mxu0 0.0
    %3312 = vmatpush.xpose.msra.mxu0 0.0
    %3313 = vmatpush.xpose.msra.mxu0 0.0
    %3314 = vmatpush.xpose.msra.mxu0 0.0
    %3315 = vmatpush.xpose.msra.mxu0 0.0
    %3316 = vmatpush.xpose.msra.mxu0 0.0
    %3317 = vmatpush.xpose.msra.mxu0 0.0
    %3318 = vmatpush.xpose.msra.mxu0 0.0
    %3319 = vmatpush.xpose.msra.mxu0 0.0
    %3320 = vmatpush.xpose.msra.mxu0 0.0
    %3321 = vmatpush.xpose.msra.mxu0 0.0
    %3322 = vmatpush.xpose.msra.mxu0 0.0
    %3323 = vmatpush.xpose.msra.mxu0 0.0
    %v3324 = vand.u32 %v3308, 4294901760
    %3325 = vmatpush.xpose.msra.mxu0 %v3324
    %v3326 = vand.u32 %v3305, 4294901760
    %3327 = vmatpush.xpose.msra.mxu0 %v3326
    %v3328 = vand.u32 %v3299, 4294901760
    %v3329 = vsub.f32 %v3299, %v3328
    %v3330 = vand.u32 %v3329, 4294901760
    %v3331 = vsub.f32 %v3329, %v3330
    %v3332 = vand.u32 %v3331, 4294901760
    %3333 = vmatmul.f32.gmra.mxu0 %v3332
    %v3334 = vpop.f32.mrf.mxu0
    %v3335 = vadd.f32 %v2689, %v3334
    %v3336 = vand.u32 %v3302, 4294901760
    %v3337 = vsub.f32 %v3302, %v3336
    %v3338 = vand.u32 %v3337, 4294901760
    %v3339 = vsub.f32 %v3337, %v3338
    %v3340 = vand.u32 %v3339, 4294901760
    %3341 = vmatmul.f32.gmra.mxu0 %v3340
    %v3342 = vpop.f32.mrf.mxu0
    %v3343 = vadd.f32 %v2690, %v3342
    %3344 = vdwg.mxu0
    %3345 = vmatpush.xpose.msra.mxu0 0.0
    %3346 = vmatpush.xpose.msra.mxu0 0.0
    %3347 = vmatpush.xpose.msra.mxu0 0.0
    %3348 = vmatpush.xpose.msra.mxu0 0.0
    %3349 = vmatpush.xpose.msra.mxu0 0.0
    %3350 = vmatpush.xpose.msra.mxu0 0.0
    %3351 = vmatpush.xpose.msra.mxu0 0.0
    %3352 = vmatpush.xpose.msra.mxu0 0.0
    %3353 = vmatpush.xpose.msra.mxu0 0.0
    %3354 = vmatpush.xpose.msra.mxu0 0.0
    %3355 = vmatpush.xpose.msra.mxu0 0.0
    %3356 = vmatpush.xpose.msra.mxu0 0.0
    %3357 = vmatpush.xpose.msra.mxu0 0.0
    %3358 = vmatpush.xpose.msra.mxu0 0.0
    %v3359 = vand.u32 %v3308, 4294901760
    %v3360 = vsub.f32 %v3308, %v3359
    %v3361 = vand.u32 %v3360, 4294901760
    %v3362 = vsub.f32 %v3360, %v3361
    %v3363 = vand.u32 %v3362, 4294901760
    %3364 = vmatpush.xpose.msra.mxu0 %v3363
    %v3365 = vand.u32 %v3305, 4294901760
    %v3366 = vsub.f32 %v3305, %v3365
    %v3367 = vand.u32 %v3366, 4294901760
    %v3368 = vsub.f32 %v3366, %v3367
    %v3369 = vand.u32 %v3368, 4294901760
    %3370 = vmatpush.xpose.msra.mxu0 %v3369
    %v3371 = vand.u32 %v3299, 4294901760
    %3372 = vmatmul.f32.gmra.mxu0 %v3371
    %v3373 = vpop.f32.mrf.mxu0
    %v3374 = vadd.f32 %v3335, %v3373
    %v3375 = vand.u32 %v3302, 4294901760
    %3376 = vmatmul.f32.gmra.mxu0 %v3375
    %v3377 = vpop.f32.mrf.mxu0
    %v3378 = vadd.f32 %v3343, %v3377
    %3379 = vdwg.mxu0
    %3380 = vmatpush.xpose.msra.mxu0 0.0
    %3381 = vmatpush.xpose.msra.mxu0 0.0
    %3382 = vmatpush.xpose.msra.mxu0 0.0
    %3383 = vmatpush.xpose.msra.mxu0 0.0
    %3384 = vmatpush.xpose.msra.mxu0 0.0
    %3385 = vmatpush.xpose.msra.mxu0 0.0
    %3386 = vmatpush.xpose.msra.mxu0 0.0
    %3387 = vmatpush.xpose.msra.mxu0 0.0
    %3388 = vmatpush.xpose.msra.mxu0 0.0
    %3389 = vmatpush.xpose.msra.mxu0 0.0
    %3390 = vmatpush.xpose.msra.mxu0 0.0
    %3391 = vmatpush.xpose.msra.mxu0 0.0
    %3392 = vmatpush.xpose.msra.mxu0 0.0
    %3393 = vmatpush.xpose.msra.mxu0 0.0
    %v3394 = vand.u32 %v3308, 4294901760
    %v3395 = vsub.f32 %v3308, %v3394
    %3396 = vmatpush.xpose.msra.mxu0 %v3395
    %v3397 = vand.u32 %v3305, 4294901760
    %v3398 = vsub.f32 %v3305, %v3397
    %3399 = vmatpush.xpose.msra.mxu0 %v3398
    %v3400 = vand.u32 %v3299, 4294901760
    %v3401 = vsub.f32 %v3299, %v3400
    %3402 = vmatmul.f32.gmra.mxu0 %v3401
    %v3403 = vpop.f32.mrf.mxu0
    %v3404 = vadd.f32 %v3374, %v3403
    %v3405 = vand.u32 %v3302, 4294901760
    %v3406 = vsub.f32 %v3302, %v3405
    %3407 = vmatmul.f32.gmra.mxu0 %v3406
    %v3408 = vpop.f32.mrf.mxu0
    %v3409 = vadd.f32 %v3378, %v3408
    %3410 = vdwg.mxu0
    %3411 = vmatpush.xpose.msra.mxu0 0.0
    %3412 = vmatpush.xpose.msra.mxu0 0.0
    %3413 = vmatpush.xpose.msra.mxu0 0.0
    %3414 = vmatpush.xpose.msra.mxu0 0.0
    %3415 = vmatpush.xpose.msra.mxu0 0.0
    %3416 = vmatpush.xpose.msra.mxu0 0.0
    %3417 = vmatpush.xpose.msra.mxu0 0.0
    %3418 = vmatpush.xpose.msra.mxu0 0.0
    %3419 = vmatpush.xpose.msra.mxu0 0.0
    %3420 = vmatpush.xpose.msra.mxu0 0.0
    %3421 = vmatpush.xpose.msra.mxu0 0.0
    %3422 = vmatpush.xpose.msra.mxu0 0.0
    %3423 = vmatpush.xpose.msra.mxu0 0.0
    %3424 = vmatpush.xpose.msra.mxu0 0.0
    %v3425 = vand.u32 %v3308, 4294901760
    %3426 = vmatpush.xpose.msra.mxu0 %v3425
    %v3427 = vand.u32 %v3305, 4294901760
    %3428 = vmatpush.xpose.msra.mxu0 %v3427
    %v3429 = vand.u32 %v3299, 4294901760
    %v3430 = vsub.f32 %v3299, %v3429
    %v3431 = vand.u32 %v3430, 4294901760
    %3432 = vmatmul.f32.gmra.mxu0 %v3431
    %v3433 = vpop.f32.mrf.mxu0
    %v3434 = vadd.f32 %v3404, %v3433
    %v3435 = vand.u32 %v3302, 4294901760
    %v3436 = vsub.f32 %v3302, %v3435
    %v3437 = vand.u32 %v3436, 4294901760
    %3438 = vmatmul.f32.gmra.mxu0 %v3437
    %v3439 = vpop.f32.mrf.mxu0
    %v3440 = vadd.f32 %v3409, %v3439
    %3441 = vdwg.mxu0
    %3442 = vmatpush.xpose.msra.mxu0 0.0
    %3443 = vmatpush.xpose.msra.mxu0 0.0
    %3444 = vmatpush.xpose.msra.mxu0 0.0
    %3445 = vmatpush.xpose.msra.mxu0 0.0
    %3446 = vmatpush.xpose.msra.mxu0 0.0
    %3447 = vmatpush.xpose.msra.mxu0 0.0
    %3448 = vmatpush.xpose.msra.mxu0 0.0
    %3449 = vmatpush.xpose.msra.mxu0 0.0
    %3450 = vmatpush.xpose.msra.mxu0 0.0
    %3451 = vmatpush.xpose.msra.mxu0 0.0
    %3452 = vmatpush.xpose.msra.mxu0 0.0
    %3453 = vmatpush.xpose.msra.mxu0 0.0
    %3454 = vmatpush.xpose.msra.mxu0 0.0
    %3455 = vmatpush.xpose.msra.mxu0 0.0
    %v3456 = vand.u32 %v3308, 4294901760
    %v3457 = vsub.f32 %v3308, %v3456
    %v3458 = vand.u32 %v3457, 4294901760
    %3459 = vmatpush.xpose.msra.mxu0 %v3458
    %v3460 = vand.u32 %v3305, 4294901760
    %v3461 = vsub.f32 %v3305, %v3460
    %v3462 = vand.u32 %v3461, 4294901760
    %3463 = vmatpush.xpose.msra.mxu0 %v3462
    %v3464 = vand.u32 %v3299, 4294901760
    %3465 = vmatmul.f32.gmra.mxu0 %v3464
    %v3466 = vpop.f32.mrf.mxu0
    %v3467 = vadd.f32 %v3434, %v3466
    %v3468 = vand.u32 %v3302, 4294901760
    %3469 = vmatmul.f32.gmra.mxu0 %v3468
    %v3470 = vpop.f32.mrf.mxu0
    %v3471 = vadd.f32 %v3440, %v3470
    %3472 = vdwg.mxu0
    %3473 = vmatpush.xpose.msra.mxu0 0.0
    %3474 = vmatpush.xpose.msra.mxu0 0.0
    %3475 = vmatpush.xpose.msra.mxu0 0.0
    %3476 = vmatpush.xpose.msra.mxu0 0.0
    %3477 = vmatpush.xpose.msra.mxu0 0.0
    %3478 = vmatpush.xpose.msra.mxu0 0.0
    %3479 = vmatpush.xpose.msra.mxu0 0.0
    %3480 = vmatpush.xpose.msra.mxu0 0.0
    %3481 = vmatpush.xpose.msra.mxu0 0.0
    %3482 = vmatpush.xpose.msra.mxu0 0.0
    %3483 = vmatpush.xpose.msra.mxu0 0.0
    %3484 = vmatpush.xpose.msra.mxu0 0.0
    %3485 = vmatpush.xpose.msra.mxu0 0.0
    %3486 = vmatpush.xpose.msra.mxu0 0.0
    %v3487 = vand.u32 %v3308, 4294901760
    %3488 = vmatpush.xpose.msra.mxu0 %v3487
    %v3489 = vand.u32 %v3305, 4294901760
    %3490 = vmatpush.xpose.msra.mxu0 %v3489
    %v3491 = vand.u32 %v3299, 4294901760
    %3492 = vmatmul.f32.gmra.mxu0 %v3491
    %v3493 = vpop.f32.mrf.mxu0
    %v3494 = vadd.f32 %v3467, %v3493
    %v3495 = vand.u32 %v3302, 4294901760
    %3496 = vmatmul.f32.gmra.mxu0 %v3495
    %v3497 = vpop.f32.mrf.mxu0
    %v3498 = vadd.f32 %v3471, %v3497
    %3499 = vdwg.mxu0
    %vm3500 = vcmask 130048
    %v3501 = vsel %vm3500, %v2888, -inf
    %3502 = vmax.xlane.f32.xlu0 %v3501
    %v3503 = vpop.xlane.xlu0 %3502
    %v3504 = vsel %vm3500, %v2892, -inf
    %3505 = vmax.xlane.f32.xlu0 %v3504
    %v3506 = vpop.xlane.xlu0 %3505
    %v3507 = vsel %vm3500, %v3090, -inf
    %3508 = vmax.xlane.f32.xlu0 %v3507
    %v3509 = vpop.xlane.xlu0 %3508
    %v3510 = vsel %vm3500, %v3094, -inf
    %3511 = vmax.xlane.f32.xlu0 %v3510
    %v3512 = vpop.xlane.xlu0 %3511
    %v3513 = vsel %vm3500, %v3292, -inf
    %3514 = vmax.xlane.f32.xlu0 %v3513
    %v3515 = vpop.xlane.xlu0 %3514
    %v3516 = vsel %vm3500, %v3296, -inf
    %3517 = vmax.xlane.f32.xlu0 %v3516
    %v3518 = vpop.xlane.xlu0 %3517
    %v3519 = vsel %vm3500, %v3494, -inf
    %3520 = vmax.xlane.f32.xlu0 %v3519
    %v3521 = vpop.xlane.xlu0 %3520
    %v3522 = vsel %vm3500, %v3498, -inf
    %3523 = vmax.xlane.f32.xlu0 %v3522
    %v3524 = vpop.xlane.xlu0 %3523
    %v3525 = vsub.f32 %v2888, %v3503
    %v3526 = vsub.f32 %v2892, %v3506
    %v3527 = vsub.f32 %v3090, %v3509
    %v3528 = vsub.f32 %v3094, %v3512
    %v3529 = vsub.f32 %v3292, %v3515
    %v3530 = vsub.f32 %v3296, %v3518
    %v3531 = vsub.f32 %v3494, %v3521
    %v3532 = vsub.f32 %v3498, %v3524
    %v3533 = vmul.f32 %v3525, 1.442695
    %v3534 = vpow.pop %v3533
    %v3535 = vmul.f32 %v3526, 1.442695
    %v3536 = vpow.pop %v3535
    %v3537 = vmul.f32 %v3527, 1.442695
    %v3538 = vpow.pop %v3537
    %v3539 = vmul.f32 %v3528, 1.442695
    %v3540 = vpow.pop %v3539
    %v3541 = vmul.f32 %v3529, 1.442695
    %v3542 = vpow.pop %v3541
    %v3543 = vmul.f32 %v3530, 1.442695
    %v3544 = vpow.pop %v3543
    %v3545 = vmul.f32 %v3531, 1.442695
    %v3546 = vpow.pop %v3545
    %v3547 = vmul.f32 %v3532, 1.442695
    %v3548 = vpow.pop %v3547
    %v3549 = vsel %vm3500, %v3534, 0.0
    %3550 = vadd.xlane.f32.xlu0 %v3549
    %v3551 = vpop.xlane.xlu0 %3550
    %v3552 = vsel %vm3500, %v3536, 0.0
    %3553 = vadd.xlane.f32.xlu0 %v3552
    %v3554 = vpop.xlane.xlu0 %3553
    %v3555 = vsel %vm3500, %v3538, 0.0
    %3556 = vadd.xlane.f32.xlu0 %v3555
    %v3557 = vpop.xlane.xlu0 %3556
    %v3558 = vsel %vm3500, %v3540, 0.0
    %3559 = vadd.xlane.f32.xlu0 %v3558
    %v3560 = vpop.xlane.xlu0 %3559
    %v3561 = vsel %vm3500, %v3542, 0.0
    %3562 = vadd.xlane.f32.xlu0 %v3561
    %v3563 = vpop.xlane.xlu0 %3562
    %v3564 = vsel %vm3500, %v3544, 0.0
    %3565 = vadd.xlane.f32.xlu0 %v3564
    %v3566 = vpop.xlane.xlu0 %3565
    %v3567 = vsel %vm3500, %v3546, 0.0
    %3568 = vadd.xlane.f32.xlu0 %v3567
    %v3569 = vpop.xlane.xlu0 %3568
    %v3570 = vsel %vm3500, %v3548, 0.0
    %3571 = vadd.xlane.f32.xlu0 %v3570
    %v3572 = vpop.xlane.xlu0 %3571
    %v3573 = vrcp.pop %v3551
    %v3574 = vmul.f32 %v3551, %v3573
    %v3575 = vsub.f32 1.0, %v3574
    %v3576 = vmul.f32 %v3573, %v3575
    %v3577 = vadd.f32 %v3573, %v3576
    %vm3578 = vweird.f32 %v3551
    %vm3579 = vweird.f32 %v3573
    %vm3580 = vmor %vm3578, %vm3579
    %v3581 = vsel %vm3580, %v3573, %v3577
    %v3582 = vand.u32 2147483647, %v3551
    %vm3583 = vcmp.eq.f32.partialorder %v3582, 8.507059e+37
    %v3584 = vand.u32 %v3551, 2147483648
    %v3585 = vor.u32 1.1754944e-38, %v3584
    %v3586 = vsel %vm3583, %v3585, %v3581
    %v3587 = vmul.f32 %v3534, %v3586
    %v3588 = vrcp.pop %v3554
    %v3589 = vmul.f32 %v3554, %v3588
    %v3590 = vsub.f32 1.0, %v3589
    %v3591 = vmul.f32 %v3588, %v3590
    %v3592 = vadd.f32 %v3588, %v3591
    %vm3593 = vweird.f32 %v3554
    %vm3594 = vweird.f32 %v3588
    %vm3595 = vmor %vm3593, %vm3594
    %v3596 = vsel %vm3595, %v3588, %v3592
    %v3597 = vand.u32 2147483647, %v3554
    %vm3598 = vcmp.eq.f32.partialorder %v3597, 8.507059e+37
    %v3599 = vand.u32 %v3554, 2147483648
    %v3600 = vor.u32 1.1754944e-38, %v3599
    %v3601 = vsel %vm3598, %v3600, %v3596
    %v3602 = vmul.f32 %v3536, %v3601
    %v3603 = vrcp.pop %v3557
    %v3604 = vmul.f32 %v3557, %v3603
    %v3605 = vsub.f32 1.0, %v3604
    %v3606 = vmul.f32 %v3603, %v3605
    %v3607 = vadd.f32 %v3603, %v3606
    %vm3608 = vweird.f32 %v3557
    %vm3609 = vweird.f32 %v3603
    %vm3610 = vmor %vm3608, %vm3609
    %v3611 = vsel %vm3610, %v3603, %v3607
    %v3612 = vand.u32 2147483647, %v3557
    %vm3613 = vcmp.eq.f32.partialorder %v3612, 8.507059e+37
    %v3614 = vand.u32 %v3557, 2147483648
    %v3615 = vor.u32 1.1754944e-38, %v3614
    %v3616 = vsel %vm3613, %v3615, %v3611
    %v3617 = vmul.f32 %v3538, %v3616
    %v3618 = vrcp.pop %v3560
    %v3619 = vmul.f32 %v3560, %v3618
    %v3620 = vsub.f32 1.0, %v3619
    %v3621 = vmul.f32 %v3618, %v3620
    %v3622 = vadd.f32 %v3618, %v3621
    %vm3623 = vweird.f32 %v3560
    %vm3624 = vweird.f32 %v3618
    %vm3625 = vmor %vm3623, %vm3624
    %v3626 = vsel %vm3625, %v3618, %v3622
    %v3627 = vand.u32 2147483647, %v3560
    %vm3628 = vcmp.eq.f32.partialorder %v3627, 8.507059e+37
    %v3629 = vand.u32 %v3560, 2147483648
    %v3630 = vor.u32 1.1754944e-38, %v3629
    %v3631 = vsel %vm3628, %v3630, %v3626
    %v3632 = vmul.f32 %v3540, %v3631
    %v3633 = vrcp.pop %v3563
    %v3634 = vmul.f32 %v3563, %v3633
    %v3635 = vsub.f32 1.0, %v3634
    %v3636 = vmul.f32 %v3633, %v3635
    %v3637 = vadd.f32 %v3633, %v3636
    %vm3638 = vweird.f32 %v3563
    %vm3639 = vweird.f32 %v3633
    %vm3640 = vmor %vm3638, %vm3639
    %v3641 = vsel %vm3640, %v3633, %v3637
    %v3642 = vand.u32 2147483647, %v3563
    %vm3643 = vcmp.eq.f32.partialorder %v3642, 8.507059e+37
    %v3644 = vand.u32 %v3563, 2147483648
    %v3645 = vor.u32 1.1754944e-38, %v3644
    %v3646 = vsel %vm3643, %v3645, %v3641
    %v3647 = vmul.f32 %v3542, %v3646
    %v3648 = vrcp.pop %v3566
    %v3649 = vmul.f32 %v3566, %v3648
    %v3650 = vsub.f32 1.0, %v3649
    %v3651 = vmul.f32 %v3648, %v3650
    %v3652 = vadd.f32 %v3648, %v3651
    %vm3653 = vweird.f32 %v3566
    %vm3654 = vweird.f32 %v3648
    %vm3655 = vmor %vm3653, %vm3654
    %v3656 = vsel %vm3655, %v3648, %v3652
    %v3657 = vand.u32 2147483647, %v3566
    %vm3658 = vcmp.eq.f32.partialorder %v3657, 8.507059e+37
    %v3659 = vand.u32 %v3566, 2147483648
    %v3660 = vor.u32 1.1754944e-38, %v3659
    %v3661 = vsel %vm3658, %v3660, %v3656
    %v3662 = vmul.f32 %v3544, %v3661
    %v3663 = vrcp.pop %v3569
    %v3664 = vmul.f32 %v3569, %v3663
    %v3665 = vsub.f32 1.0, %v3664
    %v3666 = vmul.f32 %v3663, %v3665
    %v3667 = vadd.f32 %v3663, %v3666
    %vm3668 = vweird.f32 %v3569
    %vm3669 = vweird.f32 %v3663
    %vm3670 = vmor %vm3668, %vm3669
    %v3671 = vsel %vm3670, %v3663, %v3667
    %v3672 = vand.u32 2147483647, %v3569
    %vm3673 = vcmp.eq.f32.partialorder %v3672, 8.507059e+37
    %v3674 = vand.u32 %v3569, 2147483648
    %v3675 = vor.u32 1.1754944e-38, %v3674
    %v3676 = vsel %vm3673, %v3675, %v3671
    %v3677 = vmul.f32 %v3546, %v3676
    %v3678 = vrcp.pop %v3572
    %v3679 = vmul.f32 %v3572, %v3678
    %v3680 = vsub.f32 1.0, %v3679
    %v3681 = vmul.f32 %v3678, %v3680
    %v3682 = vadd.f32 %v3678, %v3681
    %vm3683 = vweird.f32 %v3572
    %vm3684 = vweird.f32 %v3678
    %vm3685 = vmor %vm3683, %vm3684
    %v3686 = vsel %vm3685, %v3678, %v3682
    %v3687 = vand.u32 2147483647, %v3572
    %vm3688 = vcmp.eq.f32.partialorder %v3687, 8.507059e+37
    %v3689 = vand.u32 %v3572, 2147483648
    %v3690 = vor.u32 1.1754944e-38, %v3689
    %v3691 = vsel %vm3688, %v3690, %v3686
    %v3692 = vmul.f32 %v3548, %v3691
    %v3694 = vsel %vm3500, %v3587, 0
    %v3697 = vsel %vm3500, %v3602, 0
    %3699 = vmatpush.msra.mxu0 0.0
    %3700 = vmatpush.msra.mxu0 0.0
    %3701 = vmatpush.msra.mxu0 0.0
    %3702 = vmatpush.msra.mxu0 0.0
    %3703 = vmatpush.msra.mxu0 0.0
    %3704 = vmatpush.msra.mxu0 0.0
    %3705 = vmatpush.msra.mxu0 0.0
    %3706 = vmatpush.msra.mxu0 0.0
    %3707 = vmatpush.msra.mxu0 0.0
    %3708 = vmatpush.msra.mxu0 0.0
    %3709 = vmatpush.msra.mxu0 0.0
    %3710 = vmatpush.msra.mxu0 0.0
    %3711 = vmatpush.msra.mxu0 0.0
    %3712 = vmatpush.msra.mxu0 0.0
    %v3713 = vand.u32 %v2039, 4294901760
    %3714 = vmatpush.msra.mxu0 %v3713
    %v3715 = vand.u32 %v2035, 4294901760
    %3716 = vmatpush.msra.mxu0 %v3715
    %v3717 = vand.u32 %v3694, 4294901760
    %v3718 = vsub.f32 %v3694, %v3717
    %v3719 = vand.u32 %v3718, 4294901760
    %v3720 = vsub.f32 %v3718, %v3719
    %v3721 = vand.u32 %v3720, 4294901760
    %3722 = vmatmul.f32.gmra.mxu0 %v3721
    %v3723 = vpop.f32.mrf.mxu0
    %v3724 = vadd.f32 0.0, %v3723
    %v3725 = vand.u32 %v3697, 4294901760
    %v3726 = vsub.f32 %v3697, %v3725
    %v3727 = vand.u32 %v3726, 4294901760
    %v3728 = vsub.f32 %v3726, %v3727
    %v3729 = vand.u32 %v3728, 4294901760
    %3730 = vmatmul.f32.gmra.mxu0 %v3729
    %v3731 = vpop.f32.mrf.mxu0
    %v3732 = vadd.f32 0.0, %v3731
    %3733 = vdwg.mxu0
    %3734 = vmatpush.msra.mxu0 0.0
    %3735 = vmatpush.msra.mxu0 0.0
    %3736 = vmatpush.msra.mxu0 0.0
    %3737 = vmatpush.msra.mxu0 0.0
    %3738 = vmatpush.msra.mxu0 0.0
    %3739 = vmatpush.msra.mxu0 0.0
    %3740 = vmatpush.msra.mxu0 0.0
    %3741 = vmatpush.msra.mxu0 0.0
    %3742 = vmatpush.msra.mxu0 0.0
    %3743 = vmatpush.msra.mxu0 0.0
    %3744 = vmatpush.msra.mxu0 0.0
    %3745 = vmatpush.msra.mxu0 0.0
    %3746 = vmatpush.msra.mxu0 0.0
    %3747 = vmatpush.msra.mxu0 0.0
    %v3748 = vand.u32 %v2039, 4294901760
    %v3749 = vsub.f32 %v2039, %v3748
    %v3750 = vand.u32 %v3749, 4294901760
    %v3751 = vsub.f32 %v3749, %v3750
    %v3752 = vand.u32 %v3751, 4294901760
    %3753 = vmatpush.msra.mxu0 %v3752
    %v3754 = vand.u32 %v2035, 4294901760
    %v3755 = vsub.f32 %v2035, %v3754
    %v3756 = vand.u32 %v3755, 4294901760
    %v3757 = vsub.f32 %v3755, %v3756
    %v3758 = vand.u32 %v3757, 4294901760
    %3759 = vmatpush.msra.mxu0 %v3758
    %v3760 = vand.u32 %v3694, 4294901760
    %3761 = vmatmul.f32.gmra.mxu0 %v3760
    %v3762 = vpop.f32.mrf.mxu0
    %v3763 = vadd.f32 %v3724, %v3762
    %v3764 = vand.u32 %v3697, 4294901760
    %3765 = vmatmul.f32.gmra.mxu0 %v3764
    %v3766 = vpop.f32.mrf.mxu0
    %v3767 = vadd.f32 %v3732, %v3766
    %3768 = vdwg.mxu0
    %3769 = vmatpush.msra.mxu0 0.0
    %3770 = vmatpush.msra.mxu0 0.0
    %3771 = vmatpush.msra.mxu0 0.0
    %3772 = vmatpush.msra.mxu0 0.0
    %3773 = vmatpush.msra.mxu0 0.0
    %3774 = vmatpush.msra.mxu0 0.0
    %3775 = vmatpush.msra.mxu0 0.0
    %3776 = vmatpush.msra.mxu0 0.0
    %3777 = vmatpush.msra.mxu0 0.0
    %3778 = vmatpush.msra.mxu0 0.0
    %3779 = vmatpush.msra.mxu0 0.0
    %3780 = vmatpush.msra.mxu0 0.0
    %3781 = vmatpush.msra.mxu0 0.0
    %3782 = vmatpush.msra.mxu0 0.0
    %v3783 = vand.u32 %v2039, 4294901760
    %v3784 = vsub.f32 %v2039, %v3783
    %3785 = vmatpush.msra.mxu0 %v3784
    %v3786 = vand.u32 %v2035, 4294901760
    %v3787 = vsub.f32 %v2035, %v3786
    %3788 = vmatpush.msra.mxu0 %v3787
    %v3789 = vand.u32 %v3694, 4294901760
    %v3790 = vsub.f32 %v3694, %v3789
    %3791 = vmatmul.f32.gmra.mxu0 %v3790
    %v3792 = vpop.f32.mrf.mxu0
    %v3793 = vadd.f32 %v3763, %v3792
    %v3794 = vand.u32 %v3697, 4294901760
    %v3795 = vsub.f32 %v3697, %v3794
    %3796 = vmatmul.f32.gmra.mxu0 %v3795
    %v3797 = vpop.f32.mrf.mxu0
    %v3798 = vadd.f32 %v3767, %v3797
    %3799 = vdwg.mxu0
    %3800 = vmatpush.msra.mxu0 0.0
    %3801 = vmatpush.msra.mxu0 0.0
    %3802 = vmatpush.msra.mxu0 0.0
    %3803 = vmatpush.msra.mxu0 0.0
    %3804 = vmatpush.msra.mxu0 0.0
    %3805 = vmatpush.msra.mxu0 0.0
    %3806 = vmatpush.msra.mxu0 0.0
    %3807 = vmatpush.msra.mxu0 0.0
    %3808 = vmatpush.msra.mxu0 0.0
    %3809 = vmatpush.msra.mxu0 0.0
    %3810 = vmatpush.msra.mxu0 0.0
    %3811 = vmatpush.msra.mxu0 0.0
    %3812 = vmatpush.msra.mxu0 0.0
    %3813 = vmatpush.msra.mxu0 0.0
    %v3814 = vand.u32 %v2039, 4294901760
    %3815 = vmatpush.msra.mxu0 %v3814
    %v3816 = vand.u32 %v2035, 4294901760
    %3817 = vmatpush.msra.mxu0 %v3816
    %v3818 = vand.u32 %v3694, 4294901760
    %v3819 = vsub.f32 %v3694, %v3818
    %v3820 = vand.u32 %v3819, 4294901760
    %3821 = vmatmul.f32.gmra.mxu0 %v3820
    %v3822 = vpop.f32.mrf.mxu0
    %v3823 = vadd.f32 %v3793, %v3822
    %v3824 = vand.u32 %v3697, 4294901760
    %v3825 = vsub.f32 %v3697, %v3824
    %v3826 = vand.u32 %v3825, 4294901760
    %3827 = vmatmul.f32.gmra.mxu0 %v3826
    %v3828 = vpop.f32.mrf.mxu0
    %v3829 = vadd.f32 %v3798, %v3828
    %3830 = vdwg.mxu0
    %3831 = vmatpush.msra.mxu0 0.0
    %3832 = vmatpush.msra.mxu0 0.0
    %3833 = vmatpush.msra.mxu0 0.0
    %3834 = vmatpush.msra.mxu0 0.0
    %3835 = vmatpush.msra.mxu0 0.0
    %3836 = vmatpush.msra.mxu0 0.0
    %3837 = vmatpush.msra.mxu0 0.0
    %3838 = vmatpush.msra.mxu0 0.0
    %3839 = vmatpush.msra.mxu0 0.0
    %3840 = vmatpush.msra.mxu0 0.0
    %3841 = vmatpush.msra.mxu0 0.0
    %3842 = vmatpush.msra.mxu0 0.0
    %3843 = vmatpush.msra.mxu0 0.0
    %3844 = vmatpush.msra.mxu0 0.0
    %v3845 = vand.u32 %v2039, 4294901760
    %v3846 = vsub.f32 %v2039, %v3845
    %v3847 = vand.u32 %v3846, 4294901760
    %3848 = vmatpush.msra.mxu0 %v3847
    %v3849 = vand.u32 %v2035, 4294901760
    %v3850 = vsub.f32 %v2035, %v3849
    %v3851 = vand.u32 %v3850, 4294901760
    %3852 = vmatpush.msra.mxu0 %v3851
    %v3853 = vand.u32 %v3694, 4294901760
    %3854 = vmatmul.f32.gmra.mxu0 %v3853
    %v3855 = vpop.f32.mrf.mxu0
    %v3856 = vadd.f32 %v3823, %v3855
    %v3857 = vand.u32 %v3697, 4294901760
    %3858 = vmatmul.f32.gmra.mxu0 %v3857
    %v3859 = vpop.f32.mrf.mxu0
    %v3860 = vadd.f32 %v3829, %v3859
    %3861 = vdwg.mxu0
    %3862 = vmatpush.msra.mxu0 0.0
    %3863 = vmatpush.msra.mxu0 0.0
    %3864 = vmatpush.msra.mxu0 0.0
    %3865 = vmatpush.msra.mxu0 0.0
    %3866 = vmatpush.msra.mxu0 0.0
    %3867 = vmatpush.msra.mxu0 0.0
    %3868 = vmatpush.msra.mxu0 0.0
    %3869 = vmatpush.msra.mxu0 0.0
    %3870 = vmatpush.msra.mxu0 0.0
    %3871 = vmatpush.msra.mxu0 0.0
    %3872 = vmatpush.msra.mxu0 0.0
    %3873 = vmatpush.msra.mxu0 0.0
    %3874 = vmatpush.msra.mxu0 0.0
    %3875 = vmatpush.msra.mxu0 0.0
    %v3876 = vand.u32 %v2039, 4294901760
    %3877 = vmatpush.msra.mxu0 %v3876
    %v3878 = vand.u32 %v2035, 4294901760
    %3879 = vmatpush.msra.mxu0 %v3878
    %v3880 = vand.u32 %v3694, 4294901760
    %3881 = vmatmul.f32.gmra.mxu0 %v3880
    %v3882 = vpop.f32.mrf.mxu0
    %v3883 = vadd.f32 %v3856, %v3882
    %v3884 = vand.u32 %v3697, 4294901760
    %3885 = vmatmul.f32.gmra.mxu0 %v3884
    %v3886 = vpop.f32.mrf.mxu0
    %v3887 = vadd.f32 %v3860, %v3886
    %3888 = vdwg.mxu0
    %v3890 = vsel %vm3500, %v3617, 0
    %v3893 = vsel %vm3500, %v3632, 0
    %3895 = vmatpush.msra.mxu0 0.0
    %3896 = vmatpush.msra.mxu0 0.0
    %3897 = vmatpush.msra.mxu0 0.0
    %3898 = vmatpush.msra.mxu0 0.0
    %3899 = vmatpush.msra.mxu0 0.0
    %3900 = vmatpush.msra.mxu0 0.0
    %3901 = vmatpush.msra.mxu0 0.0
    %3902 = vmatpush.msra.mxu0 0.0
    %3903 = vmatpush.msra.mxu0 0.0
    %3904 = vmatpush.msra.mxu0 0.0
    %3905 = vmatpush.msra.mxu0 0.0
    %3906 = vmatpush.msra.mxu0 0.0
    %3907 = vmatpush.msra.mxu0 0.0
    %3908 = vmatpush.msra.mxu0 0.0
    %v3909 = vand.u32 %v2255, 4294901760
    %3910 = vmatpush.msra.mxu0 %v3909
    %v3911 = vand.u32 %v2251, 4294901760
    %3912 = vmatpush.msra.mxu0 %v3911
    %v3913 = vand.u32 %v3890, 4294901760
    %v3914 = vsub.f32 %v3890, %v3913
    %v3915 = vand.u32 %v3914, 4294901760
    %v3916 = vsub.f32 %v3914, %v3915
    %v3917 = vand.u32 %v3916, 4294901760
    %3918 = vmatmul.f32.gmra.mxu0 %v3917
    %v3919 = vpop.f32.mrf.mxu0
    %v3920 = vadd.f32 0.0, %v3919
    %v3921 = vand.u32 %v3893, 4294901760
    %v3922 = vsub.f32 %v3893, %v3921
    %v3923 = vand.u32 %v3922, 4294901760
    %v3924 = vsub.f32 %v3922, %v3923
    %v3925 = vand.u32 %v3924, 4294901760
    %3926 = vmatmul.f32.gmra.mxu0 %v3925
    %v3927 = vpop.f32.mrf.mxu0
    %v3928 = vadd.f32 0.0, %v3927
    %3929 = vdwg.mxu0
    %3930 = vmatpush.msra.mxu0 0.0
    %3931 = vmatpush.msra.mxu0 0.0
    %3932 = vmatpush.msra.mxu0 0.0
    %3933 = vmatpush.msra.mxu0 0.0
    %3934 = vmatpush.msra.mxu0 0.0
    %3935 = vmatpush.msra.mxu0 0.0
    %3936 = vmatpush.msra.mxu0 0.0
    %3937 = vmatpush.msra.mxu0 0.0
    %3938 = vmatpush.msra.mxu0 0.0
    %3939 = vmatpush.msra.mxu0 0.0
    %3940 = vmatpush.msra.mxu0 0.0
    %3941 = vmatpush.msra.mxu0 0.0
    %3942 = vmatpush.msra.mxu0 0.0
    %3943 = vmatpush.msra.mxu0 0.0
    %v3944 = vand.u32 %v2255, 4294901760
    %v3945 = vsub.f32 %v2255, %v3944
    %v3946 = vand.u32 %v3945, 4294901760
    %v3947 = vsub.f32 %v3945, %v3946
    %v3948 = vand.u32 %v3947, 4294901760
    %3949 = vmatpush.msra.mxu0 %v3948
    %v3950 = vand.u32 %v2251, 4294901760
    %v3951 = vsub.f32 %v2251, %v3950
    %v3952 = vand.u32 %v3951, 4294901760
    %v3953 = vsub.f32 %v3951, %v3952
    %v3954 = vand.u32 %v3953, 4294901760
    %3955 = vmatpush.msra.mxu0 %v3954
    %v3956 = vand.u32 %v3890, 4294901760
    %3957 = vmatmul.f32.gmra.mxu0 %v3956
    %v3958 = vpop.f32.mrf.mxu0
    %v3959 = vadd.f32 %v3920, %v3958
    %v3960 = vand.u32 %v3893, 4294901760
    %3961 = vmatmul.f32.gmra.mxu0 %v3960
    %v3962 = vpop.f32.mrf.mxu0
    %v3963 = vadd.f32 %v3928, %v3962
    %3964 = vdwg.mxu0
    %3965 = vmatpush.msra.mxu0 0.0
    %3966 = vmatpush.msra.mxu0 0.0
    %3967 = vmatpush.msra.mxu0 0.0
    %3968 = vmatpush.msra.mxu0 0.0
    %3969 = vmatpush.msra.mxu0 0.0
    %3970 = vmatpush.msra.mxu0 0.0
    %3971 = vmatpush.msra.mxu0 0.0
    %3972 = vmatpush.msra.mxu0 0.0
    %3973 = vmatpush.msra.mxu0 0.0
    %3974 = vmatpush.msra.mxu0 0.0
    %3975 = vmatpush.msra.mxu0 0.0
    %3976 = vmatpush.msra.mxu0 0.0
    %3977 = vmatpush.msra.mxu0 0.0
    %3978 = vmatpush.msra.mxu0 0.0
    %v3979 = vand.u32 %v2255, 4294901760
    %v3980 = vsub.f32 %v2255, %v3979
    %3981 = vmatpush.msra.mxu0 %v3980
    %v3982 = vand.u32 %v2251, 4294901760
    %v3983 = vsub.f32 %v2251, %v3982
    %3984 = vmatpush.msra.mxu0 %v3983
    %v3985 = vand.u32 %v3890, 4294901760
    %v3986 = vsub.f32 %v3890, %v3985
    %3987 = vmatmul.f32.gmra.mxu0 %v3986
    %v3988 = vpop.f32.mrf.mxu0
    %v3989 = vadd.f32 %v3959, %v3988
    %v3990 = vand.u32 %v3893, 4294901760
    %v3991 = vsub.f32 %v3893, %v3990
    %3992 = vmatmul.f32.gmra.mxu0 %v3991
    %v3993 = vpop.f32.mrf.mxu0
    %v3994 = vadd.f32 %v3963, %v3993
    %3995 = vdwg.mxu0
    %3996 = vmatpush.msra.mxu0 0.0
    %3997 = vmatpush.msra.mxu0 0.0
    %3998 = vmatpush.msra.mxu0 0.0
    %3999 = vmatpush.msra.mxu0 0.0
    %4000 = vmatpush.msra.mxu0 0.0
    %4001 = vmatpush.msra.mxu0 0.0
    %4002 = vmatpush.msra.mxu0 0.0
    %4003 = vmatpush.msra.mxu0 0.0
    %4004 = vmatpush.msra.mxu0 0.0
    %4005 = vmatpush.msra.mxu0 0.0
    %4006 = vmatpush.msra.mxu0 0.0
    %4007 = vmatpush.msra.mxu0 0.0
    %4008 = vmatpush.msra.mxu0 0.0
    %4009 = vmatpush.msra.mxu0 0.0
    %v4010 = vand.u32 %v2255, 4294901760
    %4011 = vmatpush.msra.mxu0 %v4010
    %v4012 = vand.u32 %v2251, 4294901760
    %4013 = vmatpush.msra.mxu0 %v4012
    %v4014 = vand.u32 %v3890, 4294901760
    %v4015 = vsub.f32 %v3890, %v4014
    %v4016 = vand.u32 %v4015, 4294901760
    %4017 = vmatmul.f32.gmra.mxu0 %v4016
    %v4018 = vpop.f32.mrf.mxu0
    %v4019 = vadd.f32 %v3989, %v4018
    %v4020 = vand.u32 %v3893, 4294901760
    %v4021 = vsub.f32 %v3893, %v4020
    %v4022 = vand.u32 %v4021, 4294901760
    %4023 = vmatmul.f32.gmra.mxu0 %v4022
    %v4024 = vpop.f32.mrf.mxu0
    %v4025 = vadd.f32 %v3994, %v4024
    %4026 = vdwg.mxu0
    %4027 = vmatpush.msra.mxu0 0.0
    %4028 = vmatpush.msra.mxu0 0.0
    %4029 = vmatpush.msra.mxu0 0.0
    %4030 = vmatpush.msra.mxu0 0.0
    %4031 = vmatpush.msra.mxu0 0.0
    %4032 = vmatpush.msra.mxu0 0.0
    %4033 = vmatpush.msra.mxu0 0.0
    %4034 = vmatpush.msra.mxu0 0.0
    %4035 = vmatpush.msra.mxu0 0.0
    %4036 = vmatpush.msra.mxu0 0.0
    %4037 = vmatpush.msra.mxu0 0.0
    %4038 = vmatpush.msra.mxu0 0.0
    %4039 = vmatpush.msra.mxu0 0.0
    %4040 = vmatpush.msra.mxu0 0.0
    %v4041 = vand.u32 %v2255, 4294901760
    %v4042 = vsub.f32 %v2255, %v4041
    %v4043 = vand.u32 %v4042, 4294901760
    %4044 = vmatpush.msra.mxu0 %v4043
    %v4045 = vand.u32 %v2251, 4294901760
    %v4046 = vsub.f32 %v2251, %v4045
    %v4047 = vand.u32 %v4046, 4294901760
    %4048 = vmatpush.msra.mxu0 %v4047
    %v4049 = vand.u32 %v3890, 4294901760
    %4050 = vmatmul.f32.gmra.mxu0 %v4049
    %v4051 = vpop.f32.mrf.mxu0
    %v4052 = vadd.f32 %v4019, %v4051
    %v4053 = vand.u32 %v3893, 4294901760
    %4054 = vmatmul.f32.gmra.mxu0 %v4053
    %v4055 = vpop.f32.mrf.mxu0
    %v4056 = vadd.f32 %v4025, %v4055
    %4057 = vdwg.mxu0
    %4058 = vmatpush.msra.mxu0 0.0
    %4059 = vmatpush.msra.mxu0 0.0
    %4060 = vmatpush.msra.mxu0 0.0
    %4061 = vmatpush.msra.mxu0 0.0
    %4062 = vmatpush.msra.mxu0 0.0
    %4063 = vmatpush.msra.mxu0 0.0
    %4064 = vmatpush.msra.mxu0 0.0
    %4065 = vmatpush.msra.mxu0 0.0
    %4066 = vmatpush.msra.mxu0 0.0
    %4067 = vmatpush.msra.mxu0 0.0
    %4068 = vmatpush.msra.mxu0 0.0
    %4069 = vmatpush.msra.mxu0 0.0
    %4070 = vmatpush.msra.mxu0 0.0
    %4071 = vmatpush.msra.mxu0 0.0
    %v4072 = vand.u32 %v2255, 4294901760
    %4073 = vmatpush.msra.mxu0 %v4072
    %v4074 = vand.u32 %v2251, 4294901760
    %4075 = vmatpush.msra.mxu0 %v4074
    %v4076 = vand.u32 %v3890, 4294901760
    %4077 = vmatmul.f32.gmra.mxu0 %v4076
    %v4078 = vpop.f32.mrf.mxu0
    %v4079 = vadd.f32 %v4052, %v4078
    %v4080 = vand.u32 %v3893, 4294901760
    %4081 = vmatmul.f32.gmra.mxu0 %v4080
    %v4082 = vpop.f32.mrf.mxu0
    %v4083 = vadd.f32 %v4056, %v4082
    %4084 = vdwg.mxu0
    %v4086 = vsel %vm3500, %v3647, 0
    %v4089 = vsel %vm3500, %v3662, 0
    %4091 = vmatpush.msra.mxu0 0.0
    %4092 = vmatpush.msra.mxu0 0.0
    %4093 = vmatpush.msra.mxu0 0.0
    %4094 = vmatpush.msra.mxu0 0.0
    %4095 = vmatpush.msra.mxu0 0.0
    %4096 = vmatpush.msra.mxu0 0.0
    %4097 = vmatpush.msra.mxu0 0.0
    %4098 = vmatpush.msra.mxu0 0.0
    %4099 = vmatpush.msra.mxu0 0.0
    %4100 = vmatpush.msra.mxu0 0.0
    %4101 = vmatpush.msra.mxu0 0.0
    %4102 = vmatpush.msra.mxu0 0.0
    %4103 = vmatpush.msra.mxu0 0.0
    %4104 = vmatpush.msra.mxu0 0.0
    %v4105 = vand.u32 %v2471, 4294901760
    %4106 = vmatpush.msra.mxu0 %v4105
    %v4107 = vand.u32 %v2467, 4294901760
    %4108 = vmatpush.msra.mxu0 %v4107
    %v4109 = vand.u32 %v4086, 4294901760
    %v4110 = vsub.f32 %v4086, %v4109
    %v4111 = vand.u32 %v4110, 4294901760
    %v4112 = vsub.f32 %v4110, %v4111
    %v4113 = vand.u32 %v4112, 4294901760
    %4114 = vmatmul.f32.gmra.mxu0 %v4113
    %v4115 = vpop.f32.mrf.mxu0
    %v4116 = vadd.f32 0.0, %v4115
    %v4117 = vand.u32 %v4089, 4294901760
    %v4118 = vsub.f32 %v4089, %v4117
    %v4119 = vand.u32 %v4118, 4294901760
    %v4120 = vsub.f32 %v4118, %v4119
    %v4121 = vand.u32 %v4120, 4294901760
    %4122 = vmatmul.f32.gmra.mxu0 %v4121
    %v4123 = vpop.f32.mrf.mxu0
    %v4124 = vadd.f32 0.0, %v4123
    %4125 = vdwg.mxu0
    %4126 = vmatpush.msra.mxu0 0.0
    %4127 = vmatpush.msra.mxu0 0.0
    %4128 = vmatpush.msra.mxu0 0.0
    %4129 = vmatpush.msra.mxu0 0.0
    %4130 = vmatpush.msra.mxu0 0.0
    %4131 = vmatpush.msra.mxu0 0.0
    %4132 = vmatpush.msra.mxu0 0.0
    %4133 = vmatpush.msra.mxu0 0.0
    %4134 = vmatpush.msra.mxu0 0.0
    %4135 = vmatpush.msra.mxu0 0.0
    %4136 = vmatpush.msra.mxu0 0.0
    %4137 = vmatpush.msra.mxu0 0.0
    %4138 = vmatpush.msra.mxu0 0.0
    %4139 = vmatpush.msra.mxu0 0.0
    %v4140 = vand.u32 %v2471, 4294901760
    %v4141 = vsub.f32 %v2471, %v4140
    %v4142 = vand.u32 %v4141, 4294901760
    %v4143 = vsub.f32 %v4141, %v4142
    %v4144 = vand.u32 %v4143, 4294901760
    %4145 = vmatpush.msra.mxu0 %v4144
    %v4146 = vand.u32 %v2467, 4294901760
    %v4147 = vsub.f32 %v2467, %v4146
    %v4148 = vand.u32 %v4147, 4294901760
    %v4149 = vsub.f32 %v4147, %v4148
    %v4150 = vand.u32 %v4149, 4294901760
    %4151 = vmatpush.msra.mxu0 %v4150
    %v4152 = vand.u32 %v4086, 4294901760
    %4153 = vmatmul.f32.gmra.mxu0 %v4152
    %v4154 = vpop.f32.mrf.mxu0
    %v4155 = vadd.f32 %v4116, %v4154
    %v4156 = vand.u32 %v4089, 4294901760
    %4157 = vmatmul.f32.gmra.mxu0 %v4156
    %v4158 = vpop.f32.mrf.mxu0
    %v4159 = vadd.f32 %v4124, %v4158
    %4160 = vdwg.mxu0
    %4161 = vmatpush.msra.mxu0 0.0
    %4162 = vmatpush.msra.mxu0 0.0
    %4163 = vmatpush.msra.mxu0 0.0
    %4164 = vmatpush.msra.mxu0 0.0
    %4165 = vmatpush.msra.mxu0 0.0
    %4166 = vmatpush.msra.mxu0 0.0
    %4167 = vmatpush.msra.mxu0 0.0
    %4168 = vmatpush.msra.mxu0 0.0
    %4169 = vmatpush.msra.mxu0 0.0
    %4170 = vmatpush.msra.mxu0 0.0
    %4171 = vmatpush.msra.mxu0 0.0
    %4172 = vmatpush.msra.mxu0 0.0
    %4173 = vmatpush.msra.mxu0 0.0
    %4174 = vmatpush.msra.mxu0 0.0
    %v4175 = vand.u32 %v2471, 4294901760
    %v4176 = vsub.f32 %v2471, %v4175
    %4177 = vmatpush.msra.mxu0 %v4176
    %v4178 = vand.u32 %v2467, 4294901760
    %v4179 = vsub.f32 %v2467, %v4178
    %4180 = vmatpush.msra.mxu0 %v4179
    %v4181 = vand.u32 %v4086, 4294901760
    %v4182 = vsub.f32 %v4086, %v4181
    %4183 = vmatmul.f32.gmra.mxu0 %v4182
    %v4184 = vpop.f32.mrf.mxu0
    %v4185 = vadd.f32 %v4155, %v4184
    %v4186 = vand.u32 %v4089, 4294901760
    %v4187 = vsub.f32 %v4089, %v4186
    %4188 = vmatmul.f32.gmra.mxu0 %v4187
    %v4189 = vpop.f32.mrf.mxu0
    %v4190 = vadd.f32 %v4159, %v4189
    %4191 = vdwg.mxu0
    %4192 = vmatpush.msra.mxu0 0.0
    %4193 = vmatpush.msra.mxu0 0.0
    %4194 = vmatpush.msra.mxu0 0.0
    %4195 = vmatpush.msra.mxu0 0.0
    %4196 = vmatpush.msra.mxu0 0.0
    %4197 = vmatpush.msra.mxu0 0.0
    %4198 = vmatpush.msra.mxu0 0.0
    %4199 = vmatpush.msra.mxu0 0.0
    %4200 = vmatpush.msra.mxu0 0.0
    %4201 = vmatpush.msra.mxu0 0.0
    %4202 = vmatpush.msra.mxu0 0.0
    %4203 = vmatpush.msra.mxu0 0.0
    %4204 = vmatpush.msra.mxu0 0.0
    %4205 = vmatpush.msra.mxu0 0.0
    %v4206 = vand.u32 %v2471, 4294901760
    %4207 = vmatpush.msra.mxu0 %v4206
    %v4208 = vand.u32 %v2467, 4294901760
    %4209 = vmatpush.msra.mxu0 %v4208
    %v4210 = vand.u32 %v4086, 4294901760
    %v4211 = vsub.f32 %v4086, %v4210
    %v4212 = vand.u32 %v4211, 4294901760
    %4213 = vmatmul.f32.gmra.mxu0 %v4212
    %v4214 = vpop.f32.mrf.mxu0
    %v4215 = vadd.f32 %v4185, %v4214
    %v4216 = vand.u32 %v4089, 4294901760
    %v4217 = vsub.f32 %v4089, %v4216
    %v4218 = vand.u32 %v4217, 4294901760
    %4219 = vmatmul.f32.gmra.mxu0 %v4218
    %v4220 = vpop.f32.mrf.mxu0
    %v4221 = vadd.f32 %v4190, %v4220
    %4222 = vdwg.mxu0
    %4223 = vmatpush.msra.mxu0 0.0
    %4224 = vmatpush.msra.mxu0 0.0
    %4225 = vmatpush.msra.mxu0 0.0
    %4226 = vmatpush.msra.mxu0 0.0
    %4227 = vmatpush.msra.mxu0 0.0
    %4228 = vmatpush.msra.mxu0 0.0
    %4229 = vmatpush.msra.mxu0 0.0
    %4230 = vmatpush.msra.mxu0 0.0
    %4231 = vmatpush.msra.mxu0 0.0
    %4232 = vmatpush.msra.mxu0 0.0
    %4233 = vmatpush.msra.mxu0 0.0
    %4234 = vmatpush.msra.mxu0 0.0
    %4235 = vmatpush.msra.mxu0 0.0
    %4236 = vmatpush.msra.mxu0 0.0
    %v4237 = vand.u32 %v2471, 4294901760
    %v4238 = vsub.f32 %v2471, %v4237
    %v4239 = vand.u32 %v4238, 4294901760
    %4240 = vmatpush.msra.mxu0 %v4239
    %v4241 = vand.u32 %v2467, 4294901760
    %v4242 = vsub.f32 %v2467, %v4241
    %v4243 = vand.u32 %v4242, 4294901760
    %4244 = vmatpush.msra.mxu0 %v4243
    %v4245 = vand.u32 %v4086, 4294901760
    %4246 = vmatmul.f32.gmra.mxu0 %v4245
    %v4247 = vpop.f32.mrf.mxu0
    %v4248 = vadd.f32 %v4215, %v4247
    %v4249 = vand.u32 %v4089, 4294901760
    %4250 = vmatmul.f32.gmra.mxu0 %v4249
    %v4251 = vpop.f32.mrf.mxu0
    %v4252 = vadd.f32 %v4221, %v4251
    %4253 = vdwg.mxu0
    %4254 = vmatpush.msra.mxu0 0.0
    %4255 = vmatpush.msra.mxu0 0.0
    %4256 = vmatpush.msra.mxu0 0.0
    %4257 = vmatpush.msra.mxu0 0.0
    %4258 = vmatpush.msra.mxu0 0.0
    %4259 = vmatpush.msra.mxu0 0.0
    %4260 = vmatpush.msra.mxu0 0.0
    %4261 = vmatpush.msra.mxu0 0.0
    %4262 = vmatpush.msra.mxu0 0.0
    %4263 = vmatpush.msra.mxu0 0.0
    %4264 = vmatpush.msra.mxu0 0.0
    %4265 = vmatpush.msra.mxu0 0.0
    %4266 = vmatpush.msra.mxu0 0.0
    %4267 = vmatpush.msra.mxu0 0.0
    %v4268 = vand.u32 %v2471, 4294901760
    %4269 = vmatpush.msra.mxu0 %v4268
    %v4270 = vand.u32 %v2467, 4294901760
    %4271 = vmatpush.msra.mxu0 %v4270
    %v4272 = vand.u32 %v4086, 4294901760
    %4273 = vmatmul.f32.gmra.mxu0 %v4272
    %v4274 = vpop.f32.mrf.mxu0
    %v4275 = vadd.f32 %v4248, %v4274
    %v4276 = vand.u32 %v4089, 4294901760
    %4277 = vmatmul.f32.gmra.mxu0 %v4276
    %v4278 = vpop.f32.mrf.mxu0
    %v4279 = vadd.f32 %v4252, %v4278
    %4280 = vdwg.mxu0
    %v4282 = vsel %vm3500, %v3677, 0
    %v4285 = vsel %vm3500, %v3692, 0
    %4287 = vmatpush.msra.mxu0 0.0
    %4288 = vmatpush.msra.mxu0 0.0
    %4289 = vmatpush.msra.mxu0 0.0
    %4290 = vmatpush.msra.mxu0 0.0
    %4291 = vmatpush.msra.mxu0 0.0
    %4292 = vmatpush.msra.mxu0 0.0
    %4293 = vmatpush.msra.mxu0 0.0
    %4294 = vmatpush.msra.mxu0 0.0
    %4295 = vmatpush.msra.mxu0 0.0
    %4296 = vmatpush.msra.mxu0 0.0
    %4297 = vmatpush.msra.mxu0 0.0
    %4298 = vmatpush.msra.mxu0 0.0
    %4299 = vmatpush.msra.mxu0 0.0
    %4300 = vmatpush.msra.mxu0 0.0
    %v4301 = vand.u32 %v2687, 4294901760
    %4302 = vmatpush.msra.mxu0 %v4301
    %v4303 = vand.u32 %v2683, 4294901760
    %4304 = vmatpush.msra.mxu0 %v4303
    %v4305 = vand.u32 %v4282, 4294901760
    %v4306 = vsub.f32 %v4282, %v4305
    %v4307 = vand.u32 %v4306, 4294901760
    %v4308 = vsub.f32 %v4306, %v4307
    %v4309 = vand.u32 %v4308, 4294901760
    %4310 = vmatmul.f32.gmra.mxu0 %v4309
    %v4311 = vpop.f32.mrf.mxu0
    %v4312 = vadd.f32 0.0, %v4311
    %v4313 = vand.u32 %v4285, 4294901760
    %v4314 = vsub.f32 %v4285, %v4313
    %v4315 = vand.u32 %v4314, 4294901760
    %v4316 = vsub.f32 %v4314, %v4315
    %v4317 = vand.u32 %v4316, 4294901760
    %4318 = vmatmul.f32.gmra.mxu0 %v4317
    %v4319 = vpop.f32.mrf.mxu0
    %v4320 = vadd.f32 0.0, %v4319
    %4321 = vdwg.mxu0
    %4322 = vmatpush.msra.mxu0 0.0
    %4323 = vmatpush.msra.mxu0 0.0
    %4324 = vmatpush.msra.mxu0 0.0
    %4325 = vmatpush.msra.mxu0 0.0
    %4326 = vmatpush.msra.mxu0 0.0
    %4327 = vmatpush.msra.mxu0 0.0
    %4328 = vmatpush.msra.mxu0 0.0
    %4329 = vmatpush.msra.mxu0 0.0
    %4330 = vmatpush.msra.mxu0 0.0
    %4331 = vmatpush.msra.mxu0 0.0
    %4332 = vmatpush.msra.mxu0 0.0
    %4333 = vmatpush.msra.mxu0 0.0
    %4334 = vmatpush.msra.mxu0 0.0
    %4335 = vmatpush.msra.mxu0 0.0
    %v4336 = vand.u32 %v2687, 4294901760
    %v4337 = vsub.f32 %v2687, %v4336
    %v4338 = vand.u32 %v4337, 4294901760
    %v4339 = vsub.f32 %v4337, %v4338
    %v4340 = vand.u32 %v4339, 4294901760
    %4341 = vmatpush.msra.mxu0 %v4340
    %v4342 = vand.u32 %v2683, 4294901760
    %v4343 = vsub.f32 %v2683, %v4342
    %v4344 = vand.u32 %v4343, 4294901760
    %v4345 = vsub.f32 %v4343, %v4344
    %v4346 = vand.u32 %v4345, 4294901760
    %4347 = vmatpush.msra.mxu0 %v4346
    %v4348 = vand.u32 %v4282, 4294901760
    %4349 = vmatmul.f32.gmra.mxu0 %v4348
    %v4350 = vpop.f32.mrf.mxu0
    %v4351 = vadd.f32 %v4312, %v4350
    %v4352 = vand.u32 %v4285, 4294901760
    %4353 = vmatmul.f32.gmra.mxu0 %v4352
    %v4354 = vpop.f32.mrf.mxu0
    %v4355 = vadd.f32 %v4320, %v4354
    %4356 = vdwg.mxu0
    %4357 = vmatpush.msra.mxu0 0.0
    %4358 = vmatpush.msra.mxu0 0.0
    %4359 = vmatpush.msra.mxu0 0.0
    %4360 = vmatpush.msra.mxu0 0.0
    %4361 = vmatpush.msra.mxu0 0.0
    %4362 = vmatpush.msra.mxu0 0.0
    %4363 = vmatpush.msra.mxu0 0.0
    %4364 = vmatpush.msra.mxu0 0.0
    %4365 = vmatpush.msra.mxu0 0.0
    %4366 = vmatpush.msra.mxu0 0.0
    %4367 = vmatpush.msra.mxu0 0.0
    %4368 = vmatpush.msra.mxu0 0.0
    %4369 = vmatpush.msra.mxu0 0.0
    %4370 = vmatpush.msra.mxu0 0.0
    %v4371 = vand.u32 %v2687, 4294901760
    %v4372 = vsub.f32 %v2687, %v4371
    %4373 = vmatpush.msra.mxu0 %v4372
    %v4374 = vand.u32 %v2683, 4294901760
    %v4375 = vsub.f32 %v2683, %v4374
    %4376 = vmatpush.msra.mxu0 %v4375
    %v4377 = vand.u32 %v4282, 4294901760
    %v4378 = vsub.f32 %v4282, %v4377
    %4379 = vmatmul.f32.gmra.mxu0 %v4378
    %v4380 = vpop.f32.mrf.mxu0
    %v4381 = vadd.f32 %v4351, %v4380
    %v4382 = vand.u32 %v4285, 4294901760
    %v4383 = vsub.f32 %v4285, %v4382
    %4384 = vmatmul.f32.gmra.mxu0 %v4383
    %v4385 = vpop.f32.mrf.mxu0
    %v4386 = vadd.f32 %v4355, %v4385
    %4387 = vdwg.mxu0
    %4388 = vmatpush.msra.mxu0 0.0
    %4389 = vmatpush.msra.mxu0 0.0
    %4390 = vmatpush.msra.mxu0 0.0
    %4391 = vmatpush.msra.mxu0 0.0
    %4392 = vmatpush.msra.mxu0 0.0
    %4393 = vmatpush.msra.mxu0 0.0
    %4394 = vmatpush.msra.mxu0 0.0
    %4395 = vmatpush.msra.mxu0 0.0
    %4396 = vmatpush.msra.mxu0 0.0
    %4397 = vmatpush.msra.mxu0 0.0
    %4398 = vmatpush.msra.mxu0 0.0
    %4399 = vmatpush.msra.mxu0 0.0
    %4400 = vmatpush.msra.mxu0 0.0
    %4401 = vmatpush.msra.mxu0 0.0
    %v4402 = vand.u32 %v2687, 4294901760
    %4403 = vmatpush.msra.mxu0 %v4402
    %v4404 = vand.u32 %v2683, 4294901760
    %4405 = vmatpush.msra.mxu0 %v4404
    %v4406 = vand.u32 %v4282, 4294901760
    %v4407 = vsub.f32 %v4282, %v4406
    %v4408 = vand.u32 %v4407, 4294901760
    %4409 = vmatmul.f32.gmra.mxu0 %v4408
    %v4410 = vpop.f32.mrf.mxu0
    %v4411 = vadd.f32 %v4381, %v4410
    %v4412 = vand.u32 %v4285, 4294901760
    %v4413 = vsub.f32 %v4285, %v4412
    %v4414 = vand.u32 %v4413, 4294901760
    %4415 = vmatmul.f32.gmra.mxu0 %v4414
    %v4416 = vpop.f32.mrf.mxu0
    %v4417 = vadd.f32 %v4386, %v4416
    %4418 = vdwg.mxu0
    %4419 = vmatpush.msra.mxu0 0.0
    %4420 = vmatpush.msra.mxu0 0.0
    %4421 = vmatpush.msra.mxu0 0.0
    %4422 = vmatpush.msra.mxu0 0.0
    %4423 = vmatpush.msra.mxu0 0.0
    %4424 = vmatpush.msra.mxu0 0.0
    %4425 = vmatpush.msra.mxu0 0.0
    %4426 = vmatpush.msra.mxu0 0.0
    %4427 = vmatpush.msra.mxu0 0.0
    %4428 = vmatpush.msra.mxu0 0.0
    %4429 = vmatpush.msra.mxu0 0.0
    %4430 = vmatpush.msra.mxu0 0.0
    %4431 = vmatpush.msra.mxu0 0.0
    %4432 = vmatpush.msra.mxu0 0.0
    %v4433 = vand.u32 %v2687, 4294901760
    %v4434 = vsub.f32 %v2687, %v4433
    %v4435 = vand.u32 %v4434, 4294901760
    %4436 = vmatpush.msra.mxu0 %v4435
    %v4437 = vand.u32 %v2683, 4294901760
    %v4438 = vsub.f32 %v2683, %v4437
    %v4439 = vand.u32 %v4438, 4294901760
    %4440 = vmatpush.msra.mxu0 %v4439
    %v4441 = vand.u32 %v4282, 4294901760
    %4442 = vmatmul.f32.gmra.mxu0 %v4441
    %v4443 = vpop.f32.mrf.mxu0
    %v4444 = vadd.f32 %v4411, %v4443
    %v4445 = vand.u32 %v4285, 4294901760
    %4446 = vmatmul.f32.gmra.mxu0 %v4445
    %v4447 = vpop.f32.mrf.mxu0
    %v4448 = vadd.f32 %v4417, %v4447
    %4449 = vdwg.mxu0
    %4450 = vmatpush.msra.mxu0 0.0
    %4451 = vmatpush.msra.mxu0 0.0
    %4452 = vmatpush.msra.mxu0 0.0
    %4453 = vmatpush.msra.mxu0 0.0
    %4454 = vmatpush.msra.mxu0 0.0
    %4455 = vmatpush.msra.mxu0 0.0
    %4456 = vmatpush.msra.mxu0 0.0
    %4457 = vmatpush.msra.mxu0 0.0
    %4458 = vmatpush.msra.mxu0 0.0
    %4459 = vmatpush.msra.mxu0 0.0
    %4460 = vmatpush.msra.mxu0 0.0
    %4461 = vmatpush.msra.mxu0 0.0
    %4462 = vmatpush.msra.mxu0 0.0
    %4463 = vmatpush.msra.mxu0 0.0
    %v4464 = vand.u32 %v2687, 4294901760
    %4465 = vmatpush.msra.mxu0 %v4464
    %v4466 = vand.u32 %v2683, 4294901760
    %4467 = vmatpush.msra.mxu0 %v4466
    %v4468 = vand.u32 %v4282, 4294901760
    %4469 = vmatmul.f32.gmra.mxu0 %v4468
    %v4470 = vpop.f32.mrf.mxu0
    %v4471 = vadd.f32 %v4444, %v4470
    %v4472 = vand.u32 %v4285, 4294901760
    %4473 = vmatmul.f32.gmra.mxu0 %v4472
    %v4474 = vpop.f32.mrf.mxu0
    %v4475 = vadd.f32 %v4448, %v4474
    %4476 = vdwg.mxu0
    %v4477 = vsel %vm44, %v3883, 0.0
    %v4478 = vsel %vm44, %v4079, 0.0
    %v4479 = vadd.f32 %v4477, %v4478
    %v4480 = vsel %vm44, %v4275, 0.0
    %v4481 = vadd.f32 %v4479, %v4480
    %v4482 = vsel %vm44, %v4471, 0.0
    %v4483 = vadd.f32 %v4481, %v4482
    %v4484 = vsel %vm44, %v3887, 0.0
    %v4485 = vsel %vm44, %v4083, 0.0
    %v4486 = vadd.f32 %v4484, %v4485
    %v4487 = vsel %vm44, %v4279, 0.0
    %v4488 = vadd.f32 %v4486, %v4487
    %v4489 = vsel %vm44, %v4475, 0.0
    %v4490 = vadd.f32 %v4488, %v4489
    %4491 = vst.msk [vmem:[#allocation2] sm:$0xff] %vm44, %v4483
    %4492 = vst.msk [vmem:[#allocation2 + $0x8] sm:$0xff] %vm44, %v4490
    // Predicated region
    $region26: #{_mha_forward.1} parent=1 // pred_check
      _
    $region27: #{_mha_forward.1} parent=1 // pred_check_branch
      %4494 = sbr.rel (0) target = $region29
    $region28: #{_mha_forward.1} parent=1 // pred_region
      %4496 = vsyncadd [#allocation3], 0
      %s4497 = sshll.u32 [#allocation2], 4
      %s4498 = int_to_ptr.vmem [resolvable:$true] %s4497
      %s4499 = sshll.u32 %s6, 4
      %s4500 = int_to_ptr.hbm [resolvable:$true] %s4499
      %4505 = dma.vmem_to_hbm [thread:$0]  %s4498, 256, %s4500, [#allocation3], 128, 128, 8
    $region29: #{_mha_forward.1} parent=1 // pred_fallthru
      _
    // Predicated region
    $region30: #{_mha_forward.1} parent=1 // pred_check
      _
    $region31: #{_mha_forward.1} parent=1 // pred_check_branch
      %4507 = sbr.rel (0) target = $region33
    $region32: #{_mha_forward.1} parent=1 // pred_region
      %4509 = dma.done [#allocation3], 256
    $region33: #{_mha_forward.1} parent=1 // pred_fallthru
      _
    %4510 = vsyncpa [#allocation3], 1

</llo_original>
